<compile_context>
chip_gen: v7x
topology: tpu7x:2x2x1
jax: 0.10.0
libtpu: 0.0.40
codegen_flags: <defaults>
</compile_context>

<pallas_src>
import functools

import jax
import jax.numpy as jnp
from jax.experimental import pallas as pl
from jax.experimental.pallas import tpu as pltpu

_VMEM_LIMIT = 56 * 1024 * 1024   # safe on v5e/v6e/v7x, well above the defaults


# ============================================================================
# Kernel 1: fused qkv 1x1 conv + 3x3 depthwise conv (one batch element/step)
# ============================================================================
_PAD_L = 8  # left pad width in the dwconv scratch -> sublane-aligned interior


def _qkv_dw_kernel(x_ref, wq_ref, bq_ref, wd_ref, bd_ref, o_ref, pad_ref, *, H, W):
    # x_ref:  (1, C, S)   channel-major input slab (S = H*W)
    # wq_ref: (C, 3C)     1x1 conv weight, bq_ref: (1, 3C)
    # wd_ref: (3, 3, 3C)  depthwise weight,  bd_ref: (1, 3C)
    # o_ref:  (1, 3C, S)  channel-major fused output (bf16)
    # pad_ref: (H+2, _PAD_L+W+1, 3C) VMEM scratch (padded channel-minor tile)
    C3 = o_ref.shape[1]
    S = H * W

    # ---- 1x1 conv: contract over C directly on the MXU (TN dot_general,
    #      no materialized input transpose) ----
    qkv = jax.lax.dot_general(
        x_ref[0], wq_ref[...], (((0,), (0,)), ((), ())),
        preferred_element_type=jnp.float32) + bq_ref[...]            # (S, 3C)

    # ---- zero ONLY the halo strips the taps read (not the whole scratch);
    #      done per step so it is correct even when the parallel batch grid
    #      is sharded across TensorCores (each core has its own scratch) ----
    zrow = jnp.zeros((1, _PAD_L + W + 1, C3), jnp.float32)
    zcol = jnp.zeros((H, 1, C3), jnp.float32)
    pad_ref[pl.ds(0, 1), :, :] = zrow                   # top halo row
    pad_ref[pl.ds(H + 1, 1), :, :] = zrow               # bottom halo row
    pad_ref[pl.ds(1, H), pl.ds(_PAD_L - 1, 1), :] = zcol  # left halo column
    pad_ref[pl.ds(1, H), pl.ds(_PAD_L + W, 1), :] = zcol  # right halo column

    # ---- interior store (fully overwritten every step) ----
    pad_ref[pl.ds(1, H), pl.ds(_PAD_L, W), :] = qkv.reshape(H, W, C3)

    # ---- 9-tap depthwise conv (f32 accumulation) ----
    xp = pad_ref[...]
    wd = wd_ref[...]
    acc = jnp.zeros((H, W, C3), jnp.float32)
    for dy in range(3):
        for dx in range(3):
            col0 = _PAD_L - 1 + dx
            acc = acc + xp[dy:dy + H, col0:col0 + W, :] * wd[dy, dx, :]
    acc = acc + bd_ref[0]

    # ---- emit channel-major, bf16-streamed intermediate ----
    o_ref[0] = acc.reshape(S, C3).T.astype(jnp.bfloat16)             # (3C, S)


def fused_qkv_dwconv(x_bcs, w_qkv, b_qkv, w_dw, b_dw, H, W):
    """x_bcs: (B, C, S) flattened NCHW input -> (B, 3C, S) bf16 channel-major qkv."""
    B, C, S = x_bcs.shape
    C3 = w_qkv.shape[1]
    kernel = functools.partial(_qkv_dw_kernel, H=H, W=W)
    return pl.pallas_call(
        kernel,
        out_shape=jax.ShapeDtypeStruct((B, C3, S), jnp.bfloat16),
        grid=(B,),
        in_specs=[
            pl.BlockSpec((1, C, S), lambda b: (b, 0, 0)),
            pl.BlockSpec((C, C3), lambda b: (0, 0)),
            pl.BlockSpec((1, C3), lambda b: (0, 0)),
            pl.BlockSpec((3, 3, C3), lambda b: (0, 0, 0)),
            pl.BlockSpec((1, C3), lambda b: (0, 0)),
        ],
        out_specs=pl.BlockSpec((1, C3, S), lambda b: (b, 0, 0)),
        scratch_shapes=[pltpu.VMEM((H + 2, _PAD_L + W + 1, C3), jnp.float32)],
        compiler_params=pltpu.CompilerParams(
            dimension_semantics=("parallel",),
            vmem_limit_bytes=_VMEM_LIMIT),
    )(x_bcs, w_qkv, b_qkv.reshape(1, C3), w_dw, b_dw.reshape(1, C3))


# ============================================================================
# Kernel 2: channel attention (all heads) + fused 1x1 output projection
# ============================================================================
def _attn_proj_kernel(temp_ref, q_ref, k_ref, v_ref, wp_ref, bp_ref, o_ref):
    # temp_ref: SMEM (num_heads,)
    # q/k/v_ref: (1, C, S) bf16 channel-major per-batch slabs
    # wp_ref: (Cout, Cin) projection weight (torch layout), bp_ref: (C, 1)
    # o_ref: (1, C, S) f32 channel-major output (== NCHW after a free reshape)
    C, S = o_ref.shape[1], o_ref.shape[2]
    HD = temp_ref.shape[0]
    cp = C // HD
    eps2 = jnp.float32(1e-24)   # eps^2 with eps=1e-12 (torch F.normalize default)

    q = q_ref[0].astype(jnp.float32)               # (C, S)
    k = k_ref[0].astype(jnp.float32)
    v = v_ref[0].astype(jnp.float32)
    # L2-normalize each channel row over the spatial axis: rsqrt (EUP) +
    # broadcast multiply instead of a full-tile divide.
    qn = q * jax.lax.rsqrt(jnp.maximum(jnp.sum(q * q, axis=-1, keepdims=True), eps2))
    kn = k * jax.lax.rsqrt(jnp.maximum(jnp.sum(k * k, axis=-1, keepdims=True), eps2))
    wp = wp_ref[...]

    # Init output with the projection bias; heads accumulate into it below
    # (projection folded into the head loop -> no (C,S) scratch pass).
    o_ref[0] = jnp.broadcast_to(bp_ref[...], (C, S))

    for h in range(HD):            # heads are aligned 32-row sublane slabs
        r0 = h * cp
        qh = qn[r0:r0 + cp, :]
        kh = kn[r0:r0 + cp, :]
        vh = v[r0:r0 + cp, :]
        attn = jax.lax.dot_general(
            qh, kh, (((1,), (1,)), ((), ())),
            preferred_element_type=jnp.float32) * temp_ref[h]        # (cp, cp)
        m = jnp.max(attn, axis=-1, keepdims=True)
        e = jnp.exp(attn - m)
        p = e * pl.reciprocal(jnp.sum(e, axis=-1, keepdims=True), approx=True)
        out_h = jnp.dot(p, vh, preferred_element_type=jnp.float32)   # (cp, S)
        o_ref[0] = o_ref[0] + jnp.dot(wp[:, r0:r0 + cp], out_h,
                                      preferred_element_type=jnp.float32)


def fused_attn_project(qkv_t, temperature, w_proj_t, b_proj):
    """qkv_t: (B, 3C, S) bf16 channel-major -> (B, C, S) f32 channel-major output."""
    B, C3, S = qkv_t.shape
    C = C3 // 3
    return pl.pallas_call(
        _attn_proj_kernel,
        out_shape=jax.ShapeDtypeStruct((B, C, S), jnp.float32),
        grid=(B,),
        in_specs=[
            pl.BlockSpec(memory_space=pltpu.MemorySpace.SMEM),   # temperature
            pl.BlockSpec((1, C, S), lambda b: (b, 0, 0)),        # q channels
            pl.BlockSpec((1, C, S), lambda b: (b, 1, 0)),        # k channels
            pl.BlockSpec((1, C, S), lambda b: (b, 2, 0)),        # v channels
            pl.BlockSpec((C, C), lambda b: (0, 0)),              # w_proj (Cout,Cin)
            pl.BlockSpec((C, 1), lambda b: (0, 0)),              # b_proj
        ],
        out_specs=pl.BlockSpec((1, C, S), lambda b: (b, 0, 0)),
        compiler_params=pltpu.CompilerParams(
            dimension_semantics=("parallel",),
            vmem_limit_bytes=_VMEM_LIMIT),
    )(temperature, qkv_t, qkv_t, qkv_t, w_proj_t, b_proj.reshape(C, 1))


# ----------------------------------------------------------------------------
# Parameter setup (deterministic; weight_norm folded into effective weights)
# ----------------------------------------------------------------------------
def weight_norm_effective(v, g):
    """PyTorch weight_norm (dim=0): w = g * v / ||v||, norm over all dims != 0."""
    axes = tuple(range(1, v.ndim))
    norm = jnp.sqrt(jnp.sum(v * v, axis=axes, keepdims=True))
    g = g.reshape((-1,) + (1,) * (v.ndim - 1))
    return g * v / norm


def init_params(key, dim, bias=True):
    num_heads = dim // 32
    keys = jax.random.split(key, 9)

    def conv_wn(kv, kg, cout, cin, kh, kw):
        v = 0.1 * jax.random.normal(kv, (cout, cin, kh, kw), jnp.float32)
        g = 1.0 + 0.1 * jax.random.normal(kg, (cout,), jnp.float32)
        return weight_norm_effective(v, g)  # (cout, cin, kh, kw)

    w_qkv = conv_wn(keys[0], keys[1], 3 * dim, dim, 1, 1)
    w_dw = conv_wn(keys[2], keys[3], 3 * dim, 1, 3, 3)        # groups = 3*dim
    w_proj = conv_wn(keys[4], keys[5], dim, dim, 1, 1)

    if bias:
        b_qkv = 0.1 * jax.random.normal(keys[6], (3 * dim,), jnp.float32)
        b_dw = 0.1 * jax.random.normal(keys[7], (3 * dim,), jnp.float32)
        b_proj = 0.1 * jax.random.normal(keys[8], (dim,), jnp.float32)
    else:
        b_qkv = jnp.zeros((3 * dim,), jnp.float32)
        b_dw = jnp.zeros((3 * dim,), jnp.float32)
        b_proj = jnp.zeros((dim,), jnp.float32)

    return dict(
        w_qkv=jnp.transpose(w_qkv[:, :, 0, 0], (1, 0)),   # (Cin, 3C)
        b_qkv=b_qkv,
        w_dw=jnp.transpose(w_dw[:, 0, :, :], (1, 2, 0)),  # (3, 3, 3C)
        b_dw=b_dw,
        w_proj_t=w_proj[:, :, 0, 0],                      # (Cout, Cin) torch layout
        b_proj=b_proj,
        temperature=jnp.ones((num_heads,), jnp.float32),  # nn.Parameter(ones)
        num_heads=num_heads,
    )


# ----------------------------------------------------------------------------
# Full forward (matches Attention.forward semantics; input/output NCHW)
# ----------------------------------------------------------------------------
def attention_forward(x_nchw, params):
    B, C, H, W = x_nchw.shape
    x_bcs = x_nchw.reshape(B, C, H * W)                   # free contiguous reshape
    qkv_t = fused_qkv_dwconv(x_bcs, params["w_qkv"], params["b_qkv"],
                             params["w_dw"], params["b_dw"], H, W)   # (B,3C,S) bf16
    y = fused_attn_project(qkv_t, params["temperature"],
                           params["w_proj_t"], params["b_proj"])     # (B,C,S) f32
    return y.reshape(B, C, H, W)                          # already channel-major


# ----------------------------------------------------------------------------
# Pure-JAX reference (same math; matches the kernel's bf16-streamed qkv)
# ----------------------------------------------------------------------------
def attention_reference(x_nchw, params):
    B, C, H, W = x_nchw.shape
    HD = params["num_heads"]
    cp = C // HD
    x = jnp.transpose(x_nchw, (0, 2, 3, 1))
    qkv = jnp.einsum("bhwc,cd->bhwd", x, params["w_qkv"]) + params["b_qkv"]
    xp = jnp.pad(qkv, ((0, 0), (1, 1), (1, 1), (0, 0)))
    acc = jnp.zeros_like(qkv)
    for dy in range(3):
        for dx in range(3):
            acc = acc + xp[:, dy:dy + H, dx:dx + W, :] * params["w_dw"][dy, dx, :]
    qkv = acc + params["b_dw"]
    # match the kernel's bf16 HBM streaming of the intermediate
    qkv = qkv.astype(jnp.bfloat16).astype(jnp.float32)
    q, k, v = qkv[..., :C], qkv[..., C:2 * C], qkv[..., 2 * C:]

    def to_heads(t):  # 'b h w (head c) -> b head c (h w)'
        return jnp.transpose(t.reshape(B, H * W, HD, cp), (0, 2, 3, 1))

    q, k, v = map(to_heads, (q, k, v))
    qn = q / jnp.maximum(jnp.linalg.norm(q, axis=-1, keepdims=True), 1e-12)
    kn = k / jnp.maximum(jnp.linalg.norm(k, axis=-1, keepdims=True), 1e-12)
    attn = jnp.einsum("bhcs,bhds->bhcd", qn, kn)
    attn = attn * params["temperature"].reshape(1, HD, 1, 1)
    attn = jax.nn.softmax(attn, axis=-1)
    out = jnp.einsum("bhcd,bhds->bhcs", attn, v)          # (B, HD, cp, S)
    out = out.reshape(B, C, H * W)                        # 'b (head c) (h w)'
    y = jnp.einsum("oc,bcs->bos", params["w_proj_t"], out)
    y = y + params["b_proj"].reshape(1, C, 1)
    return y.reshape(B, C, H, W)


if __name__ == "__main__":
    key = jax.random.PRNGKey(0)
    k_param, k_x = jax.random.split(key)

    B, dim, H, W = 2, 64, 16, 16        # num_heads = dim // 32 = 2, S = 256
    params = init_params(k_param, dim, bias=True)
    x = jax.random.normal(k_x, (B, dim, H, W), jnp.float32)

    out = jax.block_until_ready(attention_forward(x, params))
    ref = jax.block_until_ready(attention_reference(x, params))

    assert out.shape == (B, dim, H, W)
    err = float(jnp.max(jnp.abs(out - ref)))
    assert err < 1e-2, f"max abs err {err}"

    print("KERNEL_OK")
</pallas_src>

<mosaic_0001>
module attributes {stable_mosaic.version = 11 : i64} {
  func.func @_qkv_dw_kernel(%arg0: i32, %arg1: memref<1x64x256xf32, #tpu.memory_space<vmem>>, %arg2: memref<64x192xf32, #tpu.memory_space<vmem>>, %arg3: memref<1x192xf32, #tpu.memory_space<vmem>>, %arg4: memref<3x3x192xf32, #tpu.memory_space<vmem>>, %arg5: memref<1x192xf32, #tpu.memory_space<vmem>>, %arg6: memref<1x192x256xbf16, #tpu.memory_space<vmem>>, %arg7: memref<18x25x192xf32, #tpu.memory_space<vmem>>) attributes {dimension_semantics = [#tpu.dimension_semantics<parallel>], iteration_bounds = array<i64: 2>, scalar_prefetch = 0 : i64, scratch_operands = 1 : i64, tpu.core_type = #tpu.core_type<tc>, window_params = [{transform_indices = @transform_0, window_bounds = array<i64: 1, 64, 256>}, {pipeline_mode = #tpu.pipeline_mode<synchronous>, transform_indices = @transform_1, window_bounds = array<i64: 64, 192>}, {pipeline_mode = #tpu.pipeline_mode<synchronous>, transform_indices = @transform_2, window_bounds = array<i64: 1, 192>}, {pipeline_mode = #tpu.pipeline_mode<synchronous>, transform_indices = @transform_3, window_bounds = array<i64: 3, 3, 192>}, {pipeline_mode = #tpu.pipeline_mode<synchronous>, transform_indices = @transform_4, window_bounds = array<i64: 1, 192>}, {transform_indices = @transform_5, window_bounds = array<i64: 1, 192, 256>}]} {
    %c0 = arith.constant 0 : index
    %c0_0 = arith.constant 0 : index
    %c0_1 = arith.constant 0 : index
    %0 = vector.load %arg1[%c0, %c0_0, %c0_1] : memref<1x64x256xf32, #tpu.memory_space<vmem>>, vector<1x64x256xf32>
    %1 = vector.shape_cast %0 : vector<1x64x256xf32> to vector<64x256xf32>
    %c0_2 = arith.constant 0 : index
    %c0_3 = arith.constant 0 : index
    %2 = vector.load %arg2[%c0_2, %c0_3] : memref<64x192xf32, #tpu.memory_space<vmem>>, vector<64x192xf32>
    %cst = arith.constant dense<0.000000e+00> : vector<256x192xf32>
    %3 = tpu.matmul %1, %2, %cst {dimension_numbers = #tpu.dot_dimension_numbers<[0], [0], [1], [1], [0, 1, 1, 1], [], []>} : vector<64x256xf32>, vector<64x192xf32>, vector<256x192xf32> -> vector<256x192xf32>
    %c0_4 = arith.constant 0 : index
    %c0_5 = arith.constant 0 : index
    %4 = vector.load %arg3[%c0_4, %c0_5] : memref<1x192xf32, #tpu.memory_space<vmem>>, vector<1x192xf32>
    %5 = vector.broadcast %4 : vector<1x192xf32> to vector<256x192xf32>
    %6 = arith.addf %3, %5 : vector<256x192xf32>
    %cst_6 = arith.constant 0.000000e+00 : f32
    %7 = vector.broadcast %cst_6 : f32 to vector<1x25x192xf32>
    %cst_7 = arith.constant 0.000000e+00 : f32
    %8 = vector.broadcast %cst_7 : f32 to vector<16x1x192xf32>
    %c0_8 = arith.constant 0 : index
    %c0_9 = arith.constant 0 : index
    %c0_10 = arith.constant 0 : index
    %9 = vector.load %arg7[%c0_8, %c0_9, %c0_10] : memref<18x25x192xf32, #tpu.memory_space<vmem>>, vector<1x25x192xf32>
    tpu.vector_store %arg7[%c0_8, %c0_9, %c0_10], %7 {strides = array<i32>} : memref<18x25x192xf32, #tpu.memory_space<vmem>>, vector<1x25x192xf32>,
    %c17 = arith.constant 17 : index
    %c0_11 = arith.constant 0 : index
    %c0_12 = arith.constant 0 : index
    %10 = vector.load %arg7[%c17, %c0_11, %c0_12] : memref<18x25x192xf32, #tpu.memory_space<vmem>>, vector<1x25x192xf32>
    tpu.vector_store %arg7[%c17, %c0_11, %c0_12], %7 {strides = array<i32>} : memref<18x25x192xf32, #tpu.memory_space<vmem>>, vector<1x25x192xf32>,
    %c1 = arith.constant 1 : index
    %c7 = arith.constant 7 : index
    %c0_13 = arith.constant 0 : index
    %11 = vector.load %arg7[%c1, %c7, %c0_13] : memref<18x25x192xf32, #tpu.memory_space<vmem>>, vector<16x1x192xf32>
    tpu.vector_store %arg7[%c1, %c7, %c0_13], %8 {strides = array<i32>} : memref<18x25x192xf32, #tpu.memory_space<vmem>>, vector<16x1x192xf32>,
    %c1_14 = arith.constant 1 : index
    %c24 = arith.constant 24 : index
    %c0_15 = arith.constant 0 : index
    %12 = vector.load %arg7[%c1_14, %c24, %c0_15] : memref<18x25x192xf32, #tpu.memory_space<vmem>>, vector<16x1x192xf32>
    tpu.vector_store %arg7[%c1_14, %c24, %c0_15], %8 {strides = array<i32>} : memref<18x25x192xf32, #tpu.memory_space<vmem>>, vector<16x1x192xf32>,
    %13 = vector.shape_cast %6 : vector<256x192xf32> to vector<16x16x192xf32>
    %c1_16 = arith.constant 1 : index
    %c8 = arith.constant 8 : index
    %c0_17 = arith.constant 0 : index
    %14 = vector.load %arg7[%c1_16, %c8, %c0_17] : memref<18x25x192xf32, #tpu.memory_space<vmem>>, vector<16x16x192xf32>
    tpu.vector_store %arg7[%c1_16, %c8, %c0_17], %13 {strides = array<i32>} : memref<18x25x192xf32, #tpu.memory_space<vmem>>, vector<16x16x192xf32>,
    %c0_18 = arith.constant 0 : index
    %c0_19 = arith.constant 0 : index
    %c0_20 = arith.constant 0 : index
    %15 = vector.load %arg7[%c0_18, %c0_19, %c0_20] : memref<18x25x192xf32, #tpu.memory_space<vmem>>, vector<18x25x192xf32>
    %c0_21 = arith.constant 0 : index
    %c0_22 = arith.constant 0 : index
    %c0_23 = arith.constant 0 : index
    %16 = vector.load %arg4[%c0_21, %c0_22, %c0_23] : memref<3x3x192xf32, #tpu.memory_space<vmem>>, vector<3x3x192xf32>
    %cst_24 = arith.constant 0.000000e+00 : f32
    %17 = vector.broadcast %cst_24 : f32 to vector<16x16x192xf32>
    %18 = vector.extract_strided_slice %15 {offsets = [0, 7, 0], sizes = [16, 16, 192], strides = [1, 1, 1]} : vector<18x25x192xf32> to vector<16x16x192xf32>
    %19 = vector.extract_strided_slice %16 {offsets = [0, 0, 0], sizes = [1, 1, 192], strides = [1, 1, 1]} : vector<3x3x192xf32> to vector<1x1x192xf32>
    %20 = vector.shape_cast %19 : vector<1x1x192xf32> to vector<192xf32>
    %21 = vector.shape_cast %20 : vector<192xf32> to vector<1x1x192xf32>
    %22 = vector.broadcast %21 : vector<1x1x192xf32> to vector<16x16x192xf32>
    %23 = arith.mulf %18, %22 : vector<16x16x192xf32>
    %24 = arith.addf %17, %23 : vector<16x16x192xf32>
    %25 = vector.extract_strided_slice %15 {offsets = [0, 8, 0], sizes = [16, 16, 192], strides = [1, 1, 1]} : vector<18x25x192xf32> to vector<16x16x192xf32>
    %26 = vector.extract_strided_slice %16 {offsets = [0, 1, 0], sizes = [1, 1, 192], strides = [1, 1, 1]} : vector<3x3x192xf32> to vector<1x1x192xf32>
    %27 = vector.shape_cast %26 : vector<1x1x192xf32> to vector<192xf32>
    %28 = vector.shape_cast %27 : vector<192xf32> to vector<1x1x192xf32>
    %29 = vector.broadcast %28 : vector<1x1x192xf32> to vector<16x16x192xf32>
    %30 = arith.mulf %25, %29 : vector<16x16x192xf32>
    %31 = arith.addf %24, %30 : vector<16x16x192xf32>
    %32 = vector.extract_strided_slice %15 {offsets = [0, 9, 0], sizes = [16, 16, 192], strides = [1, 1, 1]} : vector<18x25x192xf32> to vector<16x16x192xf32>
    %33 = vector.extract_strided_slice %16 {offsets = [0, 2, 0], sizes = [1, 1, 192], strides = [1, 1, 1]} : vector<3x3x192xf32> to vector<1x1x192xf32>
    %34 = vector.shape_cast %33 : vector<1x1x192xf32> to vector<192xf32>
    %35 = vector.shape_cast %34 : vector<192xf32> to vector<1x1x192xf32>
    %36 = vector.broadcast %35 : vector<1x1x192xf32> to vector<16x16x192xf32>
    %37 = arith.mulf %32, %36 : vector<16x16x192xf32>
    %38 = arith.addf %31, %37 : vector<16x16x192xf32>
    %39 = vector.extract_strided_slice %15 {offsets = [1, 7, 0], sizes = [16, 16, 192], strides = [1, 1, 1]} : vector<18x25x192xf32> to vector<16x16x192xf32>
    %40 = vector.extract_strided_slice %16 {offsets = [1, 0, 0], sizes = [1, 1, 192], strides = [1, 1, 1]} : vector<3x3x192xf32> to vector<1x1x192xf32>
    %41 = vector.shape_cast %40 : vector<1x1x192xf32> to vector<192xf32>
    %42 = vector.shape_cast %41 : vector<192xf32> to vector<1x1x192xf32>
    %43 = vector.broadcast %42 : vector<1x1x192xf32> to vector<16x16x192xf32>
    %44 = arith.mulf %39, %43 : vector<16x16x192xf32>
    %45 = arith.addf %38, %44 : vector<16x16x192xf32>
    %46 = vector.extract_strided_slice %15 {offsets = [1, 8, 0], sizes = [16, 16, 192], strides = [1, 1, 1]} : vector<18x25x192xf32> to vector<16x16x192xf32>
    %47 = vector.extract_strided_slice %16 {offsets = [1, 1, 0], sizes = [1, 1, 192], strides = [1, 1, 1]} : vector<3x3x192xf32> to vector<1x1x192xf32>
    %48 = vector.shape_cast %47 : vector<1x1x192xf32> to vector<192xf32>
    %49 = vector.shape_cast %48 : vector<192xf32> to vector<1x1x192xf32>
    %50 = vector.broadcast %49 : vector<1x1x192xf32> to vector<16x16x192xf32>
    %51 = arith.mulf %46, %50 : vector<16x16x192xf32>
    %52 = arith.addf %45, %51 : vector<16x16x192xf32>
    %53 = vector.extract_strided_slice %15 {offsets = [1, 9, 0], sizes = [16, 16, 192], strides = [1, 1, 1]} : vector<18x25x192xf32> to vector<16x16x192xf32>
    %54 = vector.extract_strided_slice %16 {offsets = [1, 2, 0], sizes = [1, 1, 192], strides = [1, 1, 1]} : vector<3x3x192xf32> to vector<1x1x192xf32>
    %55 = vector.shape_cast %54 : vector<1x1x192xf32> to vector<192xf32>
    %56 = vector.shape_cast %55 : vector<192xf32> to vector<1x1x192xf32>
    %57 = vector.broadcast %56 : vector<1x1x192xf32> to vector<16x16x192xf32>
    %58 = arith.mulf %53, %57 : vector<16x16x192xf32>
    %59 = arith.addf %52, %58 : vector<16x16x192xf32>
    %60 = vector.extract_strided_slice %15 {offsets = [2, 7, 0], sizes = [16, 16, 192], strides = [1, 1, 1]} : vector<18x25x192xf32> to vector<16x16x192xf32>
    %61 = vector.extract_strided_slice %16 {offsets = [2, 0, 0], sizes = [1, 1, 192], strides = [1, 1, 1]} : vector<3x3x192xf32> to vector<1x1x192xf32>
    %62 = vector.shape_cast %61 : vector<1x1x192xf32> to vector<192xf32>
    %63 = vector.shape_cast %62 : vector<192xf32> to vector<1x1x192xf32>
    %64 = vector.broadcast %63 : vector<1x1x192xf32> to vector<16x16x192xf32>
    %65 = arith.mulf %60, %64 : vector<16x16x192xf32>
    %66 = arith.addf %59, %65 : vector<16x16x192xf32>
    %67 = vector.extract_strided_slice %15 {offsets = [2, 8, 0], sizes = [16, 16, 192], strides = [1, 1, 1]} : vector<18x25x192xf32> to vector<16x16x192xf32>
    %68 = vector.extract_strided_slice %16 {offsets = [2, 1, 0], sizes = [1, 1, 192], strides = [1, 1, 1]} : vector<3x3x192xf32> to vector<1x1x192xf32>
    %69 = vector.shape_cast %68 : vector<1x1x192xf32> to vector<192xf32>
    %70 = vector.shape_cast %69 : vector<192xf32> to vector<1x1x192xf32>
    %71 = vector.broadcast %70 : vector<1x1x192xf32> to vector<16x16x192xf32>
    %72 = arith.mulf %67, %71 : vector<16x16x192xf32>
    %73 = arith.addf %66, %72 : vector<16x16x192xf32>
    %74 = vector.extract_strided_slice %15 {offsets = [2, 9, 0], sizes = [16, 16, 192], strides = [1, 1, 1]} : vector<18x25x192xf32> to vector<16x16x192xf32>
    %75 = vector.extract_strided_slice %16 {offsets = [2, 2, 0], sizes = [1, 1, 192], strides = [1, 1, 1]} : vector<3x3x192xf32> to vector<1x1x192xf32>
    %76 = vector.shape_cast %75 : vector<1x1x192xf32> to vector<192xf32>
    %77 = vector.shape_cast %76 : vector<192xf32> to vector<1x1x192xf32>
    %78 = vector.broadcast %77 : vector<1x1x192xf32> to vector<16x16x192xf32>
    %79 = arith.mulf %74, %78 : vector<16x16x192xf32>
    %80 = arith.addf %73, %79 : vector<16x16x192xf32>
    %c0_25 = arith.constant 0 : index
    %c0_26 = arith.constant 0 : index
    %81 = vector.load %arg5[%c0_25, %c0_26] : memref<1x192xf32, #tpu.memory_space<vmem>>, vector<1x192xf32>
    %82 = vector.shape_cast %81 : vector<1x192xf32> to vector<192xf32>
    %83 = vector.shape_cast %82 : vector<192xf32> to vector<1x1x192xf32>
    %84 = vector.broadcast %83 : vector<1x1x192xf32> to vector<16x16x192xf32>
    %85 = arith.addf %80, %84 : vector<16x16x192xf32>
    %86 = vector.shape_cast %85 : vector<16x16x192xf32> to vector<256x192xf32>
    %87 = tpu.transpose %86, [1, 0] : vector<256x192xf32> -> vector<192x256xf32>
    %88 = arith.truncf %87 : vector<192x256xf32> to vector<192x256xbf16>
    %c0_27 = arith.constant 0 : index
    %c0_28 = arith.constant 0 : index
    %c0_29 = arith.constant 0 : index
    %89 = vector.load %arg6[%c0_27, %c0_28, %c0_29] : memref<1x192x256xbf16, #tpu.memory_space<vmem>>, vector<1x192x256xbf16>
    %90 = vector.shape_cast %89 : vector<1x192x256xbf16> to vector<192x256xbf16>
    %91 = vector.shape_cast %88 : vector<192x256xbf16> to vector<1x192x256xbf16>
    tpu.vector_store %arg6[%c0_27, %c0_28, %c0_29], %91 {strides = array<i32>} : memref<1x192x256xbf16, #tpu.memory_space<vmem>>, vector<1x192x256xbf16>,
    return
  }
  func.func @transform_0(%arg0: i32) -> (i32, i32, i32) {
    %c0_i32 = arith.constant 0 : i32
    %c0_i32_0 = arith.constant 0 : i32
    %c0_i32_1 = arith.constant 0 : i32
    return %arg0, %c0_i32, %c0_i32_0 : i32, i32, i32
  }
  func.func @transform_1(%arg0: i32) -> (i32, i32) {
    %c0_i32 = arith.constant 0 : i32
    %c0_i32_0 = arith.constant 0 : i32
    %c0_i32_1 = arith.constant 0 : i32
    return %c0_i32, %c0_i32_0 : i32, i32
  }
  func.func @transform_2(%arg0: i32) -> (i32, i32) {
    %c0_i32 = arith.constant 0 : i32
    %c0_i32_0 = arith.constant 0 : i32
    %c0_i32_1 = arith.constant 0 : i32
    return %c0_i32, %c0_i32_0 : i32, i32
  }
  func.func @transform_3(%arg0: i32) -> (i32, i32, i32) {
    %c0_i32 = arith.constant 0 : i32
    %c0_i32_0 = arith.constant 0 : i32
    %c0_i32_1 = arith.constant 0 : i32
    %c0_i32_2 = arith.constant 0 : i32
    return %c0_i32, %c0_i32_0, %c0_i32_1 : i32, i32, i32
  }
  func.func @transform_4(%arg0: i32) -> (i32, i32) {
    %c0_i32 = arith.constant 0 : i32
    %c0_i32_0 = arith.constant 0 : i32
    %c0_i32_1 = arith.constant 0 : i32
    return %c0_i32, %c0_i32_0 : i32, i32
  }
  func.func @transform_5(%arg0: i32) -> (i32, i32, i32) {
    %c0_i32 = arith.constant 0 : i32
    %c0_i32_0 = arith.constant 0 : i32
    %c0_i32_1 = arith.constant 0 : i32
    return %arg0, %c0_i32, %c0_i32_0 : i32, i32, i32
  }
}

</mosaic_0001>

<llo_original>
// kernel: tpu_custom_call.1
$region0: #{tpu_custom_call.1}
  #allocation0 [shape = 'u32[]', space=smem, size = 0x4, offset = 0x4, fixed_abs, tag = 'smem constant byte address 0x4 - core index']
  #allocation1 [shape = 'u32[144,128]{1,0:T(1,128)}', space=vmem, size = 0x12000, scoped, tag = 'internal scratch']
  #allocation2 [shape = 'f32[18,25,192]{2,1,0:T(8,128)}', space=vmem, size = 0x90000, scoped, tag = 'scratch operand']
  %s0 = inlined_call_operand.hbm [shape: f32[2,64,256], index: 0, kind: input, shape index: {}]
  %s1 = inlined_call_operand.hbm [shape: f32[64,192], index: 1, kind: input, shape index: {}]
  %s2 = inlined_call_operand.vmem [shape: f32[1,192], index: 2, kind: input, shape index: {}]
  %s3 = inlined_call_operand.hbm [shape: f32[3,3,192], index: 3, kind: input, shape index: {}]
  %s4 = inlined_call_operand.vmem [shape: f32[1,192], index: 4, kind: input, shape index: {}]
  %s5 = inlined_call_operand.hbm [shape: bf16[2,192,256], index: 5, kind: output, shape index: {}]
  %s6 = sld [smem:[#allocation0]]
  $region65: #{tpu_custom_call.1} parent=0
    _
  %s8 = ssub.s32 1, %s6
  %s9 = scalar_select 0, %s8, %s6
  $region1: #{tpu_custom_call.1} parent=0
    #allocation3 [shape = 'u8[131072]{0}', space=vmem, size = 0x20000, scoped, tag = 'input window, operand 0']
    #allocation4 [shape = 's32[2]{0}', space=sflag, size = 0x8, scoped, tag = 'scoped memory for tpu_custom_call.1']
    #allocation5 [shape = 's32[2]{0}', space=sflag, size = 0x8, scoped, tag = 'scoped memory for tpu_custom_call.1']
    #allocation6 [shape = 'u8[65536]{0}', space=vmem, size = 0x10000, scoped, tag = 'input window, operand 1, single buffered']
    #allocation7 [shape = 's32[1]{0}', space=sflag, size = 0x4, scoped, tag = 'scoped memory for tpu_custom_call.1']
    #allocation8 [shape = 'u8[12288]{0}', space=vmem, size = 0x3000, scoped, tag = 'input window, operand 3, single buffered']
    #allocation9 [shape = 'u8[196608]{0}', space=vmem, size = 0x30000, scoped, tag = 'output window, operand 0']
    %10 = vsyncpa [#allocation4], 0
    %s11 = scalar_lea.sflag [#allocation4], 1
    %12 = vsyncpa %s11, 0
    %13 = vsyncpa [#allocation7], 0
    %14 = vsyncpa [#allocation5], 0
    %s15 = scalar_lea.sflag [#allocation5], 1
    %16 = vsyncpa %s15, 0
    loop: start=0, step=1, limit=4
    $region2: #{tpu_custom_call.1} parent=1 // loop_pre_header
      _
    $region3: #{tpu_custom_call.1} parent=1 // loop_header
      %s18 = sphi 0, %s22
      %p19 = scmp.ge.s32.totalorder %s18, 4
      %s28 = sphi 0, %s30
      %s31 = sphi 0, %s28
      %s32 = sphi 0, %s31
      %s48 = sphi 0, %s32
      %s52 = sphi 0, %s52
      %s54 = sphi 0, %s52
      %s55 = sphi 0, %s54
      %s69 = sphi 0, %s55
      %s73 = sphi 0, %s73
      %s75 = sphi 0, %s73
      %s76 = sphi 0, %s75
      %s90 = sphi 0, %s76
      %s94 = sphi 0, %s94
      %s96 = sphi 0, %s94
      %s97 = sphi 0, %s96
      %s111 = sphi 0, %s97
      %s115 = sphi 0, %s115
      %s117 = sphi 0, %s115
      %s118 = sphi 0, %s117
      %s132 = sphi 0, %s118
      %s138 = sphi 0, %s140
      %s141 = sphi 0, %s138
      %s142 = sphi 0, %s141
      %s158 = sphi 0, %s142
    $region4: #{tpu_custom_call.1} parent=1 // loop_header_branch
      %21 = sbr.rel (%p19) target = $region8
    $region5: #{tpu_custom_call.1} parent=1 // loop_body
      %s23 = ssub.s32 %s18, 1
      %s24 = ssub.s32 %s18, 2
      %s25 = sadd.s32 %s18, 1
      %s26 = ssub.s32 %s18, %s25
      %p27 = scmp.eq.s32.totalorder %s26, 0
      %s29 = sadd.s32 %s28, 1
      %s30 = scalar_select %p27, %s28, %s29
      %p33 = pneg %p27
      %p34 = scmp.eq.s32.totalorder %s18, 1
      %p35 = por %p33, %p34
      %p36 = scmp.ne.s32.totalorder %s28, %s31
      %p37 = scmp.eq.s32.totalorder %s18, 0
      %p38 = por %p36, %p37
      %p39 = scmp.ne.s32.totalorder %s28, %s31
      %p40 = scmp.eq.s32.totalorder %s23, 1
      %p41 = por %p39, %p40
      %p42 = scmp.ne.s32.totalorder %s31, %s32
      %p43 = scmp.eq.s32.totalorder %s23, 0
      %p44 = por %p42, %p43
      %p45 = scmp.ne.s32.totalorder %s31, %s32
      %p46 = scmp.eq.s32.totalorder %s24, 1
      %p47 = por %p45, %p46
      %p49 = scmp.ne.s32.totalorder %s32, %s48
      %p50 = scmp.eq.s32.totalorder %s24, 0
      %p51 = por %p49, %p50
      %s53 = sadd.s32 %s52, 1
      %p56 = scmp.eq.s32.totalorder %s18, 1
      %p57 = scmp.ne.s32.totalorder %s52, %s54
      %p58 = scmp.eq.s32.totalorder %s18, 0
      %p59 = por %p57, %p58
      %p60 = scmp.ne.s32.totalorder %s52, %s54
      %p61 = scmp.eq.s32.totalorder %s23, 1
      %p62 = por %p60, %p61
      %p63 = scmp.ne.s32.totalorder %s54, %s55
      %p64 = scmp.eq.s32.totalorder %s23, 0
      %p65 = por %p63, %p64
      %p66 = scmp.ne.s32.totalorder %s54, %s55
      %p67 = scmp.eq.s32.totalorder %s24, 1
      %p68 = por %p66, %p67
      %p70 = scmp.ne.s32.totalorder %s55, %s69
      %p71 = scmp.eq.s32.totalorder %s24, 0
      %p72 = por %p70, %p71
      %s74 = sadd.s32 %s73, 1
      %p77 = scmp.eq.s32.totalorder %s18, 1
      %p78 = scmp.ne.s32.totalorder %s73, %s75
      %p79 = scmp.eq.s32.totalorder %s18, 0
      %p80 = por %p78, %p79
      %p81 = scmp.ne.s32.totalorder %s73, %s75
      %p82 = scmp.eq.s32.totalorder %s23, 1
      %p83 = por %p81, %p82
      %p84 = scmp.ne.s32.totalorder %s75, %s76
      %p85 = scmp.eq.s32.totalorder %s23, 0
      %p86 = por %p84, %p85
      %p87 = scmp.ne.s32.totalorder %s75, %s76
      %p88 = scmp.eq.s32.totalorder %s24, 1
      %p89 = por %p87, %p88
      %p91 = scmp.ne.s32.totalorder %s76, %s90
      %p92 = scmp.eq.s32.totalorder %s24, 0
      %p93 = por %p91, %p92
      %s95 = sadd.s32 %s94, 1
      %p98 = scmp.eq.s32.totalorder %s18, 1
      %p99 = scmp.ne.s32.totalorder %s94, %s96
      %p100 = scmp.eq.s32.totalorder %s18, 0
      %p101 = por %p99, %p100
      %p102 = scmp.ne.s32.totalorder %s94, %s96
      %p103 = scmp.eq.s32.totalorder %s23, 1
      %p104 = por %p102, %p103
      %p105 = scmp.ne.s32.totalorder %s96, %s97
      %p106 = scmp.eq.s32.totalorder %s23, 0
      %p107 = por %p105, %p106
      %p108 = scmp.ne.s32.totalorder %s96, %s97
      %p109 = scmp.eq.s32.totalorder %s24, 1
      %p110 = por %p108, %p109
      %p112 = scmp.ne.s32.totalorder %s97, %s111
      %p113 = scmp.eq.s32.totalorder %s24, 0
      %p114 = por %p112, %p113
      %s116 = sadd.s32 %s115, 1
      %p119 = scmp.eq.s32.totalorder %s18, 1
      %p120 = scmp.ne.s32.totalorder %s115, %s117
      %p121 = scmp.eq.s32.totalorder %s18, 0
      %p122 = por %p120, %p121
      %p123 = scmp.ne.s32.totalorder %s115, %s117
      %p124 = scmp.eq.s32.totalorder %s23, 1
      %p125 = por %p123, %p124
      %p126 = scmp.ne.s32.totalorder %s117, %s118
      %p127 = scmp.eq.s32.totalorder %s23, 0
      %p128 = por %p126, %p127
      %p129 = scmp.ne.s32.totalorder %s117, %s118
      %p130 = scmp.eq.s32.totalorder %s24, 1
      %p131 = por %p129, %p130
      %p133 = scmp.ne.s32.totalorder %s118, %s132
      %p134 = scmp.eq.s32.totalorder %s24, 0
      %p135 = por %p133, %p134
      %s136 = ssub.s32 %s18, %s25
      %p137 = scmp.eq.s32.totalorder %s136, 0
      %s139 = sadd.s32 %s138, 1
      %s140 = scalar_select %p137, %s138, %s139
      %p143 = pneg %p137
      %p144 = scmp.eq.s32.totalorder %s18, 1
      %p145 = por %p143, %p144
      %p146 = scmp.ne.s32.totalorder %s138, %s141
      %p147 = scmp.eq.s32.totalorder %s18, 0
      %p148 = por %p146, %p147
      %p149 = scmp.ne.s32.totalorder %s138, %s141
      %p150 = scmp.eq.s32.totalorder %s23, 1
      %p151 = por %p149, %p150
      %p152 = scmp.ne.s32.totalorder %s141, %s142
      %p153 = scmp.eq.s32.totalorder %s23, 0
      %p154 = por %p152, %p153
      %p155 = scmp.ne.s32.totalorder %s141, %s142
      %p156 = scmp.eq.s32.totalorder %s24, 1
      %p157 = por %p155, %p156
      %p159 = scmp.ne.s32.totalorder %s142, %s158
      %p160 = scmp.eq.s32.totalorder %s24, 0
      %p161 = por %p159, %p160
      %p162 = scmp.le.s32.totalorder 1, %s18
      %p163 = scmp.lt.s32.totalorder %s18, 3
      %p164 = pnand %p162, %p163
      %p165 = pneg %p164
      // Predicated region
      $region9: #{tpu_custom_call.1} parent=5 // pred_check
        _
      $region10: #{tpu_custom_call.1} parent=5 // pred_check_branch
        %167 = sbr.rel (%p164) target = $region12
      $region11: #{tpu_custom_call.1} parent=5 // pred_region
        %s168 = ssub.s32 %s18, 1
        // Predicated region
        $region13: #{tpu_custom_call.1} parent=11 // pred_check
          %p169 = pneg %p65
        $region14: #{tpu_custom_call.1} parent=11 // pred_check_branch
          %171 = sbr.rel (%p169) target = $region16
        $region15: #{tpu_custom_call.1} parent=11 // pred_region
          %s173 = ssub.s32 2048, 2048
          %174 = vsyncadd [#allocation7], %s173
          %s175 = sshll.u32 [#allocation6], 4
          %s176 = int_to_ptr.vmem [resolvable:$true] %s175
          %181 = dma.hbm_to_vmem [thread:$0]  %s1, 2048, %s176, [#allocation7], 256, 256, 16
        $region16: #{tpu_custom_call.1} parent=11 // pred_fallthru
          _
        // Predicated region
        $region17: #{tpu_custom_call.1} parent=11 // pred_check
          %p182 = pneg %p86
        $region18: #{tpu_custom_call.1} parent=11 // pred_check_branch
          %184 = sbr.rel (%p182) target = $region20
        $region19: #{tpu_custom_call.1} parent=11 // pred_region
          _
        $region20: #{tpu_custom_call.1} parent=11 // pred_fallthru
          _
        // Predicated region
        $region21: #{tpu_custom_call.1} parent=11 // pred_check
          %p185 = pneg %p107
        $region22: #{tpu_custom_call.1} parent=11 // pred_check_branch
          %187 = sbr.rel (%p185) target = $region24
        $region23: #{tpu_custom_call.1} parent=11 // pred_region
          %s189 = ssub.s32 384, 384
          %190 = vsyncadd [#allocation7], %s189
          %s191 = sshll.u32 [#allocation8], 4
          %s192 = int_to_ptr.vmem [resolvable:$true] %s191
          %197 = dma.hbm_to_vmem [thread:$0]  %s3, 384, %s192, [#allocation7], 128, 128, 8
        $region24: #{tpu_custom_call.1} parent=11 // pred_fallthru
          _
        // Predicated region
        $region25: #{tpu_custom_call.1} parent=11 // pred_check
          %p198 = pneg %p128
        $region26: #{tpu_custom_call.1} parent=11 // pred_check_branch
          %200 = sbr.rel (%p198) target = $region28
        $region27: #{tpu_custom_call.1} parent=11 // pred_region
          _
        $region28: #{tpu_custom_call.1} parent=11 // pred_fallthru
          _
      $region12: #{tpu_custom_call.1} parent=5 // pred_fallthru
        _
      %p201 = scmp.lt.s32.totalorder %s18, 2
      // Predicated region
      $region29: #{tpu_custom_call.1} parent=5 // pred_check
        %p202 = pneg %p201
      $region30: #{tpu_custom_call.1} parent=5 // pred_check_branch
        %204 = sbr.rel (%p202) target = $region32
      $region31: #{tpu_custom_call.1} parent=5 // pred_region
        // Predicated region
        $region33: #{tpu_custom_call.1} parent=31 // pred_check
          %p205 = pneg %p38
        $region34: #{tpu_custom_call.1} parent=31 // pred_check_branch
          %207 = sbr.rel (%p205) target = $region36
        $region35: #{tpu_custom_call.1} parent=31 // pred_region
          %s208 = sand.u32 %s28, 1
          %s209 = scalar_lea.sflag [#allocation4], %s208
          %s210 = sand.u32 %s28, 1
          %s211 = smul.addr %s210, 128
          %s212 = scalar_lea.vmem [#allocation3], %s211
          %s214 = ssub.s32 2048, 2048
          %215 = vsyncadd %s209, %s214
          %s216 = smul.addr %s18, 16
          %s217 = smul.addr %s216, 128
          %s218 = scalar_lea.hbm %s0, %s217
          %s219 = sshll.u32 %s212, 4
          %s220 = int_to_ptr.vmem [resolvable:$true] %s219
          %225 = dma.hbm_to_vmem [thread:$0]  %s218, 2048, %s220, %s209, 256, 256, 16
        $region36: #{tpu_custom_call.1} parent=31 // pred_fallthru
          _
      $region32: #{tpu_custom_call.1} parent=5 // pred_fallthru
        _
      %p226 = scmp.le.s32.totalorder 1, %s18
      %p227 = scmp.lt.s32.totalorder %s18, 3
      %p228 = pnand %p226, %p227
      %p229 = pneg %p228
      // Predicated region
      $region37: #{tpu_custom_call.1} parent=5 // pred_check
        _
      $region38: #{tpu_custom_call.1} parent=5 // pred_check_branch
        %231 = sbr.rel (%p228) target = $region40
      $region39: #{tpu_custom_call.1} parent=5 // pred_region
        %s232 = ssub.s32 %s18, 1
        %s233 = sand.u32 %s31, 1
        %s234 = scalar_lea.sflag [#allocation4], %s233
        %s235 = sand.u32 %s31, 1
        %s236 = smul.addr %s235, 128
        %s237 = scalar_lea.vmem [#allocation3], %s236
        // Predicated region
        $region41: #{tpu_custom_call.1} parent=39 // pred_check
          %p238 = pneg %p44
        $region42: #{tpu_custom_call.1} parent=39 // pred_check_branch
          %240 = sbr.rel (%p238) target = $region44
        $region43: #{tpu_custom_call.1} parent=39 // pred_region
          %241 = dma.done %s234, 2048
        $region44: #{tpu_custom_call.1} parent=39 // pred_fallthru
          _
        // Predicated region
        $region45: #{tpu_custom_call.1} parent=39 // pred_check
          %p242 = pneg %p65
        $region46: #{tpu_custom_call.1} parent=39 // pred_check_branch
          %244 = sbr.rel (%p242) target = $region48
        $region47: #{tpu_custom_call.1} parent=39 // pred_region
          %245 = dma.done [#allocation7], 2048
        $region48: #{tpu_custom_call.1} parent=39 // pred_fallthru
          _
        // Predicated region
        $region49: #{tpu_custom_call.1} parent=39 // pred_check
          %p246 = pneg %p107
        $region50: #{tpu_custom_call.1} parent=39 // pred_check_branch
          %248 = sbr.rel (%p246) target = $region52
        $region51: #{tpu_custom_call.1} parent=39 // pred_region
          %249 = dma.done [#allocation7], 384
        $region52: #{tpu_custom_call.1} parent=39 // pred_fallthru
          _
        %s250 = sand.u32 %s31, 1
        %s251 = scalar_lea.sflag [#allocation4], %s250
        %s252 = sand.u32 %s31, 1
        %s253 = smul.addr %s252, 128
        %s254 = scalar_lea.vmem [#allocation3], %s253
        %p255 = pneg %p44
        %p256 = pneg %p41
        %p257 = pneg %p65
        %p258 = pneg %p62
        %p259 = pneg %p86
        %p260 = pneg %p83
        %p261 = pneg %p107
        %p262 = pneg %p104
        %p263 = pneg %p128
        %p264 = pneg %p125
        %p265 = pneg %p154
        %p266 = pneg %p151
        %s267 = sand.u32 %s141, 1
        %s268 = scalar_lea.sflag [#allocation5], %s267
        %s269 = sand.u32 %s141, 1
        %s270 = smul.addr %s269, 192
        %s271 = scalar_lea.vmem [#allocation9], %s270
        %v272 = vld [vmem:[%s237] sm:$0xff]
        %v273 = vld [vmem:[%s237 + $0x8] sm:$0xff]
        %v274 = vld [vmem:[%s237 + $0x10] sm:$0xff]
        %v275 = vld [vmem:[%s237 + $0x18] sm:$0xff]
        %v276 = vld [vmem:[%s237 + $0x20] sm:$0xff]
        %v277 = vld [vmem:[%s237 + $0x28] sm:$0xff]
        %v278 = vld [vmem:[%s237 + $0x30] sm:$0xff]
        %v279 = vld [vmem:[%s237 + $0x38] sm:$0xff]
        %v280 = vld [vmem:[%s237 + $0x40] sm:$0xff]
        %v281 = vld [vmem:[%s237 + $0x48] sm:$0xff]
        %v282 = vld [vmem:[%s237 + $0x50] sm:$0xff]
        %v283 = vld [vmem:[%s237 + $0x58] sm:$0xff]
        %v284 = vld [vmem:[%s237 + $0x60] sm:$0xff]
        %v285 = vld [vmem:[%s237 + $0x68] sm:$0xff]
        %v286 = vld [vmem:[%s237 + $0x70] sm:$0xff]
        %v287 = vld [vmem:[%s237 + $0x78] sm:$0xff]
        %v288 = vld [vmem:[#allocation6] sm:$0xff]
        %v289 = vld [vmem:[#allocation6 + $0x8] sm:$0xff]
        %v290 = vld [vmem:[#allocation6 + $0x10] sm:$0xff]
        %v291 = vld [vmem:[#allocation6 + $0x18] sm:$0xff]
        %v292 = vld [vmem:[#allocation6 + $0x20] sm:$0xff]
        %v293 = vld [vmem:[#allocation6 + $0x28] sm:$0xff]
        %v294 = vld [vmem:[#allocation6 + $0x30] sm:$0xff]
        %v295 = vld [vmem:[#allocation6 + $0x38] sm:$0xff]
        %v296 = vld [vmem:[#allocation6 + $0x40] sm:$0xff]
        %v297 = vld [vmem:[#allocation6 + $0x48] sm:$0xff]
        %v298 = vld [vmem:[#allocation6 + $0x50] sm:$0xff]
        %v299 = vld [vmem:[#allocation6 + $0x58] sm:$0xff]
        %v300 = vld [vmem:[#allocation6 + $0x60] sm:$0xff]
        %v301 = vld [vmem:[#allocation6 + $0x68] sm:$0xff]
        %v302 = vld [vmem:[#allocation6 + $0x70] sm:$0xff]
        %v303 = vld [vmem:[#allocation6 + $0x78] sm:$0xff]
        %v304 = vld [vmem:[%s2] sm:$0x3]
        %v306 = vlaneseq
        %v307 = vshrl.u32 %v306, 7
        %v308 = vsub.s32 0, %v307
        %v309 = vrot.slane %v304, %v308
        %v310 = vlaneseq
        %v311 = vshrl.u32 %v310, 7
        %v312 = vsub.s32 1, %v311
        %v313 = vrot.slane %v304, %v312
        %316 = vxpose.xlu0.b32.start [1/16] %v272, 128
        %317 = vxpose.xlu0.b32.cont [2/16] %v274, 128
        %318 = vxpose.xlu0.b32.cont [3/16] %v276, 128
        %319 = vxpose.xlu0.b32.cont [4/16] %v278, 128
        %320 = vxpose.xlu0.b32.cont [5/16] %v280, 128
        %321 = vxpose.xlu0.b32.cont [6/16] %v282, 128
        %322 = vxpose.xlu0.b32.cont [7/16] %v284, 128
        %323 = vxpose.xlu0.b32.cont [8/16] %v286, 128
        %324 = vxpose.xlu0.b32.cont [9/16] 0.0, 128
        %325 = vxpose.xlu0.b32.cont [10/16] 0.0, 128
        %326 = vxpose.xlu0.b32.cont [11/16] 0.0, 128
        %327 = vxpose.xlu0.b32.cont [12/16] 0.0, 128
        %328 = vxpose.xlu0.b32.cont [13/16] 0.0, 128
        %329 = vxpose.xlu0.b32.cont [14/16] 0.0, 128
        %330 = vxpose.xlu0.b32.cont [15/16] 0.0, 128
        %331 = vxpose.xlu0.b32.end [16/16] 0.0, 128
        %v332 = vpop.trf.xlu0
        %v333 = vpop.trf.xlu0
        %v334 = vpop.trf.xlu0
        %v335 = vpop.trf.xlu0
        %v336 = vpop.trf.xlu0
        %v337 = vpop.trf.xlu0
        %v338 = vpop.trf.xlu0
        %v339 = vpop.trf.xlu0
        %v340 = vpop.trf.xlu0
        %v341 = vpop.trf.xlu0
        %v342 = vpop.trf.xlu0
        %v343 = vpop.trf.xlu0
        %v344 = vpop.trf.xlu0
        %v345 = vpop.trf.xlu0
        %v346 = vpop.trf.xlu0
        %v347 = vpop.trf.xlu0
        %348 = vxpose.xlu0.b32.start [1/16] %v273, 128
        %349 = vxpose.xlu0.b32.cont [2/16] %v275, 128
        %350 = vxpose.xlu0.b32.cont [3/16] %v277, 128
        %351 = vxpose.xlu0.b32.cont [4/16] %v279, 128
        %352 = vxpose.xlu0.b32.cont [5/16] %v281, 128
        %353 = vxpose.xlu0.b32.cont [6/16] %v283, 128
        %354 = vxpose.xlu0.b32.cont [7/16] %v285, 128
        %355 = vxpose.xlu0.b32.cont [8/16] %v287, 128
        %356 = vxpose.xlu0.b32.cont [9/16] 0.0, 128
        %357 = vxpose.xlu0.b32.cont [10/16] 0.0, 128
        %358 = vxpose.xlu0.b32.cont [11/16] 0.0, 128
        %359 = vxpose.xlu0.b32.cont [12/16] 0.0, 128
        %360 = vxpose.xlu0.b32.cont [13/16] 0.0, 128
        %361 = vxpose.xlu0.b32.cont [14/16] 0.0, 128
        %362 = vxpose.xlu0.b32.cont [15/16] 0.0, 128
        %363 = vxpose.xlu0.b32.end [16/16] 0.0, 128
        %v364 = vpop.trf.xlu0
        %v365 = vpop.trf.xlu0
        %v366 = vpop.trf.xlu0
        %v367 = vpop.trf.xlu0
        %v368 = vpop.trf.xlu0
        %v369 = vpop.trf.xlu0
        %v370 = vpop.trf.xlu0
        %v371 = vpop.trf.xlu0
        %v372 = vpop.trf.xlu0
        %v373 = vpop.trf.xlu0
        %v374 = vpop.trf.xlu0
        %v375 = vpop.trf.xlu0
        %v376 = vpop.trf.xlu0
        %v377 = vpop.trf.xlu0
        %v378 = vpop.trf.xlu0
        %v379 = vpop.trf.xlu0
        %vm380 = vcmask 523264
        %v382 = vsel %vm380, %v332, 0
        %v385 = vsel %vm380, %v333, 0
        %v388 = vsel %vm380, %v334, 0
        %v391 = vsel %vm380, %v335, 0
        %v394 = vsel %vm380, %v336, 0
        %v397 = vsel %vm380, %v337, 0
        %v400 = vsel %vm380, %v338, 0
        %v403 = vsel %vm380, %v339, 0
        %v406 = vsel %vm380, %v340, 0
        %v409 = vsel %vm380, %v341, 0
        %v412 = vsel %vm380, %v342, 0
        %v415 = vsel %vm380, %v343, 0
        %v418 = vsel %vm380, %v344, 0
        %v421 = vsel %vm380, %v345, 0
        %v424 = vsel %vm380, %v346, 0
        %v427 = vsel %vm380, %v347, 0
        %v430 = vsel %vm380, %v364, 0
        %v433 = vsel %vm380, %v365, 0
        %v436 = vsel %vm380, %v366, 0
        %v439 = vsel %vm380, %v367, 0
        %v442 = vsel %vm380, %v368, 0
        %v445 = vsel %vm380, %v369, 0
        %v448 = vsel %vm380, %v370, 0
        %v451 = vsel %vm380, %v371, 0
        %v454 = vsel %vm380, %v372, 0
        %v457 = vsel %vm380, %v373, 0
        %v460 = vsel %vm380, %v374, 0
        %v463 = vsel %vm380, %v375, 0
        %v466 = vsel %vm380, %v376, 0
        %v469 = vsel %vm380, %v377, 0
        %v472 = vsel %vm380, %v378, 0
        %v475 = vsel %vm380, %v379, 0
        %477 = vmatprep.subr.mxu0 %v289
        %478 = vmatpush1.msra.mxu0 %v288
        %479 = vmatprep.subr.mxu0 %v291
        %480 = vmatpush1.msra.mxu0 %v290
        %481 = vmatprep.subr.mxu0 %v293
        %482 = vmatpush1.msra.mxu0 %v292
        %483 = vmatprep.subr.mxu0 %v295
        %484 = vmatpush1.msra.mxu0 %v294
        %485 = vmatprep.subr.mxu0 %v297
        %486 = vmatpush1.msra.mxu0 %v296
        %487 = vmatprep.subr.mxu0 %v299
        %488 = vmatpush1.msra.mxu0 %v298
        %489 = vmatprep.subr.mxu0 %v301
        %490 = vmatpush1.msra.mxu0 %v300
        %491 = vmatprep.subr.mxu0 %v303
        %492 = vmatpush1.msra.mxu0 %v302
        %493 = vmatprep.subr.mxu0 0.0
        %494 = vmatpush1.msra.mxu0 0.0
        %495 = vmatprep.subr.mxu0 0.0
        %496 = vmatpush1.msra.mxu0 0.0
        %497 = vmatprep.subr.mxu0 0.0
        %498 = vmatpush1.msra.mxu0 0.0
        %499 = vmatprep.subr.mxu0 0.0
        %500 = vmatpush1.msra.mxu0 0.0
        %501 = vmatprep.subr.mxu0 0.0
        %502 = vmatpush1.msra.mxu0 0.0
        %503 = vmatprep.subr.mxu0 0.0
        %504 = vmatpush1.msra.mxu0 0.0
        %505 = vmatprep.subr.mxu0 0.0
        %506 = vmatpush1.msra.mxu0 0.0
        %507 = vmatprep.subr.mxu0 0.0
        %508 = vmatpush1.msra.mxu0 0.0
        %509 = vmatprep.subr.mxu0 0.0
        %510 = vmatpush1.msra.mxu0 0.0
        %511 = vmatprep.subr.mxu0 0.0
        %512 = vmatpush1.msra.mxu0 0.0
        %513 = vmatprep.subr.mxu0 0.0
        %514 = vmatpush1.msra.mxu0 0.0
        %515 = vmatprep.subr.mxu0 0.0
        %516 = vmatpush1.msra.mxu0 0.0
        %517 = vmatprep.subr.mxu0 0.0
        %518 = vmatpush1.msra.mxu0 0.0
        %519 = vmatprep.subr.mxu0 0.0
        %520 = vmatpush1.msra.mxu0 0.0
        %521 = vmatprep.subr.mxu0 0.0
        %522 = vmatpush1.msra.mxu0 0.0
        %523 = vmatprep.subr.mxu0 0.0
        %524 = vmatpush1.msra.mxu0 0.0
        %525 = vmatprep.subr.mxu0 0.0
        %526 = vmatpush1.msra.mxu0 0.0
        %527 = vmatprep.subr.mxu0 0.0
        %528 = vmatpush1.msra.mxu0 0.0
        %529 = vmatprep.subr.mxu0 0.0
        %530 = vmatpush1.msra.mxu0 0.0
        %531 = vmatprep.subr.mxu0 0.0
        %532 = vmatpush1.msra.mxu0 0.0
        %533 = vmatprep.subr.mxu0 0.0
        %534 = vmatpush1.msra.mxu0 0.0
        %535 = vmatprep.subr.mxu0 0.0
        %536 = vmatpush1.msra.mxu0 0.0
        %537 = vmatprep.subr.mxu0 0.0
        %538 = vmatpush1.msra.mxu0 0.0
        %539 = vmatprep.subr.mxu0 0.0
        %540 = vmatpush1.msra.mxu0 0.0
        %541 = vmatprep.mubr.f32.mxu0 0.0
        %542 = vmatmul.mubr.f32.gmra.mrb[0].mxu0 %v382
        %v543 = vpop.f32.mrb[0].mxu0
        %v544 = vadd.f32 %v309, %v543
        %v545 = vpop.f32.mrb[0].mxu0
        %v546 = vadd.f32 %v313, %v545
        %547 = vmatprep.mubr.f32.mxu0 0.0
        %548 = vmatmul.mubr.f32.gmra.mrb[0].mxu0 %v385
        %v549 = vpop.f32.mrb[0].mxu0
        %v550 = vadd.f32 %v309, %v549
        %v551 = vpop.f32.mrb[0].mxu0
        %v552 = vadd.f32 %v313, %v551
        %553 = vmatprep.mubr.f32.mxu0 0.0
        %554 = vmatmul.mubr.f32.gmra.mrb[0].mxu0 %v388
        %v555 = vpop.f32.mrb[0].mxu0
        %v556 = vadd.f32 %v309, %v555
        %v557 = vpop.f32.mrb[0].mxu0
        %v558 = vadd.f32 %v313, %v557
        %559 = vmatprep.mubr.f32.mxu0 0.0
        %560 = vmatmul.mubr.f32.gmra.mrb[0].mxu0 %v391
        %v561 = vpop.f32.mrb[0].mxu0
        %v562 = vadd.f32 %v309, %v561
        %v563 = vpop.f32.mrb[0].mxu0
        %v564 = vadd.f32 %v313, %v563
        %565 = vmatprep.mubr.f32.mxu0 0.0
        %566 = vmatmul.mubr.f32.gmra.mrb[0].mxu0 %v394
        %v567 = vpop.f32.mrb[0].mxu0
        %v568 = vadd.f32 %v309, %v567
        %v569 = vpop.f32.mrb[0].mxu0
        %v570 = vadd.f32 %v313, %v569
        %571 = vmatprep.mubr.f32.mxu0 0.0
        %572 = vmatmul.mubr.f32.gmra.mrb[0].mxu0 %v397
        %v573 = vpop.f32.mrb[0].mxu0
        %v574 = vadd.f32 %v309, %v573
        %v575 = vpop.f32.mrb[0].mxu0
        %v576 = vadd.f32 %v313, %v575
        %577 = vmatprep.mubr.f32.mxu0 0.0
        %578 = vmatmul.mubr.f32.gmra.mrb[0].mxu0 %v400
        %v579 = vpop.f32.mrb[0].mxu0
        %v580 = vadd.f32 %v309, %v579
        %v581 = vpop.f32.mrb[0].mxu0
        %v582 = vadd.f32 %v313, %v581
        %583 = vmatprep.mubr.f32.mxu0 0.0
        %584 = vmatmul.mubr.f32.gmra.mrb[0].mxu0 %v403
        %v585 = vpop.f32.mrb[0].mxu0
        %v586 = vadd.f32 %v309, %v585
        %v587 = vpop.f32.mrb[0].mxu0
        %v588 = vadd.f32 %v313, %v587
        %589 = vmatprep.mubr.f32.mxu0 0.0
        %590 = vmatmul.mubr.f32.gmra.mrb[0].mxu0 %v406
        %v591 = vpop.f32.mrb[0].mxu0
        %v592 = vadd.f32 %v309, %v591
        %v593 = vpop.f32.mrb[0].mxu0
        %v594 = vadd.f32 %v313, %v593
        %595 = vmatprep.mubr.f32.mxu0 0.0
        %596 = vmatmul.mubr.f32.gmra.mrb[0].mxu0 %v409
        %v597 = vpop.f32.mrb[0].mxu0
        %v598 = vadd.f32 %v309, %v597
        %v599 = vpop.f32.mrb[0].mxu0
        %v600 = vadd.f32 %v313, %v599
        %601 = vmatprep.mubr.f32.mxu0 0.0
        %602 = vmatmul.mubr.f32.gmra.mrb[0].mxu0 %v412
        %v603 = vpop.f32.mrb[0].mxu0
        %v604 = vadd.f32 %v309, %v603
        %v605 = vpop.f32.mrb[0].mxu0
        %v606 = vadd.f32 %v313, %v605
        %607 = vmatprep.mubr.f32.mxu0 0.0
        %608 = vmatmul.mubr.f32.gmra.mrb[0].mxu0 %v415
        %v609 = vpop.f32.mrb[0].mxu0
        %v610 = vadd.f32 %v309, %v609
        %v611 = vpop.f32.mrb[0].mxu0
        %v612 = vadd.f32 %v313, %v611
        %613 = vmatprep.mubr.f32.mxu0 0.0
        %614 = vmatmul.mubr.f32.gmra.mrb[0].mxu0 %v418
        %v615 = vpop.f32.mrb[0].mxu0
        %v616 = vadd.f32 %v309, %v615
        %v617 = vpop.f32.mrb[0].mxu0
        %v618 = vadd.f32 %v313, %v617
        %619 = vmatprep.mubr.f32.mxu0 0.0
        %620 = vmatmul.mubr.f32.gmra.mrb[0].mxu0 %v421
        %v621 = vpop.f32.mrb[0].mxu0
        %v622 = vadd.f32 %v309, %v621
        %v623 = vpop.f32.mrb[0].mxu0
        %v624 = vadd.f32 %v313, %v623
        %625 = vmatprep.mubr.f32.mxu0 0.0
        %626 = vmatmul.mubr.f32.gmra.mrb[0].mxu0 %v424
        %v627 = vpop.f32.mrb[0].mxu0
        %v628 = vadd.f32 %v309, %v627
        %v629 = vpop.f32.mrb[0].mxu0
        %v630 = vadd.f32 %v313, %v629
        %631 = vmatprep.mubr.f32.mxu0 0.0
        %632 = vmatmul.mubr.f32.gmra.mrb[0].mxu0 %v427
        %v633 = vpop.f32.mrb[0].mxu0
        %v634 = vadd.f32 %v309, %v633
        %v635 = vpop.f32.mrb[0].mxu0
        %v636 = vadd.f32 %v313, %v635
        %637 = vmatprep.mubr.f32.mxu0 0.0
        %638 = vmatmul.mubr.f32.gmra.mrb[0].mxu0 %v430
        %v639 = vpop.f32.mrb[0].mxu0
        %v640 = vadd.f32 %v309, %v639
        %v641 = vpop.f32.mrb[0].mxu0
        %v642 = vadd.f32 %v313, %v641
        %643 = vmatprep.mubr.f32.mxu0 0.0
        %644 = vmatmul.mubr.f32.gmra.mrb[0].mxu0 %v433
        %v645 = vpop.f32.mrb[0].mxu0
        %v646 = vadd.f32 %v309, %v645
        %v647 = vpop.f32.mrb[0].mxu0
        %v648 = vadd.f32 %v313, %v647
        %649 = vmatprep.mubr.f32.mxu0 0.0
        %650 = vmatmul.mubr.f32.gmra.mrb[0].mxu0 %v436
        %v651 = vpop.f32.mrb[0].mxu0
        %v652 = vadd.f32 %v309, %v651
        %v653 = vpop.f32.mrb[0].mxu0
        %v654 = vadd.f32 %v313, %v653
        %655 = vmatprep.mubr.f32.mxu0 0.0
        %656 = vmatmul.mubr.f32.gmra.mrb[0].mxu0 %v439
        %v657 = vpop.f32.mrb[0].mxu0
        %v658 = vadd.f32 %v309, %v657
        %v659 = vpop.f32.mrb[0].mxu0
        %v660 = vadd.f32 %v313, %v659
        %661 = vmatprep.mubr.f32.mxu0 0.0
        %662 = vmatmul.mubr.f32.gmra.mrb[0].mxu0 %v442
        %v663 = vpop.f32.mrb[0].mxu0
        %v664 = vadd.f32 %v309, %v663
        %v665 = vpop.f32.mrb[0].mxu0
        %v666 = vadd.f32 %v313, %v665
        %667 = vmatprep.mubr.f32.mxu0 0.0
        %668 = vmatmul.mubr.f32.gmra.mrb[0].mxu0 %v445
        %v669 = vpop.f32.mrb[0].mxu0
        %v670 = vadd.f32 %v309, %v669
        %v671 = vpop.f32.mrb[0].mxu0
        %v672 = vadd.f32 %v313, %v671
        %673 = vmatprep.mubr.f32.mxu0 0.0
        %674 = vmatmul.mubr.f32.gmra.mrb[0].mxu0 %v448
        %v675 = vpop.f32.mrb[0].mxu0
        %v676 = vadd.f32 %v309, %v675
        %v677 = vpop.f32.mrb[0].mxu0
        %v678 = vadd.f32 %v313, %v677
        %679 = vmatprep.mubr.f32.mxu0 0.0
        %680 = vmatmul.mubr.f32.gmra.mrb[0].mxu0 %v451
        %v681 = vpop.f32.mrb[0].mxu0
        %v682 = vadd.f32 %v309, %v681
        %v683 = vpop.f32.mrb[0].mxu0
        %v684 = vadd.f32 %v313, %v683
        %685 = vmatprep.mubr.f32.mxu0 0.0
        %686 = vmatmul.mubr.f32.gmra.mrb[0].mxu0 %v454
        %v687 = vpop.f32.mrb[0].mxu0
        %v688 = vadd.f32 %v309, %v687
        %v689 = vpop.f32.mrb[0].mxu0
        %v690 = vadd.f32 %v313, %v689
        %691 = vmatprep.mubr.f32.mxu0 0.0
        %692 = vmatmul.mubr.f32.gmra.mrb[0].mxu0 %v457
        %v693 = vpop.f32.mrb[0].mxu0
        %v694 = vadd.f32 %v309, %v693
        %v695 = vpop.f32.mrb[0].mxu0
        %v696 = vadd.f32 %v313, %v695
        %697 = vmatprep.mubr.f32.mxu0 0.0
        %698 = vmatmul.mubr.f32.gmra.mrb[0].mxu0 %v460
        %v699 = vpop.f32.mrb[0].mxu0
        %v700 = vadd.f32 %v309, %v699
        %v701 = vpop.f32.mrb[0].mxu0
        %v702 = vadd.f32 %v313, %v701
        %703 = vmatprep.mubr.f32.mxu0 0.0
        %704 = vmatmul.mubr.f32.gmra.mrb[0].mxu0 %v463
        %v705 = vpop.f32.mrb[0].mxu0
        %v706 = vadd.f32 %v309, %v705
        %v707 = vpop.f32.mrb[0].mxu0
        %v708 = vadd.f32 %v313, %v707
        %709 = vmatprep.mubr.f32.mxu0 0.0
        %710 = vmatmul.mubr.f32.gmra.mrb[0].mxu0 %v466
        %v711 = vpop.f32.mrb[0].mxu0
        %v712 = vadd.f32 %v309, %v711
        %v713 = vpop.f32.mrb[0].mxu0
        %v714 = vadd.f32 %v313, %v713
        %715 = vmatprep.mubr.f32.mxu0 0.0
        %716 = vmatmul.mubr.f32.gmra.mrb[0].mxu0 %v469
        %v717 = vpop.f32.mrb[0].mxu0
        %v718 = vadd.f32 %v309, %v717
        %v719 = vpop.f32.mrb[0].mxu0
        %v720 = vadd.f32 %v313, %v719
        %721 = vmatprep.mubr.f32.mxu0 0.0
        %722 = vmatmul.mubr.f32.gmra.mrb[0].mxu0 %v472
        %v723 = vpop.f32.mrb[0].mxu0
        %v724 = vadd.f32 %v309, %v723
        %v725 = vpop.f32.mrb[0].mxu0
        %v726 = vadd.f32 %v313, %v725
        %727 = vmatprep.mubr.f32.mxu0 0.0
        %728 = vmatmul.mubr.f32.gmra.mrb[0].mxu0 %v475
        %v729 = vpop.f32.mrb[0].mxu0
        %v730 = vadd.f32 %v309, %v729
        %v731 = vpop.f32.mrb[0].mxu0
        %v732 = vadd.f32 %v313, %v731
        %733 = vdwg.mxu0
        %734 = vst [vmem:[#allocation2] sm:$0xff] 0.0
        %735 = vst.msk [vmem:[#allocation2 + $0x8] sm:$0xff] %vm380, 0.0
        %736 = vst [vmem:[#allocation2 + $0x10] sm:$0xff] 0.0
        %737 = vst.msk [vmem:[#allocation2 + $0x18] sm:$0xff] %vm380, 0.0
        %738 = vst [vmem:[#allocation2 + $0x20] sm:$0xff] 0.0
        %739 = vst.msk [vmem:[#allocation2 + $0x28] sm:$0xff] %vm380, 0.0
        %740 = vst [vmem:[#allocation2 + $0x30] sm:$0x1] 0.0
        %vm741 = vcmask 516096
        %742 = vst.msk [vmem:[#allocation2 + $0x38] sm:$0x1] %vm741, 0.0
        %s743 = scalar_lea.vmem [#allocation2], 1088
        %744 = vst [vmem:[%s743] sm:$0xff] 0.0
        %745 = vst.msk [vmem:[%s743 + $0x8] sm:$0xff] %vm380, 0.0
        %746 = vst [vmem:[%s743 + $0x10] sm:$0xff] 0.0
        %747 = vst.msk [vmem:[%s743 + $0x18] sm:$0xff] %vm380, 0.0
        %748 = vst [vmem:[%s743 + $0x20] sm:$0xff] 0.0
        %749 = vst.msk [vmem:[%s743 + $0x28] sm:$0xff] %vm380, 0.0
        %750 = vst [vmem:[%s743 + $0x30] sm:$0x1] 0.0
        %751 = vst.msk [vmem:[%s743 + $0x38] sm:$0x1] %vm741, 0.0
        %s752 = scalar_lea.vmem [#allocation2], 64
        %v753 = vlaneseq
        %vm754 = vcmp.ge.s32.totalorder %v753, 0
        %vm755 = vcmp.lt.s32.totalorder %v753, 192
        %vm756 = vmand %vm754, %vm755
        %s757 = scalar_lea.vmem %s752, 7 [#allocation2]
        %758 = vst.msk [vmem:[%s757] ss:$8 sm:$0x3] %vm756, 0.0
        %759 = vst.msk [vmem:[%s757] ss:$8 sm:$0x0] %vm756, 0.0
        %s760 = scalar_lea.vmem %s752, 71 [#allocation2]
        %761 = vst.msk [vmem:[%s760] ss:$8 sm:$0x3] %vm756, 0.0
        %762 = vst.msk [vmem:[%s760] ss:$8 sm:$0x0] %vm756, 0.0
        %s763 = scalar_lea.vmem %s752, 135 [#allocation2]
        %764 = vst.msk [vmem:[%s763] ss:$8 sm:$0x3] %vm756, 0.0
        %765 = vst.msk [vmem:[%s763] ss:$8 sm:$0x0] %vm756, 0.0
        %s766 = scalar_lea.vmem %s752, 199 [#allocation2]
        %767 = vst.msk [vmem:[%s766] ss:$8 sm:$0x3] %vm756, 0.0
        %768 = vst.msk [vmem:[%s766] ss:$8 sm:$0x0] %vm756, 0.0
        %s769 = scalar_lea.vmem %s752, 263 [#allocation2]
        %770 = vst.msk [vmem:[%s769] ss:$8 sm:$0x3] %vm756, 0.0
        %771 = vst.msk [vmem:[%s769] ss:$8 sm:$0x0] %vm756, 0.0
        %s772 = scalar_lea.vmem %s752, 327 [#allocation2]
        %773 = vst.msk [vmem:[%s772] ss:$8 sm:$0x3] %vm756, 0.0
        %774 = vst.msk [vmem:[%s772] ss:$8 sm:$0x0] %vm756, 0.0
        %s775 = scalar_lea.vmem %s752, 391 [#allocation2]
        %776 = vst.msk [vmem:[%s775] ss:$8 sm:$0x3] %vm756, 0.0
        %777 = vst.msk [vmem:[%s775] ss:$8 sm:$0x0] %vm756, 0.0
        %s778 = scalar_lea.vmem %s752, 455 [#allocation2]
        %779 = vst.msk [vmem:[%s778] ss:$8 sm:$0x3] %vm756, 0.0
        %780 = vst.msk [vmem:[%s778] ss:$8 sm:$0x0] %vm756, 0.0
        %s781 = scalar_lea.vmem %s752, 519 [#allocation2]
        %782 = vst.msk [vmem:[%s781] ss:$8 sm:$0x3] %vm756, 0.0
        %783 = vst.msk [vmem:[%s781] ss:$8 sm:$0x0] %vm756, 0.0
        %s784 = scalar_lea.vmem %s752, 583 [#allocation2]
        %785 = vst.msk [vmem:[%s784] ss:$8 sm:$0x3] %vm756, 0.0
        %786 = vst.msk [vmem:[%s784] ss:$8 sm:$0x0] %vm756, 0.0
        %s787 = scalar_lea.vmem %s752, 647 [#allocation2]
        %788 = vst.msk [vmem:[%s787] ss:$8 sm:$0x3] %vm756, 0.0
        %789 = vst.msk [vmem:[%s787] ss:$8 sm:$0x0] %vm756, 0.0
        %s790 = scalar_lea.vmem %s752, 711 [#allocation2]
        %791 = vst.msk [vmem:[%s790] ss:$8 sm:$0x3] %vm756, 0.0
        %792 = vst.msk [vmem:[%s790] ss:$8 sm:$0x0] %vm756, 0.0
        %s793 = scalar_lea.vmem %s752, 775 [#allocation2]
        %794 = vst.msk [vmem:[%s793] ss:$8 sm:$0x3] %vm756, 0.0
        %795 = vst.msk [vmem:[%s793] ss:$8 sm:$0x0] %vm756, 0.0
        %s796 = scalar_lea.vmem %s752, 839 [#allocation2]
        %797 = vst.msk [vmem:[%s796] ss:$8 sm:$0x3] %vm756, 0.0
        %798 = vst.msk [vmem:[%s796] ss:$8 sm:$0x0] %vm756, 0.0
        %s799 = scalar_lea.vmem %s752, 903 [#allocation2]
        %800 = vst.msk [vmem:[%s799] ss:$8 sm:$0x3] %vm756, 0.0
        %801 = vst.msk [vmem:[%s799] ss:$8 sm:$0x0] %vm756, 0.0
        %s802 = scalar_lea.vmem %s752, 967 [#allocation2]
        %803 = vst.msk [vmem:[%s802] ss:$8 sm:$0x3] %vm756, 0.0
        %804 = vst.msk [vmem:[%s802] ss:$8 sm:$0x0] %vm756, 0.0
        %s805 = scalar_lea.vmem %s752, 48 [#allocation2]
        %806 = vst.msk [vmem:[%s805] ss:$8 sm:$0x3] %vm756, 0.0
        %807 = vst.msk [vmem:[%s805] ss:$8 sm:$0x0] %vm756, 0.0
        %s808 = scalar_lea.vmem %s752, 112 [#allocation2]
        %809 = vst.msk [vmem:[%s808] ss:$8 sm:$0x3] %vm756, 0.0
        %810 = vst.msk [vmem:[%s808] ss:$8 sm:$0x0] %vm756, 0.0
        %s811 = scalar_lea.vmem %s752, 176 [#allocation2]
        %812 = vst.msk [vmem:[%s811] ss:$8 sm:$0x3] %vm756, 0.0
        %813 = vst.msk [vmem:[%s811] ss:$8 sm:$0x0] %vm756, 0.0
        %s814 = scalar_lea.vmem %s752, 240 [#allocation2]
        %815 = vst.msk [vmem:[%s814] ss:$8 sm:$0x3] %vm756, 0.0
        %816 = vst.msk [vmem:[%s814] ss:$8 sm:$0x0] %vm756, 0.0
        %s817 = scalar_lea.vmem %s752, 304 [#allocation2]
        %818 = vst.msk [vmem:[%s817] ss:$8 sm:$0x3] %vm756, 0.0
        %819 = vst.msk [vmem:[%s817] ss:$8 sm:$0x0] %vm756, 0.0
        %s820 = scalar_lea.vmem %s752, 368 [#allocation2]
        %821 = vst.msk [vmem:[%s820] ss:$8 sm:$0x3] %vm756, 0.0
        %822 = vst.msk [vmem:[%s820] ss:$8 sm:$0x0] %vm756, 0.0
        %s823 = scalar_lea.vmem %s752, 432 [#allocation2]
        %824 = vst.msk [vmem:[%s823] ss:$8 sm:$0x3] %vm756, 0.0
        %825 = vst.msk [vmem:[%s823] ss:$8 sm:$0x0] %vm756, 0.0
        %s826 = scalar_lea.vmem %s752, 496 [#allocation2]
        %827 = vst.msk [vmem:[%s826] ss:$8 sm:$0x3] %vm756, 0.0
        %828 = vst.msk [vmem:[%s826] ss:$8 sm:$0x0] %vm756, 0.0
        %s829 = scalar_lea.vmem %s752, 560 [#allocation2]
        %830 = vst.msk [vmem:[%s829] ss:$8 sm:$0x3] %vm756, 0.0
        %831 = vst.msk [vmem:[%s829] ss:$8 sm:$0x0] %vm756, 0.0
        %s832 = scalar_lea.vmem %s752, 624 [#allocation2]
        %833 = vst.msk [vmem:[%s832] ss:$8 sm:$0x3] %vm756, 0.0
        %834 = vst.msk [vmem:[%s832] ss:$8 sm:$0x0] %vm756, 0.0
        %s835 = scalar_lea.vmem %s752, 688 [#allocation2]
        %836 = vst.msk [vmem:[%s835] ss:$8 sm:$0x3] %vm756, 0.0
        %837 = vst.msk [vmem:[%s835] ss:$8 sm:$0x0] %vm756, 0.0
        %s838 = scalar_lea.vmem %s752, 752 [#allocation2]
        %839 = vst.msk [vmem:[%s838] ss:$8 sm:$0x3] %vm756, 0.0
        %840 = vst.msk [vmem:[%s838] ss:$8 sm:$0x0] %vm756, 0.0
        %s841 = scalar_lea.vmem %s752, 816 [#allocation2]
        %842 = vst.msk [vmem:[%s841] ss:$8 sm:$0x3] %vm756, 0.0
        %843 = vst.msk [vmem:[%s841] ss:$8 sm:$0x0] %vm756, 0.0
        %s844 = scalar_lea.vmem %s752, 880 [#allocation2]
        %845 = vst.msk [vmem:[%s844] ss:$8 sm:$0x3] %vm756, 0.0
        %846 = vst.msk [vmem:[%s844] ss:$8 sm:$0x0] %vm756, 0.0
        %s847 = scalar_lea.vmem %s752, 944 [#allocation2]
        %848 = vst.msk [vmem:[%s847] ss:$8 sm:$0x3] %vm756, 0.0
        %849 = vst.msk [vmem:[%s847] ss:$8 sm:$0x0] %vm756, 0.0
        %s850 = scalar_lea.vmem %s752, 1008 [#allocation2]
        %851 = vst.msk [vmem:[%s850] ss:$8 sm:$0x3] %vm756, 0.0
        %852 = vst.msk [vmem:[%s850] ss:$8 sm:$0x0] %vm756, 0.0
        %853 = vst [vmem:[%s752 + $0x10] sm:$0xff] %v544
        %854 = vst.msk [vmem:[%s752 + $0x18] sm:$0xff] %vm380, %v546
        %855 = vst [vmem:[%s752 + $0x20] sm:$0xff] %v550
        %856 = vst.msk [vmem:[%s752 + $0x28] sm:$0xff] %vm380, %v552
        %857 = vst [vmem:[%s752 + $0x50] sm:$0xff] %v556
        %858 = vst.msk [vmem:[%s752 + $0x58] sm:$0xff] %vm380, %v558
        %859 = vst [vmem:[%s752 + $0x60] sm:$0xff] %v562
        %860 = vst.msk [vmem:[%s752 + $0x68] sm:$0xff] %vm380, %v564
        %861 = vst [vmem:[%s752 + $0x90] sm:$0xff] %v568
        %862 = vst.msk [vmem:[%s752 + $0x98] sm:$0xff] %vm380, %v570
        %863 = vst [vmem:[%s752 + $0xa0] sm:$0xff] %v574
        %864 = vst.msk [vmem:[%s752 + $0xa8] sm:$0xff] %vm380, %v576
        %865 = vst [vmem:[%s752 + $0xd0] sm:$0xff] %v580
        %866 = vst.msk [vmem:[%s752 + $0xd8] sm:$0xff] %vm380, %v582
        %867 = vst [vmem:[%s752 + $0xe0] sm:$0xff] %v586
        %868 = vst.msk [vmem:[%s752 + $0xe8] sm:$0xff] %vm380, %v588
        %869 = vst [vmem:[%s752 + $0x110] sm:$0xff] %v592
        %870 = vst.msk [vmem:[%s752 + $0x118] sm:$0xff] %vm380, %v594
        %871 = vst [vmem:[%s752 + $0x120] sm:$0xff] %v598
        %872 = vst.msk [vmem:[%s752 + $0x128] sm:$0xff] %vm380, %v600
        %873 = vst [vmem:[%s752 + $0x150] sm:$0xff] %v604
        %874 = vst.msk [vmem:[%s752 + $0x158] sm:$0xff] %vm380, %v606
        %875 = vst [vmem:[%s752 + $0x160] sm:$0xff] %v610
        %876 = vst.msk [vmem:[%s752 + $0x168] sm:$0xff] %vm380, %v612
        %877 = vst [vmem:[%s752 + $0x190] sm:$0xff] %v616
        %878 = vst.msk [vmem:[%s752 + $0x198] sm:$0xff] %vm380, %v618
        %879 = vst [vmem:[%s752 + $0x1a0] sm:$0xff] %v622
        %880 = vst.msk [vmem:[%s752 + $0x1a8] sm:$0xff] %vm380, %v624
        %881 = vst [vmem:[%s752 + $0x1d0] sm:$0xff] %v628
        %882 = vst.msk [vmem:[%s752 + $0x1d8] sm:$0xff] %vm380, %v630
        %883 = vst [vmem:[%s752 + $0x1e0] sm:$0xff] %v634
        %884 = vst.msk [vmem:[%s752 + $0x1e8] sm:$0xff] %vm380, %v636
        %885 = vst [vmem:[%s752 + $0x210] sm:$0xff] %v640
        %886 = vst.msk [vmem:[%s752 + $0x218] sm:$0xff] %vm380, %v642
        %887 = vst [vmem:[%s752 + $0x220] sm:$0xff] %v646
        %888 = vst.msk [vmem:[%s752 + $0x228] sm:$0xff] %vm380, %v648
        %889 = vst [vmem:[%s752 + $0x250] sm:$0xff] %v652
        %890 = vst.msk [vmem:[%s752 + $0x258] sm:$0xff] %vm380, %v654
        %891 = vst [vmem:[%s752 + $0x260] sm:$0xff] %v658
        %892 = vst.msk [vmem:[%s752 + $0x268] sm:$0xff] %vm380, %v660
        %893 = vst [vmem:[%s752 + $0x290] sm:$0xff] %v664
        %894 = vst.msk [vmem:[%s752 + $0x298] sm:$0xff] %vm380, %v666
        %895 = vst [vmem:[%s752 + $0x2a0] sm:$0xff] %v670
        %896 = vst.msk [vmem:[%s752 + $0x2a8] sm:$0xff] %vm380, %v672
        %897 = vst [vmem:[%s752 + $0x2d0] sm:$0xff] %v676
        %898 = vst.msk [vmem:[%s752 + $0x2d8] sm:$0xff] %vm380, %v678
        %899 = vst [vmem:[%s752 + $0x2e0] sm:$0xff] %v682
        %900 = vst.msk [vmem:[%s752 + $0x2e8] sm:$0xff] %vm380, %v684
        %901 = vst [vmem:[%s752 + $0x310] sm:$0xff] %v688
        %902 = vst.msk [vmem:[%s752 + $0x318] sm:$0xff] %vm380, %v690
        %903 = vst [vmem:[%s752 + $0x320] sm:$0xff] %v694
        %904 = vst.msk [vmem:[%s752 + $0x328] sm:$0xff] %vm380, %v696
        %905 = vst [vmem:[%s752 + $0x350] sm:$0xff] %v700
        %906 = vst.msk [vmem:[%s752 + $0x358] sm:$0xff] %vm380, %v702
        %907 = vst [vmem:[%s752 + $0x360] sm:$0xff] %v706
        %908 = vst.msk [vmem:[%s752 + $0x368] sm:$0xff] %vm380, %v708
        %909 = vst [vmem:[%s752 + $0x390] sm:$0xff] %v712
        %910 = vst.msk [vmem:[%s752 + $0x398] sm:$0xff] %vm380, %v714
        %911 = vst [vmem:[%s752 + $0x3a0] sm:$0xff] %v718
        %912 = vst.msk [vmem:[%s752 + $0x3a8] sm:$0xff] %vm380, %v720
        %913 = vst [vmem:[%s752 + $0x3d0] sm:$0xff] %v724
        %914 = vst.msk [vmem:[%s752 + $0x3d8] sm:$0xff] %vm380, %v726
        %915 = vst [vmem:[%s752 + $0x3e0] sm:$0xff] %v730
        %916 = vst.msk [vmem:[%s752 + $0x3e8] sm:$0xff] %vm380, %v732
        %v917 = vld [vmem:[#allocation2] sm:$0xff]
        %v918 = vld [vmem:[#allocation2 + $0x8] sm:$0xff]
        %v919 = vld [vmem:[#allocation2 + $0x10] sm:$0xff]
        %v920 = vld [vmem:[#allocation2 + $0x18] sm:$0xff]
        %v921 = vld [vmem:[#allocation2 + $0x20] sm:$0xff]
        %v922 = vld [vmem:[#allocation2 + $0x28] sm:$0xff]
        %v923 = vld [vmem:[#allocation2 + $0x30] sm:$0x1]
        %v924 = vld [vmem:[#allocation2 + $0x38] sm:$0x1]
        %v925 = vld [vmem:[#allocation2 + $0x40] sm:$0xff]
        %v926 = vld [vmem:[#allocation2 + $0x48] sm:$0xff]
        %v927 = vld [vmem:[#allocation2 + $0x50] sm:$0xff]
        %v928 = vld [vmem:[#allocation2 + $0x58] sm:$0xff]
        %v929 = vld [vmem:[#allocation2 + $0x60] sm:$0xff]
        %v930 = vld [vmem:[#allocation2 + $0x68] sm:$0xff]
        %v931 = vld [vmem:[#allocation2 + $0x70] sm:$0x1]
        %v932 = vld [vmem:[#allocation2 + $0x78] sm:$0x1]
        %v933 = vld [vmem:[#allocation2 + $0x80] sm:$0xff]
        %v934 = vld [vmem:[#allocation2 + $0x88] sm:$0xff]
        %v935 = vld [vmem:[#allocation2 + $0x90] sm:$0xff]
        %v936 = vld [vmem:[#allocation2 + $0x98] sm:$0xff]
        %v937 = vld [vmem:[#allocation2 + $0xa0] sm:$0xff]
        %v938 = vld [vmem:[#allocation2 + $0xa8] sm:$0xff]
        %v939 = vld [vmem:[#allocation2 + $0xb0] sm:$0x1]
        %v940 = vld [vmem:[#allocation2 + $0xb8] sm:$0x1]
        %v941 = vld [vmem:[#allocation2 + $0xc0] sm:$0xff]
        %v942 = vld [vmem:[#allocation2 + $0xc8] sm:$0xff]
        %v943 = vld [vmem:[#allocation2 + $0xd0] sm:$0xff]
        %v944 = vld [vmem:[#allocation2 + $0xd8] sm:$0xff]
        %v945 = vld [vmem:[#allocation2 + $0xe0] sm:$0xff]
        %v946 = vld [vmem:[#allocation2 + $0xe8] sm:$0xff]
        %v947 = vld [vmem:[#allocation2 + $0xf0] sm:$0x1]
        %v948 = vld [vmem:[#allocation2 + $0xf8] sm:$0x1]
        %v949 = vld [vmem:[#allocation2 + $0x100] sm:$0xff]
        %v950 = vld [vmem:[#allocation2 + $0x108] sm:$0xff]
        %v951 = vld [vmem:[#allocation2 + $0x110] sm:$0xff]
        %v952 = vld [vmem:[#allocation2 + $0x118] sm:$0xff]
        %v953 = vld [vmem:[#allocation2 + $0x120] sm:$0xff]
        %v954 = vld [vmem:[#allocation2 + $0x128] sm:$0xff]
        %v955 = vld [vmem:[#allocation2 + $0x130] sm:$0x1]
        %v956 = vld [vmem:[#allocation2 + $0x138] sm:$0x1]
        %v957 = vld [vmem:[#allocation2 + $0x140] sm:$0xff]
        %v958 = vld [vmem:[#allocation2 + $0x148] sm:$0xff]
        %v959 = vld [vmem:[#allocation2 + $0x150] sm:$0xff]
        %v960 = vld [vmem:[#allocation2 + $0x158] sm:$0xff]
        %v961 = vld [vmem:[#allocation2 + $0x160] sm:$0xff]
        %v962 = vld [vmem:[#allocation2 + $0x168] sm:$0xff]
        %v963 = vld [vmem:[#allocation2 + $0x170] sm:$0x1]
        %v964 = vld [vmem:[#allocation2 + $0x178] sm:$0x1]
        %v965 = vld [vmem:[#allocation2 + $0x180] sm:$0xff]
        %v966 = vld [vmem:[#allocation2 + $0x188] sm:$0xff]
        %v967 = vld [vmem:[#allocation2 + $0x190] sm:$0xff]
        %v968 = vld [vmem:[#allocation2 + $0x198] sm:$0xff]
        %v969 = vld [vmem:[#allocation2 + $0x1a0] sm:$0xff]
        %v970 = vld [vmem:[#allocation2 + $0x1a8] sm:$0xff]
        %v971 = vld [vmem:[#allocation2 + $0x1b0] sm:$0x1]
        %v972 = vld [vmem:[#allocation2 + $0x1b8] sm:$0x1]
        %v973 = vld [vmem:[#allocation2 + $0x1c0] sm:$0xff]
        %v974 = vld [vmem:[#allocation2 + $0x1c8] sm:$0xff]
        %v975 = vld [vmem:[#allocation2 + $0x1d0] sm:$0xff]
        %v976 = vld [vmem:[#allocation2 + $0x1d8] sm:$0xff]
        %v977 = vld [vmem:[#allocation2 + $0x1e0] sm:$0xff]
        %v978 = vld [vmem:[#allocation2 + $0x1e8] sm:$0xff]
        %v979 = vld [vmem:[#allocation2 + $0x1f0] sm:$0x1]
        %v980 = vld [vmem:[#allocation2 + $0x1f8] sm:$0x1]
        %v981 = vld [vmem:[#allocation2 + $0x200] sm:$0xff]
        %v982 = vld [vmem:[#allocation2 + $0x208] sm:$0xff]
        %v983 = vld [vmem:[#allocation2 + $0x210] sm:$0xff]
        %v984 = vld [vmem:[#allocation2 + $0x218] sm:$0xff]
        %v985 = vld [vmem:[#allocation2 + $0x220] sm:$0xff]
        %v986 = vld [vmem:[#allocation2 + $0x228] sm:$0xff]
        %v987 = vld [vmem:[#allocation2 + $0x230] sm:$0x1]
        %v988 = vld [vmem:[#allocation2 + $0x238] sm:$0x1]
        %v989 = vld [vmem:[#allocation2 + $0x240] sm:$0xff]
        %v990 = vld [vmem:[#allocation2 + $0x248] sm:$0xff]
        %v991 = vld [vmem:[#allocation2 + $0x250] sm:$0xff]
        %v992 = vld [vmem:[#allocation2 + $0x258] sm:$0xff]
        %v993 = vld [vmem:[#allocation2 + $0x260] sm:$0xff]
        %v994 = vld [vmem:[#allocation2 + $0x268] sm:$0xff]
        %v995 = vld [vmem:[#allocation2 + $0x270] sm:$0x1]
        %v996 = vld [vmem:[#allocation2 + $0x278] sm:$0x1]
        %v997 = vld [vmem:[#allocation2 + $0x280] sm:$0xff]
        %v998 = vld [vmem:[#allocation2 + $0x288] sm:$0xff]
        %v999 = vld [vmem:[#allocation2 + $0x290] sm:$0xff]
        %v1000 = vld [vmem:[#allocation2 + $0x298] sm:$0xff]
        %v1001 = vld [vmem:[#allocation2 + $0x2a0] sm:$0xff]
        %v1002 = vld [vmem:[#allocation2 + $0x2a8] sm:$0xff]
        %v1003 = vld [vmem:[#allocation2 + $0x2b0] sm:$0x1]
        %v1004 = vld [vmem:[#allocation2 + $0x2b8] sm:$0x1]
        %v1005 = vld [vmem:[#allocation2 + $0x2c0] sm:$0xff]
        %v1006 = vld [vmem:[#allocation2 + $0x2c8] sm:$0xff]
        %v1007 = vld [vmem:[#allocation2 + $0x2d0] sm:$0xff]
        %v1008 = vld [vmem:[#allocation2 + $0x2d8] sm:$0xff]
        %v1009 = vld [vmem:[#allocation2 + $0x2e0] sm:$0xff]
        %v1010 = vld [vmem:[#allocation2 + $0x2e8] sm:$0xff]
        %v1011 = vld [vmem:[#allocation2 + $0x2f0] sm:$0x1]
        %v1012 = vld [vmem:[#allocation2 + $0x2f8] sm:$0x1]
        %v1013 = vld [vmem:[#allocation2 + $0x300] sm:$0xff]
        %v1014 = vld [vmem:[#allocation2 + $0x308] sm:$0xff]
        %v1015 = vld [vmem:[#allocation2 + $0x310] sm:$0xff]
        %v1016 = vld [vmem:[#allocation2 + $0x318] sm:$0xff]
        %v1017 = vld [vmem:[#allocation2 + $0x320] sm:$0xff]
        %v1018 = vld [vmem:[#allocation2 + $0x328] sm:$0xff]
        %v1019 = vld [vmem:[#allocation2 + $0x330] sm:$0x1]
        %v1020 = vld [vmem:[#allocation2 + $0x338] sm:$0x1]
        %v1021 = vld [vmem:[#allocation2 + $0x340] sm:$0xff]
        %v1022 = vld [vmem:[#allocation2 + $0x348] sm:$0xff]
        %v1023 = vld [vmem:[#allocation2 + $0x350] sm:$0xff]
        %v1024 = vld [vmem:[#allocation2 + $0x358] sm:$0xff]
        %v1025 = vld [vmem:[#allocation2 + $0x360] sm:$0xff]
        %v1026 = vld [vmem:[#allocation2 + $0x368] sm:$0xff]
        %v1027 = vld [vmem:[#allocation2 + $0x370] sm:$0x1]
        %v1028 = vld [vmem:[#allocation2 + $0x378] sm:$0x1]
        %v1029 = vld [vmem:[#allocation2 + $0x380] sm:$0xff]
        %v1030 = vld [vmem:[#allocation2 + $0x388] sm:$0xff]
        %v1031 = vld [vmem:[#allocation2 + $0x390] sm:$0xff]
        %v1032 = vld [vmem:[#allocation2 + $0x398] sm:$0xff]
        %v1033 = vld [vmem:[#allocation2 + $0x3a0] sm:$0xff]
        %v1034 = vld [vmem:[#allocation2 + $0x3a8] sm:$0xff]
        %v1035 = vld [vmem:[#allocation2 + $0x3b0] sm:$0x1]
        %v1036 = vld [vmem:[#allocation2 + $0x3b8] sm:$0x1]
        %v1037 = vld [vmem:[#allocation2 + $0x3c0] sm:$0xff]
        %v1038 = vld [vmem:[#allocation2 + $0x3c8] sm:$0xff]
        %v1039 = vld [vmem:[#allocation2 + $0x3d0] sm:$0xff]
        %v1040 = vld [vmem:[#allocation2 + $0x3d8] sm:$0xff]
        %v1041 = vld [vmem:[#allocation2 + $0x3e0] sm:$0xff]
        %v1042 = vld [vmem:[#allocation2 + $0x3e8] sm:$0xff]
        %v1043 = vld [vmem:[#allocation2 + $0x3f0] sm:$0x1]
        %v1044 = vld [vmem:[#allocation2 + $0x3f8] sm:$0x1]
        %v1045 = vld [vmem:[#allocation2 + $0x400] sm:$0xff]
        %v1046 = vld [vmem:[#allocation2 + $0x408] sm:$0xff]
        %v1047 = vld [vmem:[#allocation2 + $0x410] sm:$0xff]
        %v1048 = vld [vmem:[#allocation2 + $0x418] sm:$0xff]
        %v1049 = vld [vmem:[#allocation2 + $0x420] sm:$0xff]
        %v1050 = vld [vmem:[#allocation2 + $0x428] sm:$0xff]
        %v1051 = vld [vmem:[#allocation2 + $0x430] sm:$0x1]
        %v1052 = vld [vmem:[#allocation2 + $0x438] sm:$0x1]
        %v1053 = vld [vmem:[#allocation2 + $0x440] sm:$0xff]
        %v1054 = vld [vmem:[#allocation2 + $0x448] sm:$0xff]
        %v1055 = vld [vmem:[#allocation2 + $0x450] sm:$0xff]
        %v1056 = vld [vmem:[#allocation2 + $0x458] sm:$0xff]
        %v1057 = vld [vmem:[#allocation2 + $0x460] sm:$0xff]
        %v1058 = vld [vmem:[#allocation2 + $0x468] sm:$0xff]
        %v1059 = vld [vmem:[#allocation2 + $0x470] sm:$0x1]
        %v1060 = vld [vmem:[#allocation2 + $0x478] sm:$0x1]
        %v1061 = vld [vmem:[#allocation8] sm:$0x77]
        %v1062 = vld [vmem:[#allocation8 + $0x8] sm:$0x77]
        %v1063 = vld [vmem:[#allocation8 + $0x10] sm:$0x77]
        %v1065 = vlaneseq
        %v1066 = vshrl.u32 %v1065, 7
        %v1067 = vsub.s32 0, %v1066
        %v1068 = vrot.slane %v1061, %v1067
        %v1069 = vlaneseq
        %v1070 = vshrl.u32 %v1069, 7
        %v1071 = vsub.s32 4, %v1070
        %v1072 = vrot.slane %v1061, %v1071
        %v1075 = vlaneseq
        %v1076 = vshrl.u32 %v1075, 7
        %v1077 = vsub.s32 0, %v1076
        %v1078 = vrot.slane %v1068, %v1077
        %v1079 = vlaneseq
        %v1080 = vshrl.u32 %v1079, 7
        %v1081 = vsub.s32 0, %v1080
        %v1082 = vrot.slane %v1072, %v1081
        %v1083 = vmul.f32 %v917, %v1078
        %v1084 = vmul.f32 %v918, %v1082
        %v1085 = vmul.f32 %v919, %v1078
        %v1086 = vmul.f32 %v920, %v1082
        %v1087 = vmul.f32 %v921, %v1078
        %v1088 = vmul.f32 %v922, %v1082
        %v1089 = vmul.f32 %v925, %v1078
        %v1090 = vmul.f32 %v926, %v1082
        %v1091 = vmul.f32 %v927, %v1078
        %v1092 = vmul.f32 %v928, %v1082
        %v1093 = vmul.f32 %v929, %v1078
        %v1094 = vmul.f32 %v930, %v1082
        %v1095 = vmul.f32 %v933, %v1078
        %v1096 = vmul.f32 %v934, %v1082
        %v1097 = vmul.f32 %v935, %v1078
        %v1098 = vmul.f32 %v936, %v1082
        %v1099 = vmul.f32 %v937, %v1078
        %v1100 = vmul.f32 %v938, %v1082
        %v1101 = vmul.f32 %v941, %v1078
        %v1102 = vmul.f32 %v942, %v1082
        %v1103 = vmul.f32 %v943, %v1078
        %v1104 = vmul.f32 %v944, %v1082
        %v1105 = vmul.f32 %v945, %v1078
        %v1106 = vmul.f32 %v946, %v1082
        %v1107 = vmul.f32 %v949, %v1078
        %v1108 = vmul.f32 %v950, %v1082
        %v1109 = vmul.f32 %v951, %v1078
        %v1110 = vmul.f32 %v952, %v1082
        %v1111 = vmul.f32 %v953, %v1078
        %v1112 = vmul.f32 %v954, %v1082
        %v1113 = vmul.f32 %v957, %v1078
        %v1114 = vmul.f32 %v958, %v1082
        %v1115 = vmul.f32 %v959, %v1078
        %v1116 = vmul.f32 %v960, %v1082
        %v1117 = vmul.f32 %v961, %v1078
        %v1118 = vmul.f32 %v962, %v1082
        %v1119 = vmul.f32 %v965, %v1078
        %v1120 = vmul.f32 %v966, %v1082
        %v1121 = vmul.f32 %v967, %v1078
        %v1122 = vmul.f32 %v968, %v1082
        %v1123 = vmul.f32 %v969, %v1078
        %v1124 = vmul.f32 %v970, %v1082
        %v1125 = vmul.f32 %v973, %v1078
        %v1126 = vmul.f32 %v974, %v1082
        %v1127 = vmul.f32 %v975, %v1078
        %v1128 = vmul.f32 %v976, %v1082
        %v1129 = vmul.f32 %v977, %v1078
        %v1130 = vmul.f32 %v978, %v1082
        %v1131 = vmul.f32 %v981, %v1078
        %v1132 = vmul.f32 %v982, %v1082
        %v1133 = vmul.f32 %v983, %v1078
        %v1134 = vmul.f32 %v984, %v1082
        %v1135 = vmul.f32 %v985, %v1078
        %v1136 = vmul.f32 %v986, %v1082
        %v1137 = vmul.f32 %v989, %v1078
        %v1138 = vmul.f32 %v990, %v1082
        %v1139 = vmul.f32 %v991, %v1078
        %v1140 = vmul.f32 %v992, %v1082
        %v1141 = vmul.f32 %v993, %v1078
        %v1142 = vmul.f32 %v994, %v1082
        %v1143 = vmul.f32 %v997, %v1078
        %v1144 = vmul.f32 %v998, %v1082
        %v1145 = vmul.f32 %v999, %v1078
        %v1146 = vmul.f32 %v1000, %v1082
        %v1147 = vmul.f32 %v1001, %v1078
        %v1148 = vmul.f32 %v1002, %v1082
        %v1149 = vmul.f32 %v1005, %v1078
        %v1150 = vmul.f32 %v1006, %v1082
        %v1151 = vmul.f32 %v1007, %v1078
        %v1152 = vmul.f32 %v1008, %v1082
        %v1153 = vmul.f32 %v1009, %v1078
        %v1154 = vmul.f32 %v1010, %v1082
        %v1155 = vmul.f32 %v1013, %v1078
        %v1156 = vmul.f32 %v1014, %v1082
        %v1157 = vmul.f32 %v1015, %v1078
        %v1158 = vmul.f32 %v1016, %v1082
        %v1159 = vmul.f32 %v1017, %v1078
        %v1160 = vmul.f32 %v1018, %v1082
        %v1161 = vmul.f32 %v1021, %v1078
        %v1162 = vmul.f32 %v1022, %v1082
        %v1163 = vmul.f32 %v1023, %v1078
        %v1164 = vmul.f32 %v1024, %v1082
        %v1165 = vmul.f32 %v1025, %v1078
        %v1166 = vmul.f32 %v1026, %v1082
        %v1167 = vmul.f32 %v1029, %v1078
        %v1168 = vmul.f32 %v1030, %v1082
        %v1169 = vmul.f32 %v1031, %v1078
        %v1170 = vmul.f32 %v1032, %v1082
        %v1171 = vmul.f32 %v1033, %v1078
        %v1172 = vmul.f32 %v1034, %v1082
        %v1173 = vmul.f32 %v1037, %v1078
        %v1174 = vmul.f32 %v1038, %v1082
        %v1175 = vmul.f32 %v1039, %v1078
        %v1176 = vmul.f32 %v1040, %v1082
        %v1177 = vmul.f32 %v1041, %v1078
        %v1178 = vmul.f32 %v1042, %v1082
        %v1179 = vadd.f32 %v1083, 0.0
        %v1180 = vadd.f32 %v1084, 0.0
        %v1181 = vadd.f32 %v1085, 0.0
        %v1182 = vadd.f32 %v1086, 0.0
        %v1183 = vadd.f32 %v1087, 0.0
        %v1184 = vadd.f32 %v1088, 0.0
        %v1185 = vadd.f32 %v1089, 0.0
        %v1186 = vadd.f32 %v1090, 0.0
        %v1187 = vadd.f32 %v1091, 0.0
        %v1188 = vadd.f32 %v1092, 0.0
        %v1189 = vadd.f32 %v1093, 0.0
        %v1190 = vadd.f32 %v1094, 0.0
        %v1191 = vadd.f32 %v1095, 0.0
        %v1192 = vadd.f32 %v1096, 0.0
        %v1193 = vadd.f32 %v1097, 0.0
        %v1194 = vadd.f32 %v1098, 0.0
        %v1195 = vadd.f32 %v1099, 0.0
        %v1196 = vadd.f32 %v1100, 0.0
        %v1197 = vadd.f32 %v1101, 0.0
        %v1198 = vadd.f32 %v1102, 0.0
        %v1199 = vadd.f32 %v1103, 0.0
        %v1200 = vadd.f32 %v1104, 0.0
        %v1201 = vadd.f32 %v1105, 0.0
        %v1202 = vadd.f32 %v1106, 0.0
        %v1203 = vadd.f32 %v1107, 0.0
        %v1204 = vadd.f32 %v1108, 0.0
        %v1205 = vadd.f32 %v1109, 0.0
        %v1206 = vadd.f32 %v1110, 0.0
        %v1207 = vadd.f32 %v1111, 0.0
        %v1208 = vadd.f32 %v1112, 0.0
        %v1209 = vadd.f32 %v1113, 0.0
        %v1210 = vadd.f32 %v1114, 0.0
        %v1211 = vadd.f32 %v1115, 0.0
        %v1212 = vadd.f32 %v1116, 0.0
        %v1213 = vadd.f32 %v1117, 0.0
        %v1214 = vadd.f32 %v1118, 0.0
        %v1215 = vadd.f32 %v1119, 0.0
        %v1216 = vadd.f32 %v1120, 0.0
        %v1217 = vadd.f32 %v1121, 0.0
        %v1218 = vadd.f32 %v1122, 0.0
        %v1219 = vadd.f32 %v1123, 0.0
        %v1220 = vadd.f32 %v1124, 0.0
        %v1221 = vadd.f32 %v1125, 0.0
        %v1222 = vadd.f32 %v1126, 0.0
        %v1223 = vadd.f32 %v1127, 0.0
        %v1224 = vadd.f32 %v1128, 0.0
        %v1225 = vadd.f32 %v1129, 0.0
        %v1226 = vadd.f32 %v1130, 0.0
        %v1227 = vadd.f32 %v1131, 0.0
        %v1228 = vadd.f32 %v1132, 0.0
        %v1229 = vadd.f32 %v1133, 0.0
        %v1230 = vadd.f32 %v1134, 0.0
        %v1231 = vadd.f32 %v1135, 0.0
        %v1232 = vadd.f32 %v1136, 0.0
        %v1233 = vadd.f32 %v1137, 0.0
        %v1234 = vadd.f32 %v1138, 0.0
        %v1235 = vadd.f32 %v1139, 0.0
        %v1236 = vadd.f32 %v1140, 0.0
        %v1237 = vadd.f32 %v1141, 0.0
        %v1238 = vadd.f32 %v1142, 0.0
        %v1239 = vadd.f32 %v1143, 0.0
        %v1240 = vadd.f32 %v1144, 0.0
        %v1241 = vadd.f32 %v1145, 0.0
        %v1242 = vadd.f32 %v1146, 0.0
        %v1243 = vadd.f32 %v1147, 0.0
        %v1244 = vadd.f32 %v1148, 0.0
        %v1245 = vadd.f32 %v1149, 0.0
        %v1246 = vadd.f32 %v1150, 0.0
        %v1247 = vadd.f32 %v1151, 0.0
        %v1248 = vadd.f32 %v1152, 0.0
        %v1249 = vadd.f32 %v1153, 0.0
        %v1250 = vadd.f32 %v1154, 0.0
        %v1251 = vadd.f32 %v1155, 0.0
        %v1252 = vadd.f32 %v1156, 0.0
        %v1253 = vadd.f32 %v1157, 0.0
        %v1254 = vadd.f32 %v1158, 0.0
        %v1255 = vadd.f32 %v1159, 0.0
        %v1256 = vadd.f32 %v1160, 0.0
        %v1257 = vadd.f32 %v1161, 0.0
        %v1258 = vadd.f32 %v1162, 0.0
        %v1259 = vadd.f32 %v1163, 0.0
        %v1260 = vadd.f32 %v1164, 0.0
        %v1261 = vadd.f32 %v1165, 0.0
        %v1262 = vadd.f32 %v1166, 0.0
        %v1263 = vadd.f32 %v1167, 0.0
        %v1264 = vadd.f32 %v1168, 0.0
        %v1265 = vadd.f32 %v1169, 0.0
        %v1266 = vadd.f32 %v1170, 0.0
        %v1267 = vadd.f32 %v1171, 0.0
        %v1268 = vadd.f32 %v1172, 0.0
        %v1269 = vadd.f32 %v1173, 0.0
        %v1270 = vadd.f32 %v1174, 0.0
        %v1271 = vadd.f32 %v1175, 0.0
        %v1272 = vadd.f32 %v1176, 0.0
        %v1273 = vadd.f32 %v1177, 0.0
        %v1274 = vadd.f32 %v1178, 0.0
        %v1275 = vlaneseq
        %v1276 = vshrl.u32 %v1275, 7
        %v1277 = vsub.s32 1, %v1276
        %v1278 = vrot.slane %v1061, %v1277
        %v1279 = vlaneseq
        %v1280 = vshrl.u32 %v1279, 7
        %v1281 = vsub.s32 5, %v1280
        %v1282 = vrot.slane %v1061, %v1281
        %v1285 = vlaneseq
        %v1286 = vshrl.u32 %v1285, 7
        %v1287 = vsub.s32 1, %v1286
        %v1288 = vrot.slane %v1278, %v1287
        %v1289 = vlaneseq
        %v1290 = vshrl.u32 %v1289, 7
        %v1291 = vsub.s32 1, %v1290
        %v1292 = vrot.slane %v1282, %v1291
        %v1293 = vmul.f32 %v919, %v1288
        %v1294 = vmul.f32 %v920, %v1292
        %v1295 = vmul.f32 %v921, %v1288
        %v1296 = vmul.f32 %v922, %v1292
        %v1297 = vmul.f32 %v927, %v1288
        %v1298 = vmul.f32 %v928, %v1292
        %v1299 = vmul.f32 %v929, %v1288
        %v1300 = vmul.f32 %v930, %v1292
        %v1301 = vmul.f32 %v935, %v1288
        %v1302 = vmul.f32 %v936, %v1292
        %v1303 = vmul.f32 %v937, %v1288
        %v1304 = vmul.f32 %v938, %v1292
        %v1305 = vmul.f32 %v943, %v1288
        %v1306 = vmul.f32 %v944, %v1292
        %v1307 = vmul.f32 %v945, %v1288
        %v1308 = vmul.f32 %v946, %v1292
        %v1309 = vmul.f32 %v951, %v1288
        %v1310 = vmul.f32 %v952, %v1292
        %v1311 = vmul.f32 %v953, %v1288
        %v1312 = vmul.f32 %v954, %v1292
        %v1313 = vmul.f32 %v959, %v1288
        %v1314 = vmul.f32 %v960, %v1292
        %v1315 = vmul.f32 %v961, %v1288
        %v1316 = vmul.f32 %v962, %v1292
        %v1317 = vmul.f32 %v967, %v1288
        %v1318 = vmul.f32 %v968, %v1292
        %v1319 = vmul.f32 %v969, %v1288
        %v1320 = vmul.f32 %v970, %v1292
        %v1321 = vmul.f32 %v975, %v1288
        %v1322 = vmul.f32 %v976, %v1292
        %v1323 = vmul.f32 %v977, %v1288
        %v1324 = vmul.f32 %v978, %v1292
        %v1325 = vmul.f32 %v983, %v1288
        %v1326 = vmul.f32 %v984, %v1292
        %v1327 = vmul.f32 %v985, %v1288
        %v1328 = vmul.f32 %v986, %v1292
        %v1329 = vmul.f32 %v991, %v1288
        %v1330 = vmul.f32 %v992, %v1292
        %v1331 = vmul.f32 %v993, %v1288
        %v1332 = vmul.f32 %v994, %v1292
        %v1333 = vmul.f32 %v999, %v1288
        %v1334 = vmul.f32 %v1000, %v1292
        %v1335 = vmul.f32 %v1001, %v1288
        %v1336 = vmul.f32 %v1002, %v1292
        %v1337 = vmul.f32 %v1007, %v1288
        %v1338 = vmul.f32 %v1008, %v1292
        %v1339 = vmul.f32 %v1009, %v1288
        %v1340 = vmul.f32 %v1010, %v1292
        %v1341 = vmul.f32 %v1015, %v1288
        %v1342 = vmul.f32 %v1016, %v1292
        %v1343 = vmul.f32 %v1017, %v1288
        %v1344 = vmul.f32 %v1018, %v1292
        %v1345 = vmul.f32 %v1023, %v1288
        %v1346 = vmul.f32 %v1024, %v1292
        %v1347 = vmul.f32 %v1025, %v1288
        %v1348 = vmul.f32 %v1026, %v1292
        %v1349 = vmul.f32 %v1031, %v1288
        %v1350 = vmul.f32 %v1032, %v1292
        %v1351 = vmul.f32 %v1033, %v1288
        %v1352 = vmul.f32 %v1034, %v1292
        %v1353 = vmul.f32 %v1039, %v1288
        %v1354 = vmul.f32 %v1040, %v1292
        %v1355 = vmul.f32 %v1041, %v1288
        %v1356 = vmul.f32 %v1042, %v1292
        %vm1421 = vcmask 1046528
        %v1422 = vrot.slane %v1293, 1
        %v1423 = vrot.slane %v1294, 1
        %v1424 = vrot.slane %v1295, 1
        %v1425 = vsel %vm1421, %v1422, %v1424
        %v1426 = vrot.slane %v1296, 1
        %v1427 = vsel %vm1421, %v1423, %v1426
        %v1428 = vrot.slane %v1297, 1
        %v1429 = vrot.slane %v1298, 1
        %v1430 = vrot.slane %v1299, 1
        %v1431 = vsel %vm1421, %v1428, %v1430
        %v1432 = vrot.slane %v1300, 1
        %v1433 = vsel %vm1421, %v1429, %v1432
        %v1434 = vrot.slane %v1301, 1
        %v1435 = vrot.slane %v1302, 1
        %v1436 = vrot.slane %v1303, 1
        %v1437 = vsel %vm1421, %v1434, %v1436
        %v1438 = vrot.slane %v1304, 1
        %v1439 = vsel %vm1421, %v1435, %v1438
        %v1440 = vrot.slane %v1305, 1
        %v1441 = vrot.slane %v1306, 1
        %v1442 = vrot.slane %v1307, 1
        %v1443 = vsel %vm1421, %v1440, %v1442
        %v1444 = vrot.slane %v1308, 1
        %v1445 = vsel %vm1421, %v1441, %v1444
        %v1446 = vrot.slane %v1309, 1
        %v1447 = vrot.slane %v1310, 1
        %v1448 = vrot.slane %v1311, 1
        %v1449 = vsel %vm1421, %v1446, %v1448
        %v1450 = vrot.slane %v1312, 1
        %v1451 = vsel %vm1421, %v1447, %v1450
        %v1452 = vrot.slane %v1313, 1
        %v1453 = vrot.slane %v1314, 1
        %v1454 = vrot.slane %v1315, 1
        %v1455 = vsel %vm1421, %v1452, %v1454
        %v1456 = vrot.slane %v1316, 1
        %v1457 = vsel %vm1421, %v1453, %v1456
        %v1458 = vrot.slane %v1317, 1
        %v1459 = vrot.slane %v1318, 1
        %v1460 = vrot.slane %v1319, 1
        %v1461 = vsel %vm1421, %v1458, %v1460
        %v1462 = vrot.slane %v1320, 1
        %v1463 = vsel %vm1421, %v1459, %v1462
        %v1464 = vrot.slane %v1321, 1
        %v1465 = vrot.slane %v1322, 1
        %v1466 = vrot.slane %v1323, 1
        %v1467 = vsel %vm1421, %v1464, %v1466
        %v1468 = vrot.slane %v1324, 1
        %v1469 = vsel %vm1421, %v1465, %v1468
        %v1470 = vrot.slane %v1325, 1
        %v1471 = vrot.slane %v1326, 1
        %v1472 = vrot.slane %v1327, 1
        %v1473 = vsel %vm1421, %v1470, %v1472
        %v1474 = vrot.slane %v1328, 1
        %v1475 = vsel %vm1421, %v1471, %v1474
        %v1476 = vrot.slane %v1329, 1
        %v1477 = vrot.slane %v1330, 1
        %v1478 = vrot.slane %v1331, 1
        %v1479 = vsel %vm1421, %v1476, %v1478
        %v1480 = vrot.slane %v1332, 1
        %v1481 = vsel %vm1421, %v1477, %v1480
        %v1482 = vrot.slane %v1333, 1
        %v1483 = vrot.slane %v1334, 1
        %v1484 = vrot.slane %v1335, 1
        %v1485 = vsel %vm1421, %v1482, %v1484
        %v1486 = vrot.slane %v1336, 1
        %v1487 = vsel %vm1421, %v1483, %v1486
        %v1488 = vrot.slane %v1337, 1
        %v1489 = vrot.slane %v1338, 1
        %v1490 = vrot.slane %v1339, 1
        %v1491 = vsel %vm1421, %v1488, %v1490
        %v1492 = vrot.slane %v1340, 1
        %v1493 = vsel %vm1421, %v1489, %v1492
        %v1494 = vrot.slane %v1341, 1
        %v1495 = vrot.slane %v1342, 1
        %v1496 = vrot.slane %v1343, 1
        %v1497 = vsel %vm1421, %v1494, %v1496
        %v1498 = vrot.slane %v1344, 1
        %v1499 = vsel %vm1421, %v1495, %v1498
        %v1500 = vrot.slane %v1345, 1
        %v1501 = vrot.slane %v1346, 1
        %v1502 = vrot.slane %v1347, 1
        %v1503 = vsel %vm1421, %v1500, %v1502
        %v1504 = vrot.slane %v1348, 1
        %v1505 = vsel %vm1421, %v1501, %v1504
        %v1506 = vrot.slane %v1349, 1
        %v1507 = vrot.slane %v1350, 1
        %v1508 = vrot.slane %v1351, 1
        %v1509 = vsel %vm1421, %v1506, %v1508
        %v1510 = vrot.slane %v1352, 1
        %v1511 = vsel %vm1421, %v1507, %v1510
        %v1512 = vrot.slane %v1353, 1
        %v1513 = vrot.slane %v1354, 1
        %v1514 = vrot.slane %v1355, 1
        %v1515 = vsel %vm1421, %v1512, %v1514
        %v1516 = vrot.slane %v1356, 1
        %v1517 = vsel %vm1421, %v1513, %v1516
        %v1614 = vadd.f32 %v1179, %v1422
        %v1615 = vadd.f32 %v1180, %v1423
        %v1616 = vadd.f32 %v1181, %v1425
        %v1617 = vadd.f32 %v1182, %v1427
        %v1618 = vadd.f32 %v1183, %v1424
        %v1619 = vadd.f32 %v1184, %v1426
        %v1620 = vadd.f32 %v1185, %v1428
        %v1621 = vadd.f32 %v1186, %v1429
        %v1622 = vadd.f32 %v1187, %v1431
        %v1623 = vadd.f32 %v1188, %v1433
        %v1624 = vadd.f32 %v1189, %v1430
        %v1625 = vadd.f32 %v1190, %v1432
        %v1626 = vadd.f32 %v1191, %v1434
        %v1627 = vadd.f32 %v1192, %v1435
        %v1628 = vadd.f32 %v1193, %v1437
        %v1629 = vadd.f32 %v1194, %v1439
        %v1630 = vadd.f32 %v1195, %v1436
        %v1631 = vadd.f32 %v1196, %v1438
        %v1632 = vadd.f32 %v1197, %v1440
        %v1633 = vadd.f32 %v1198, %v1441
        %v1634 = vadd.f32 %v1199, %v1443
        %v1635 = vadd.f32 %v1200, %v1445
        %v1636 = vadd.f32 %v1201, %v1442
        %v1637 = vadd.f32 %v1202, %v1444
        %v1638 = vadd.f32 %v1203, %v1446
        %v1639 = vadd.f32 %v1204, %v1447
        %v1640 = vadd.f32 %v1205, %v1449
        %v1641 = vadd.f32 %v1206, %v1451
        %v1642 = vadd.f32 %v1207, %v1448
        %v1643 = vadd.f32 %v1208, %v1450
        %v1644 = vadd.f32 %v1209, %v1452
        %v1645 = vadd.f32 %v1210, %v1453
        %v1646 = vadd.f32 %v1211, %v1455
        %v1647 = vadd.f32 %v1212, %v1457
        %v1648 = vadd.f32 %v1213, %v1454
        %v1649 = vadd.f32 %v1214, %v1456
        %v1650 = vadd.f32 %v1215, %v1458
        %v1651 = vadd.f32 %v1216, %v1459
        %v1652 = vadd.f32 %v1217, %v1461
        %v1653 = vadd.f32 %v1218, %v1463
        %v1654 = vadd.f32 %v1219, %v1460
        %v1655 = vadd.f32 %v1220, %v1462
        %v1656 = vadd.f32 %v1221, %v1464
        %v1657 = vadd.f32 %v1222, %v1465
        %v1658 = vadd.f32 %v1223, %v1467
        %v1659 = vadd.f32 %v1224, %v1469
        %v1660 = vadd.f32 %v1225, %v1466
        %v1661 = vadd.f32 %v1226, %v1468
        %v1662 = vadd.f32 %v1227, %v1470
        %v1663 = vadd.f32 %v1228, %v1471
        %v1664 = vadd.f32 %v1229, %v1473
        %v1665 = vadd.f32 %v1230, %v1475
        %v1666 = vadd.f32 %v1231, %v1472
        %v1667 = vadd.f32 %v1232, %v1474
        %v1668 = vadd.f32 %v1233, %v1476
        %v1669 = vadd.f32 %v1234, %v1477
        %v1670 = vadd.f32 %v1235, %v1479
        %v1671 = vadd.f32 %v1236, %v1481
        %v1672 = vadd.f32 %v1237, %v1478
        %v1673 = vadd.f32 %v1238, %v1480
        %v1674 = vadd.f32 %v1239, %v1482
        %v1675 = vadd.f32 %v1240, %v1483
        %v1676 = vadd.f32 %v1241, %v1485
        %v1677 = vadd.f32 %v1242, %v1487
        %v1678 = vadd.f32 %v1243, %v1484
        %v1679 = vadd.f32 %v1244, %v1486
        %v1680 = vadd.f32 %v1245, %v1488
        %v1681 = vadd.f32 %v1246, %v1489
        %v1682 = vadd.f32 %v1247, %v1491
        %v1683 = vadd.f32 %v1248, %v1493
        %v1684 = vadd.f32 %v1249, %v1490
        %v1685 = vadd.f32 %v1250, %v1492
        %v1686 = vadd.f32 %v1251, %v1494
        %v1687 = vadd.f32 %v1252, %v1495
        %v1688 = vadd.f32 %v1253, %v1497
        %v1689 = vadd.f32 %v1254, %v1499
        %v1690 = vadd.f32 %v1255, %v1496
        %v1691 = vadd.f32 %v1256, %v1498
        %v1692 = vadd.f32 %v1257, %v1500
        %v1693 = vadd.f32 %v1258, %v1501
        %v1694 = vadd.f32 %v1259, %v1503
        %v1695 = vadd.f32 %v1260, %v1505
        %v1696 = vadd.f32 %v1261, %v1502
        %v1697 = vadd.f32 %v1262, %v1504
        %v1698 = vadd.f32 %v1263, %v1506
        %v1699 = vadd.f32 %v1264, %v1507
        %v1700 = vadd.f32 %v1265, %v1509
        %v1701 = vadd.f32 %v1266, %v1511
        %v1702 = vadd.f32 %v1267, %v1508
        %v1703 = vadd.f32 %v1268, %v1510
        %v1704 = vadd.f32 %v1269, %v1512
        %v1705 = vadd.f32 %v1270, %v1513
        %v1706 = vadd.f32 %v1271, %v1515
        %v1707 = vadd.f32 %v1272, %v1517
        %v1708 = vadd.f32 %v1273, %v1514
        %v1709 = vadd.f32 %v1274, %v1516
        %v1710 = vlaneseq
        %v1711 = vshrl.u32 %v1710, 7
        %v1712 = vsub.s32 2, %v1711
        %v1713 = vrot.slane %v1061, %v1712
        %v1714 = vlaneseq
        %v1715 = vshrl.u32 %v1714, 7
        %v1716 = vsub.s32 6, %v1715
        %v1717 = vrot.slane %v1061, %v1716
        %v1720 = vlaneseq
        %v1721 = vshrl.u32 %v1720, 7
        %v1722 = vsub.s32 2, %v1721
        %v1723 = vrot.slane %v1713, %v1722
        %v1724 = vlaneseq
        %v1725 = vshrl.u32 %v1724, 7
        %v1726 = vsub.s32 2, %v1725
        %v1727 = vrot.slane %v1717, %v1726
        %v1728 = vmul.f32 %v919, %v1723
        %v1729 = vmul.f32 %v920, %v1727
        %v1730 = vmul.f32 %v921, %v1723
        %v1731 = vmul.f32 %v922, %v1727
        %v1732 = vmul.f32 %v923, %v1723
        %v1733 = vmul.f32 %v924, %v1727
        %v1734 = vmul.f32 %v927, %v1723
        %v1735 = vmul.f32 %v928, %v1727
        %v1736 = vmul.f32 %v929, %v1723
        %v1737 = vmul.f32 %v930, %v1727
        %v1738 = vmul.f32 %v931, %v1723
        %v1739 = vmul.f32 %v932, %v1727
        %v1740 = vmul.f32 %v935, %v1723
        %v1741 = vmul.f32 %v936, %v1727
        %v1742 = vmul.f32 %v937, %v1723
        %v1743 = vmul.f32 %v938, %v1727
        %v1744 = vmul.f32 %v939, %v1723
        %v1745 = vmul.f32 %v940, %v1727
        %v1746 = vmul.f32 %v943, %v1723
        %v1747 = vmul.f32 %v944, %v1727
        %v1748 = vmul.f32 %v945, %v1723
        %v1749 = vmul.f32 %v946, %v1727
        %v1750 = vmul.f32 %v947, %v1723
        %v1751 = vmul.f32 %v948, %v1727
        %v1752 = vmul.f32 %v951, %v1723
        %v1753 = vmul.f32 %v952, %v1727
        %v1754 = vmul.f32 %v953, %v1723
        %v1755 = vmul.f32 %v954, %v1727
        %v1756 = vmul.f32 %v955, %v1723
        %v1757 = vmul.f32 %v956, %v1727
        %v1758 = vmul.f32 %v959, %v1723
        %v1759 = vmul.f32 %v960, %v1727
        %v1760 = vmul.f32 %v961, %v1723
        %v1761 = vmul.f32 %v962, %v1727
        %v1762 = vmul.f32 %v963, %v1723
        %v1763 = vmul.f32 %v964, %v1727
        %v1764 = vmul.f32 %v967, %v1723
        %v1765 = vmul.f32 %v968, %v1727
        %v1766 = vmul.f32 %v969, %v1723
        %v1767 = vmul.f32 %v970, %v1727
        %v1768 = vmul.f32 %v971, %v1723
        %v1769 = vmul.f32 %v972, %v1727
        %v1770 = vmul.f32 %v975, %v1723
        %v1771 = vmul.f32 %v976, %v1727
        %v1772 = vmul.f32 %v977, %v1723
        %v1773 = vmul.f32 %v978, %v1727
        %v1774 = vmul.f32 %v979, %v1723
        %v1775 = vmul.f32 %v980, %v1727
        %v1776 = vmul.f32 %v983, %v1723
        %v1777 = vmul.f32 %v984, %v1727
        %v1778 = vmul.f32 %v985, %v1723
        %v1779 = vmul.f32 %v986, %v1727
        %v1780 = vmul.f32 %v987, %v1723
        %v1781 = vmul.f32 %v988, %v1727
        %v1782 = vmul.f32 %v991, %v1723
        %v1783 = vmul.f32 %v992, %v1727
        %v1784 = vmul.f32 %v993, %v1723
        %v1785 = vmul.f32 %v994, %v1727
        %v1786 = vmul.f32 %v995, %v1723
        %v1787 = vmul.f32 %v996, %v1727
        %v1788 = vmul.f32 %v999, %v1723
        %v1789 = vmul.f32 %v1000, %v1727
        %v1790 = vmul.f32 %v1001, %v1723
        %v1791 = vmul.f32 %v1002, %v1727
        %v1792 = vmul.f32 %v1003, %v1723
        %v1793 = vmul.f32 %v1004, %v1727
        %v1794 = vmul.f32 %v1007, %v1723
        %v1795 = vmul.f32 %v1008, %v1727
        %v1796 = vmul.f32 %v1009, %v1723
        %v1797 = vmul.f32 %v1010, %v1727
        %v1798 = vmul.f32 %v1011, %v1723
        %v1799 = vmul.f32 %v1012, %v1727
        %v1800 = vmul.f32 %v1015, %v1723
        %v1801 = vmul.f32 %v1016, %v1727
        %v1802 = vmul.f32 %v1017, %v1723
        %v1803 = vmul.f32 %v1018, %v1727
        %v1804 = vmul.f32 %v1019, %v1723
        %v1805 = vmul.f32 %v1020, %v1727
        %v1806 = vmul.f32 %v1023, %v1723
        %v1807 = vmul.f32 %v1024, %v1727
        %v1808 = vmul.f32 %v1025, %v1723
        %v1809 = vmul.f32 %v1026, %v1727
        %v1810 = vmul.f32 %v1027, %v1723
        %v1811 = vmul.f32 %v1028, %v1727
        %v1812 = vmul.f32 %v1031, %v1723
        %v1813 = vmul.f32 %v1032, %v1727
        %v1814 = vmul.f32 %v1033, %v1723
        %v1815 = vmul.f32 %v1034, %v1727
        %v1816 = vmul.f32 %v1035, %v1723
        %v1817 = vmul.f32 %v1036, %v1727
        %v1818 = vmul.f32 %v1039, %v1723
        %v1819 = vmul.f32 %v1040, %v1727
        %v1820 = vmul.f32 %v1041, %v1723
        %v1821 = vmul.f32 %v1042, %v1727
        %v1822 = vmul.f32 %v1043, %v1723
        %v1823 = vmul.f32 %v1044, %v1727
        %vm1920 = vcmask 1045504
        %v1921 = vrot.slane %v1728, 2
        %v1922 = vrot.slane %v1729, 2
        %v1923 = vrot.slane %v1730, 2
        %v1924 = vsel %vm1920, %v1921, %v1923
        %v1925 = vrot.slane %v1731, 2
        %v1926 = vsel %vm1920, %v1922, %v1925
        %v1927 = vrot.slane %v1732, 2
        %v1928 = vsel %vm1920, %v1923, %v1927
        %v1929 = vrot.slane %v1733, 2
        %v1930 = vsel %vm1920, %v1925, %v1929
        %v1931 = vrot.slane %v1734, 2
        %v1932 = vrot.slane %v1735, 2
        %v1933 = vrot.slane %v1736, 2
        %v1934 = vsel %vm1920, %v1931, %v1933
        %v1935 = vrot.slane %v1737, 2
        %v1936 = vsel %vm1920, %v1932, %v1935
        %v1937 = vrot.slane %v1738, 2
        %v1938 = vsel %vm1920, %v1933, %v1937
        %v1939 = vrot.slane %v1739, 2
        %v1940 = vsel %vm1920, %v1935, %v1939
        %v1941 = vrot.slane %v1740, 2
        %v1942 = vrot.slane %v1741, 2
        %v1943 = vrot.slane %v1742, 2
        %v1944 = vsel %vm1920, %v1941, %v1943
        %v1945 = vrot.slane %v1743, 2
        %v1946 = vsel %vm1920, %v1942, %v1945
        %v1947 = vrot.slane %v1744, 2
        %v1948 = vsel %vm1920, %v1943, %v1947
        %v1949 = vrot.slane %v1745, 2
        %v1950 = vsel %vm1920, %v1945, %v1949
        %v1951 = vrot.slane %v1746, 2
        %v1952 = vrot.slane %v1747, 2
        %v1953 = vrot.slane %v1748, 2
        %v1954 = vsel %vm1920, %v1951, %v1953
        %v1955 = vrot.slane %v1749, 2
        %v1956 = vsel %vm1920, %v1952, %v1955
        %v1957 = vrot.slane %v1750, 2
        %v1958 = vsel %vm1920, %v1953, %v1957
        %v1959 = vrot.slane %v1751, 2
        %v1960 = vsel %vm1920, %v1955, %v1959
        %v1961 = vrot.slane %v1752, 2
        %v1962 = vrot.slane %v1753, 2
        %v1963 = vrot.slane %v1754, 2
        %v1964 = vsel %vm1920, %v1961, %v1963
        %v1965 = vrot.slane %v1755, 2
        %v1966 = vsel %vm1920, %v1962, %v1965
        %v1967 = vrot.slane %v1756, 2
        %v1968 = vsel %vm1920, %v1963, %v1967
        %v1969 = vrot.slane %v1757, 2
        %v1970 = vsel %vm1920, %v1965, %v1969
        %v1971 = vrot.slane %v1758, 2
        %v1972 = vrot.slane %v1759, 2
        %v1973 = vrot.slane %v1760, 2
        %v1974 = vsel %vm1920, %v1971, %v1973
        %v1975 = vrot.slane %v1761, 2
        %v1976 = vsel %vm1920, %v1972, %v1975
        %v1977 = vrot.slane %v1762, 2
        %v1978 = vsel %vm1920, %v1973, %v1977
        %v1979 = vrot.slane %v1763, 2
        %v1980 = vsel %vm1920, %v1975, %v1979
        %v1981 = vrot.slane %v1764, 2
        %v1982 = vrot.slane %v1765, 2
        %v1983 = vrot.slane %v1766, 2
        %v1984 = vsel %vm1920, %v1981, %v1983
        %v1985 = vrot.slane %v1767, 2
        %v1986 = vsel %vm1920, %v1982, %v1985
        %v1987 = vrot.slane %v1768, 2
        %v1988 = vsel %vm1920, %v1983, %v1987
        %v1989 = vrot.slane %v1769, 2
        %v1990 = vsel %vm1920, %v1985, %v1989
        %v1991 = vrot.slane %v1770, 2
        %v1992 = vrot.slane %v1771, 2
        %v1993 = vrot.slane %v1772, 2
        %v1994 = vsel %vm1920, %v1991, %v1993
        %v1995 = vrot.slane %v1773, 2
        %v1996 = vsel %vm1920, %v1992, %v1995
        %v1997 = vrot.slane %v1774, 2
        %v1998 = vsel %vm1920, %v1993, %v1997
        %v1999 = vrot.slane %v1775, 2
        %v2000 = vsel %vm1920, %v1995, %v1999
        %v2001 = vrot.slane %v1776, 2
        %v2002 = vrot.slane %v1777, 2
        %v2003 = vrot.slane %v1778, 2
        %v2004 = vsel %vm1920, %v2001, %v2003
        %v2005 = vrot.slane %v1779, 2
        %v2006 = vsel %vm1920, %v2002, %v2005
        %v2007 = vrot.slane %v1780, 2
        %v2008 = vsel %vm1920, %v2003, %v2007
        %v2009 = vrot.slane %v1781, 2
        %v2010 = vsel %vm1920, %v2005, %v2009
        %v2011 = vrot.slane %v1782, 2
        %v2012 = vrot.slane %v1783, 2
        %v2013 = vrot.slane %v1784, 2
        %v2014 = vsel %vm1920, %v2011, %v2013
        %v2015 = vrot.slane %v1785, 2
        %v2016 = vsel %vm1920, %v2012, %v2015
        %v2017 = vrot.slane %v1786, 2
        %v2018 = vsel %vm1920, %v2013, %v2017
        %v2019 = vrot.slane %v1787, 2
        %v2020 = vsel %vm1920, %v2015, %v2019
        %v2021 = vrot.slane %v1788, 2
        %v2022 = vrot.slane %v1789, 2
        %v2023 = vrot.slane %v1790, 2
        %v2024 = vsel %vm1920, %v2021, %v2023
        %v2025 = vrot.slane %v1791, 2
        %v2026 = vsel %vm1920, %v2022, %v2025
        %v2027 = vrot.slane %v1792, 2
        %v2028 = vsel %vm1920, %v2023, %v2027
        %v2029 = vrot.slane %v1793, 2
        %v2030 = vsel %vm1920, %v2025, %v2029
        %v2031 = vrot.slane %v1794, 2
        %v2032 = vrot.slane %v1795, 2
        %v2033 = vrot.slane %v1796, 2
        %v2034 = vsel %vm1920, %v2031, %v2033
        %v2035 = vrot.slane %v1797, 2
        %v2036 = vsel %vm1920, %v2032, %v2035
        %v2037 = vrot.slane %v1798, 2
        %v2038 = vsel %vm1920, %v2033, %v2037
        %v2039 = vrot.slane %v1799, 2
        %v2040 = vsel %vm1920, %v2035, %v2039
        %v2041 = vrot.slane %v1800, 2
        %v2042 = vrot.slane %v1801, 2
        %v2043 = vrot.slane %v1802, 2
        %v2044 = vsel %vm1920, %v2041, %v2043
        %v2045 = vrot.slane %v1803, 2
        %v2046 = vsel %vm1920, %v2042, %v2045
        %v2047 = vrot.slane %v1804, 2
        %v2048 = vsel %vm1920, %v2043, %v2047
        %v2049 = vrot.slane %v1805, 2
        %v2050 = vsel %vm1920, %v2045, %v2049
        %v2051 = vrot.slane %v1806, 2
        %v2052 = vrot.slane %v1807, 2
        %v2053 = vrot.slane %v1808, 2
        %v2054 = vsel %vm1920, %v2051, %v2053
        %v2055 = vrot.slane %v1809, 2
        %v2056 = vsel %vm1920, %v2052, %v2055
        %v2057 = vrot.slane %v1810, 2
        %v2058 = vsel %vm1920, %v2053, %v2057
        %v2059 = vrot.slane %v1811, 2
        %v2060 = vsel %vm1920, %v2055, %v2059
        %v2061 = vrot.slane %v1812, 2
        %v2062 = vrot.slane %v1813, 2
        %v2063 = vrot.slane %v1814, 2
        %v2064 = vsel %vm1920, %v2061, %v2063
        %v2065 = vrot.slane %v1815, 2
        %v2066 = vsel %vm1920, %v2062, %v2065
        %v2067 = vrot.slane %v1816, 2
        %v2068 = vsel %vm1920, %v2063, %v2067
        %v2069 = vrot.slane %v1817, 2
        %v2070 = vsel %vm1920, %v2065, %v2069
        %v2071 = vrot.slane %v1818, 2
        %v2072 = vrot.slane %v1819, 2
        %v2073 = vrot.slane %v1820, 2
        %v2074 = vsel %vm1920, %v2071, %v2073
        %v2075 = vrot.slane %v1821, 2
        %v2076 = vsel %vm1920, %v2072, %v2075
        %v2077 = vrot.slane %v1822, 2
        %v2078 = vsel %vm1920, %v2073, %v2077
        %v2079 = vrot.slane %v1823, 2
        %v2080 = vsel %vm1920, %v2075, %v2079
        %v2177 = vadd.f32 %v1614, %v1921
        %v2178 = vadd.f32 %v1615, %v1922
        %v2179 = vadd.f32 %v1616, %v1924
        %v2180 = vadd.f32 %v1617, %v1926
        %v2181 = vadd.f32 %v1618, %v1928
        %v2182 = vadd.f32 %v1619, %v1930
        %v2183 = vadd.f32 %v1620, %v1931
        %v2184 = vadd.f32 %v1621, %v1932
        %v2185 = vadd.f32 %v1622, %v1934
        %v2186 = vadd.f32 %v1623, %v1936
        %v2187 = vadd.f32 %v1624, %v1938
        %v2188 = vadd.f32 %v1625, %v1940
        %v2189 = vadd.f32 %v1626, %v1941
        %v2190 = vadd.f32 %v1627, %v1942
        %v2191 = vadd.f32 %v1628, %v1944
        %v2192 = vadd.f32 %v1629, %v1946
        %v2193 = vadd.f32 %v1630, %v1948
        %v2194 = vadd.f32 %v1631, %v1950
        %v2195 = vadd.f32 %v1632, %v1951
        %v2196 = vadd.f32 %v1633, %v1952
        %v2197 = vadd.f32 %v1634, %v1954
        %v2198 = vadd.f32 %v1635, %v1956
        %v2199 = vadd.f32 %v1636, %v1958
        %v2200 = vadd.f32 %v1637, %v1960
        %v2201 = vadd.f32 %v1638, %v1961
        %v2202 = vadd.f32 %v1639, %v1962
        %v2203 = vadd.f32 %v1640, %v1964
        %v2204 = vadd.f32 %v1641, %v1966
        %v2205 = vadd.f32 %v1642, %v1968
        %v2206 = vadd.f32 %v1643, %v1970
        %v2207 = vadd.f32 %v1644, %v1971
        %v2208 = vadd.f32 %v1645, %v1972
        %v2209 = vadd.f32 %v1646, %v1974
        %v2210 = vadd.f32 %v1647, %v1976
        %v2211 = vadd.f32 %v1648, %v1978
        %v2212 = vadd.f32 %v1649, %v1980
        %v2213 = vadd.f32 %v1650, %v1981
        %v2214 = vadd.f32 %v1651, %v1982
        %v2215 = vadd.f32 %v1652, %v1984
        %v2216 = vadd.f32 %v1653, %v1986
        %v2217 = vadd.f32 %v1654, %v1988
        %v2218 = vadd.f32 %v1655, %v1990
        %v2219 = vadd.f32 %v1656, %v1991
        %v2220 = vadd.f32 %v1657, %v1992
        %v2221 = vadd.f32 %v1658, %v1994
        %v2222 = vadd.f32 %v1659, %v1996
        %v2223 = vadd.f32 %v1660, %v1998
        %v2224 = vadd.f32 %v1661, %v2000
        %v2225 = vadd.f32 %v1662, %v2001
        %v2226 = vadd.f32 %v1663, %v2002
        %v2227 = vadd.f32 %v1664, %v2004
        %v2228 = vadd.f32 %v1665, %v2006
        %v2229 = vadd.f32 %v1666, %v2008
        %v2230 = vadd.f32 %v1667, %v2010
        %v2231 = vadd.f32 %v1668, %v2011
        %v2232 = vadd.f32 %v1669, %v2012
        %v2233 = vadd.f32 %v1670, %v2014
        %v2234 = vadd.f32 %v1671, %v2016
        %v2235 = vadd.f32 %v1672, %v2018
        %v2236 = vadd.f32 %v1673, %v2020
        %v2237 = vadd.f32 %v1674, %v2021
        %v2238 = vadd.f32 %v1675, %v2022
        %v2239 = vadd.f32 %v1676, %v2024
        %v2240 = vadd.f32 %v1677, %v2026
        %v2241 = vadd.f32 %v1678, %v2028
        %v2242 = vadd.f32 %v1679, %v2030
        %v2243 = vadd.f32 %v1680, %v2031
        %v2244 = vadd.f32 %v1681, %v2032
        %v2245 = vadd.f32 %v1682, %v2034
        %v2246 = vadd.f32 %v1683, %v2036
        %v2247 = vadd.f32 %v1684, %v2038
        %v2248 = vadd.f32 %v1685, %v2040
        %v2249 = vadd.f32 %v1686, %v2041
        %v2250 = vadd.f32 %v1687, %v2042
        %v2251 = vadd.f32 %v1688, %v2044
        %v2252 = vadd.f32 %v1689, %v2046
        %v2253 = vadd.f32 %v1690, %v2048
        %v2254 = vadd.f32 %v1691, %v2050
        %v2255 = vadd.f32 %v1692, %v2051
        %v2256 = vadd.f32 %v1693, %v2052
        %v2257 = vadd.f32 %v1694, %v2054
        %v2258 = vadd.f32 %v1695, %v2056
        %v2259 = vadd.f32 %v1696, %v2058
        %v2260 = vadd.f32 %v1697, %v2060
        %v2261 = vadd.f32 %v1698, %v2061
        %v2262 = vadd.f32 %v1699, %v2062
        %v2263 = vadd.f32 %v1700, %v2064
        %v2264 = vadd.f32 %v1701, %v2066
        %v2265 = vadd.f32 %v1702, %v2068
        %v2266 = vadd.f32 %v1703, %v2070
        %v2267 = vadd.f32 %v1704, %v2071
        %v2268 = vadd.f32 %v1705, %v2072
        %v2269 = vadd.f32 %v1706, %v2074
        %v2270 = vadd.f32 %v1707, %v2076
        %v2271 = vadd.f32 %v1708, %v2078
        %v2272 = vadd.f32 %v1709, %v2080
        %v2274 = vlaneseq
        %v2275 = vshrl.u32 %v2274, 7
        %v2276 = vsub.s32 0, %v2275
        %v2277 = vrot.slane %v1062, %v2276
        %v2278 = vlaneseq
        %v2279 = vshrl.u32 %v2278, 7
        %v2280 = vsub.s32 4, %v2279
        %v2281 = vrot.slane %v1062, %v2280
        %v2284 = vlaneseq
        %v2285 = vshrl.u32 %v2284, 7
        %v2286 = vsub.s32 0, %v2285
        %v2287 = vrot.slane %v2277, %v2286
        %v2288 = vlaneseq
        %v2289 = vshrl.u32 %v2288, 7
        %v2290 = vsub.s32 0, %v2289
        %v2291 = vrot.slane %v2281, %v2290
        %v2292 = vmul.f32 %v925, %v2287
        %v2293 = vmul.f32 %v926, %v2291
        %v2294 = vmul.f32 %v927, %v2287
        %v2295 = vmul.f32 %v928, %v2291
        %v2296 = vmul.f32 %v929, %v2287
        %v2297 = vmul.f32 %v930, %v2291
        %v2298 = vmul.f32 %v933, %v2287
        %v2299 = vmul.f32 %v934, %v2291
        %v2300 = vmul.f32 %v935, %v2287
        %v2301 = vmul.f32 %v936, %v2291
        %v2302 = vmul.f32 %v937, %v2287
        %v2303 = vmul.f32 %v938, %v2291
        %v2304 = vmul.f32 %v941, %v2287
        %v2305 = vmul.f32 %v942, %v2291
        %v2306 = vmul.f32 %v943, %v2287
        %v2307 = vmul.f32 %v944, %v2291
        %v2308 = vmul.f32 %v945, %v2287
        %v2309 = vmul.f32 %v946, %v2291
        %v2310 = vmul.f32 %v949, %v2287
        %v2311 = vmul.f32 %v950, %v2291
        %v2312 = vmul.f32 %v951, %v2287
        %v2313 = vmul.f32 %v952, %v2291
        %v2314 = vmul.f32 %v953, %v2287
        %v2315 = vmul.f32 %v954, %v2291
        %v2316 = vmul.f32 %v957, %v2287
        %v2317 = vmul.f32 %v958, %v2291
        %v2318 = vmul.f32 %v959, %v2287
        %v2319 = vmul.f32 %v960, %v2291
        %v2320 = vmul.f32 %v961, %v2287
        %v2321 = vmul.f32 %v962, %v2291
        %v2322 = vmul.f32 %v965, %v2287
        %v2323 = vmul.f32 %v966, %v2291
        %v2324 = vmul.f32 %v967, %v2287
        %v2325 = vmul.f32 %v968, %v2291
        %v2326 = vmul.f32 %v969, %v2287
        %v2327 = vmul.f32 %v970, %v2291
        %v2328 = vmul.f32 %v973, %v2287
        %v2329 = vmul.f32 %v974, %v2291
        %v2330 = vmul.f32 %v975, %v2287
        %v2331 = vmul.f32 %v976, %v2291
        %v2332 = vmul.f32 %v977, %v2287
        %v2333 = vmul.f32 %v978, %v2291
        %v2334 = vmul.f32 %v981, %v2287
        %v2335 = vmul.f32 %v982, %v2291
        %v2336 = vmul.f32 %v983, %v2287
        %v2337 = vmul.f32 %v984, %v2291
        %v2338 = vmul.f32 %v985, %v2287
        %v2339 = vmul.f32 %v986, %v2291
        %v2340 = vmul.f32 %v989, %v2287
        %v2341 = vmul.f32 %v990, %v2291
        %v2342 = vmul.f32 %v991, %v2287
        %v2343 = vmul.f32 %v992, %v2291
        %v2344 = vmul.f32 %v993, %v2287
        %v2345 = vmul.f32 %v994, %v2291
        %v2346 = vmul.f32 %v997, %v2287
        %v2347 = vmul.f32 %v998, %v2291
        %v2348 = vmul.f32 %v999, %v2287
        %v2349 = vmul.f32 %v1000, %v2291
        %v2350 = vmul.f32 %v1001, %v2287
        %v2351 = vmul.f32 %v1002, %v2291
        %v2352 = vmul.f32 %v1005, %v2287
        %v2353 = vmul.f32 %v1006, %v2291
        %v2354 = vmul.f32 %v1007, %v2287
        %v2355 = vmul.f32 %v1008, %v2291
        %v2356 = vmul.f32 %v1009, %v2287
        %v2357 = vmul.f32 %v1010, %v2291
        %v2358 = vmul.f32 %v1013, %v2287
        %v2359 = vmul.f32 %v1014, %v2291
        %v2360 = vmul.f32 %v1015, %v2287
        %v2361 = vmul.f32 %v1016, %v2291
        %v2362 = vmul.f32 %v1017, %v2287
        %v2363 = vmul.f32 %v1018, %v2291
        %v2364 = vmul.f32 %v1021, %v2287
        %v2365 = vmul.f32 %v1022, %v2291
        %v2366 = vmul.f32 %v1023, %v2287
        %v2367 = vmul.f32 %v1024, %v2291
        %v2368 = vmul.f32 %v1025, %v2287
        %v2369 = vmul.f32 %v1026, %v2291
        %v2370 = vmul.f32 %v1029, %v2287
        %v2371 = vmul.f32 %v1030, %v2291
        %v2372 = vmul.f32 %v1031, %v2287
        %v2373 = vmul.f32 %v1032, %v2291
        %v2374 = vmul.f32 %v1033, %v2287
        %v2375 = vmul.f32 %v1034, %v2291
        %v2376 = vmul.f32 %v1037, %v2287
        %v2377 = vmul.f32 %v1038, %v2291
        %v2378 = vmul.f32 %v1039, %v2287
        %v2379 = vmul.f32 %v1040, %v2291
        %v2380 = vmul.f32 %v1041, %v2287
        %v2381 = vmul.f32 %v1042, %v2291
        %v2382 = vmul.f32 %v1045, %v2287
        %v2383 = vmul.f32 %v1046, %v2291
        %v2384 = vmul.f32 %v1047, %v2287
        %v2385 = vmul.f32 %v1048, %v2291
        %v2386 = vmul.f32 %v1049, %v2287
        %v2387 = vmul.f32 %v1050, %v2291
        %v2388 = vadd.f32 %v2177, %v2292
        %v2389 = vadd.f32 %v2178, %v2293
        %v2390 = vadd.f32 %v2179, %v2294
        %v2391 = vadd.f32 %v2180, %v2295
        %v2392 = vadd.f32 %v2181, %v2296
        %v2393 = vadd.f32 %v2182, %v2297
        %v2394 = vadd.f32 %v2183, %v2298
        %v2395 = vadd.f32 %v2184, %v2299
        %v2396 = vadd.f32 %v2185, %v2300
        %v2397 = vadd.f32 %v2186, %v2301
        %v2398 = vadd.f32 %v2187, %v2302
        %v2399 = vadd.f32 %v2188, %v2303
        %v2400 = vadd.f32 %v2189, %v2304
        %v2401 = vadd.f32 %v2190, %v2305
        %v2402 = vadd.f32 %v2191, %v2306
        %v2403 = vadd.f32 %v2192, %v2307
        %v2404 = vadd.f32 %v2193, %v2308
        %v2405 = vadd.f32 %v2194, %v2309
        %v2406 = vadd.f32 %v2195, %v2310
        %v2407 = vadd.f32 %v2196, %v2311
        %v2408 = vadd.f32 %v2197, %v2312
        %v2409 = vadd.f32 %v2198, %v2313
        %v2410 = vadd.f32 %v2199, %v2314
        %v2411 = vadd.f32 %v2200, %v2315
        %v2412 = vadd.f32 %v2201, %v2316
        %v2413 = vadd.f32 %v2202, %v2317
        %v2414 = vadd.f32 %v2203, %v2318
        %v2415 = vadd.f32 %v2204, %v2319
        %v2416 = vadd.f32 %v2205, %v2320
        %v2417 = vadd.f32 %v2206, %v2321
        %v2418 = vadd.f32 %v2207, %v2322
        %v2419 = vadd.f32 %v2208, %v2323
        %v2420 = vadd.f32 %v2209, %v2324
        %v2421 = vadd.f32 %v2210, %v2325
        %v2422 = vadd.f32 %v2211, %v2326
        %v2423 = vadd.f32 %v2212, %v2327
        %v2424 = vadd.f32 %v2213, %v2328
        %v2425 = vadd.f32 %v2214, %v2329
        %v2426 = vadd.f32 %v2215, %v2330
        %v2427 = vadd.f32 %v2216, %v2331
        %v2428 = vadd.f32 %v2217, %v2332
        %v2429 = vadd.f32 %v2218, %v2333
        %v2430 = vadd.f32 %v2219, %v2334
        %v2431 = vadd.f32 %v2220, %v2335
        %v2432 = vadd.f32 %v2221, %v2336
        %v2433 = vadd.f32 %v2222, %v2337
        %v2434 = vadd.f32 %v2223, %v2338
        %v2435 = vadd.f32 %v2224, %v2339
        %v2436 = vadd.f32 %v2225, %v2340
        %v2437 = vadd.f32 %v2226, %v2341
        %v2438 = vadd.f32 %v2227, %v2342
        %v2439 = vadd.f32 %v2228, %v2343
        %v2440 = vadd.f32 %v2229, %v2344
        %v2441 = vadd.f32 %v2230, %v2345
        %v2442 = vadd.f32 %v2231, %v2346
        %v2443 = vadd.f32 %v2232, %v2347
        %v2444 = vadd.f32 %v2233, %v2348
        %v2445 = vadd.f32 %v2234, %v2349
        %v2446 = vadd.f32 %v2235, %v2350
        %v2447 = vadd.f32 %v2236, %v2351
        %v2448 = vadd.f32 %v2237, %v2352
        %v2449 = vadd.f32 %v2238, %v2353
        %v2450 = vadd.f32 %v2239, %v2354
        %v2451 = vadd.f32 %v2240, %v2355
        %v2452 = vadd.f32 %v2241, %v2356
        %v2453 = vadd.f32 %v2242, %v2357
        %v2454 = vadd.f32 %v2243, %v2358
        %v2455 = vadd.f32 %v2244, %v2359
        %v2456 = vadd.f32 %v2245, %v2360
        %v2457 = vadd.f32 %v2246, %v2361
        %v2458 = vadd.f32 %v2247, %v2362
        %v2459 = vadd.f32 %v2248, %v2363
        %v2460 = vadd.f32 %v2249, %v2364
        %v2461 = vadd.f32 %v2250, %v2365
        %v2462 = vadd.f32 %v2251, %v2366
        %v2463 = vadd.f32 %v2252, %v2367
        %v2464 = vadd.f32 %v2253, %v2368
        %v2465 = vadd.f32 %v2254, %v2369
        %v2466 = vadd.f32 %v2255, %v2370
        %v2467 = vadd.f32 %v2256, %v2371
        %v2468 = vadd.f32 %v2257, %v2372
        %v2469 = vadd.f32 %v2258, %v2373
        %v2470 = vadd.f32 %v2259, %v2374
        %v2471 = vadd.f32 %v2260, %v2375
        %v2472 = vadd.f32 %v2261, %v2376
        %v2473 = vadd.f32 %v2262, %v2377
        %v2474 = vadd.f32 %v2263, %v2378
        %v2475 = vadd.f32 %v2264, %v2379
        %v2476 = vadd.f32 %v2265, %v2380
        %v2477 = vadd.f32 %v2266, %v2381
        %v2478 = vadd.f32 %v2267, %v2382
        %v2479 = vadd.f32 %v2268, %v2383
        %v2480 = vadd.f32 %v2269, %v2384
        %v2481 = vadd.f32 %v2270, %v2385
        %v2482 = vadd.f32 %v2271, %v2386
        %v2483 = vadd.f32 %v2272, %v2387
        %v2484 = vlaneseq
        %v2485 = vshrl.u32 %v2484, 7
        %v2486 = vsub.s32 1, %v2485
        %v2487 = vrot.slane %v1062, %v2486
        %v2488 = vlaneseq
        %v2489 = vshrl.u32 %v2488, 7
        %v2490 = vsub.s32 5, %v2489
        %v2491 = vrot.slane %v1062, %v2490
        %v2494 = vlaneseq
        %v2495 = vshrl.u32 %v2494, 7
        %v2496 = vsub.s32 1, %v2495
        %v2497 = vrot.slane %v2487, %v2496
        %v2498 = vlaneseq
        %v2499 = vshrl.u32 %v2498, 7
        %v2500 = vsub.s32 1, %v2499
        %v2501 = vrot.slane %v2491, %v2500
        %v2502 = vmul.f32 %v927, %v2497
        %v2503 = vmul.f32 %v928, %v2501
        %v2504 = vmul.f32 %v929, %v2497
        %v2505 = vmul.f32 %v930, %v2501
        %v2506 = vmul.f32 %v935, %v2497
        %v2507 = vmul.f32 %v936, %v2501
        %v2508 = vmul.f32 %v937, %v2497
        %v2509 = vmul.f32 %v938, %v2501
        %v2510 = vmul.f32 %v943, %v2497
        %v2511 = vmul.f32 %v944, %v2501
        %v2512 = vmul.f32 %v945, %v2497
        %v2513 = vmul.f32 %v946, %v2501
        %v2514 = vmul.f32 %v951, %v2497
        %v2515 = vmul.f32 %v952, %v2501
        %v2516 = vmul.f32 %v953, %v2497
        %v2517 = vmul.f32 %v954, %v2501
        %v2518 = vmul.f32 %v959, %v2497
        %v2519 = vmul.f32 %v960, %v2501
        %v2520 = vmul.f32 %v961, %v2497
        %v2521 = vmul.f32 %v962, %v2501
        %v2522 = vmul.f32 %v967, %v2497
        %v2523 = vmul.f32 %v968, %v2501
        %v2524 = vmul.f32 %v969, %v2497
        %v2525 = vmul.f32 %v970, %v2501
        %v2526 = vmul.f32 %v975, %v2497
        %v2527 = vmul.f32 %v976, %v2501
        %v2528 = vmul.f32 %v977, %v2497
        %v2529 = vmul.f32 %v978, %v2501
        %v2530 = vmul.f32 %v983, %v2497
        %v2531 = vmul.f32 %v984, %v2501
        %v2532 = vmul.f32 %v985, %v2497
        %v2533 = vmul.f32 %v986, %v2501
        %v2534 = vmul.f32 %v991, %v2497
        %v2535 = vmul.f32 %v992, %v2501
        %v2536 = vmul.f32 %v993, %v2497
        %v2537 = vmul.f32 %v994, %v2501
        %v2538 = vmul.f32 %v999, %v2497
        %v2539 = vmul.f32 %v1000, %v2501
        %v2540 = vmul.f32 %v1001, %v2497
        %v2541 = vmul.f32 %v1002, %v2501
        %v2542 = vmul.f32 %v1007, %v2497
        %v2543 = vmul.f32 %v1008, %v2501
        %v2544 = vmul.f32 %v1009, %v2497
        %v2545 = vmul.f32 %v1010, %v2501
        %v2546 = vmul.f32 %v1015, %v2497
        %v2547 = vmul.f32 %v1016, %v2501
        %v2548 = vmul.f32 %v1017, %v2497
        %v2549 = vmul.f32 %v1018, %v2501
        %v2550 = vmul.f32 %v1023, %v2497
        %v2551 = vmul.f32 %v1024, %v2501
        %v2552 = vmul.f32 %v1025, %v2497
        %v2553 = vmul.f32 %v1026, %v2501
        %v2554 = vmul.f32 %v1031, %v2497
        %v2555 = vmul.f32 %v1032, %v2501
        %v2556 = vmul.f32 %v1033, %v2497
        %v2557 = vmul.f32 %v1034, %v2501
        %v2558 = vmul.f32 %v1039, %v2497
        %v2559 = vmul.f32 %v1040, %v2501
        %v2560 = vmul.f32 %v1041, %v2497
        %v2561 = vmul.f32 %v1042, %v2501
        %v2562 = vmul.f32 %v1047, %v2497
        %v2563 = vmul.f32 %v1048, %v2501
        %v2564 = vmul.f32 %v1049, %v2497
        %v2565 = vmul.f32 %v1050, %v2501
        %v2630 = vrot.slane %v2502, 1
        %v2631 = vrot.slane %v2503, 1
        %v2632 = vrot.slane %v2504, 1
        %v2633 = vsel %vm1421, %v2630, %v2632
        %v2634 = vrot.slane %v2505, 1
        %v2635 = vsel %vm1421, %v2631, %v2634
        %v2636 = vrot.slane %v2506, 1
        %v2637 = vrot.slane %v2507, 1
        %v2638 = vrot.slane %v2508, 1
        %v2639 = vsel %vm1421, %v2636, %v2638
        %v2640 = vrot.slane %v2509, 1
        %v2641 = vsel %vm1421, %v2637, %v2640
        %v2642 = vrot.slane %v2510, 1
        %v2643 = vrot.slane %v2511, 1
        %v2644 = vrot.slane %v2512, 1
        %v2645 = vsel %vm1421, %v2642, %v2644
        %v2646 = vrot.slane %v2513, 1
        %v2647 = vsel %vm1421, %v2643, %v2646
        %v2648 = vrot.slane %v2514, 1
        %v2649 = vrot.slane %v2515, 1
        %v2650 = vrot.slane %v2516, 1
        %v2651 = vsel %vm1421, %v2648, %v2650
        %v2652 = vrot.slane %v2517, 1
        %v2653 = vsel %vm1421, %v2649, %v2652
        %v2654 = vrot.slane %v2518, 1
        %v2655 = vrot.slane %v2519, 1
        %v2656 = vrot.slane %v2520, 1
        %v2657 = vsel %vm1421, %v2654, %v2656
        %v2658 = vrot.slane %v2521, 1
        %v2659 = vsel %vm1421, %v2655, %v2658
        %v2660 = vrot.slane %v2522, 1
        %v2661 = vrot.slane %v2523, 1
        %v2662 = vrot.slane %v2524, 1
        %v2663 = vsel %vm1421, %v2660, %v2662
        %v2664 = vrot.slane %v2525, 1
        %v2665 = vsel %vm1421, %v2661, %v2664
        %v2666 = vrot.slane %v2526, 1
        %v2667 = vrot.slane %v2527, 1
        %v2668 = vrot.slane %v2528, 1
        %v2669 = vsel %vm1421, %v2666, %v2668
        %v2670 = vrot.slane %v2529, 1
        %v2671 = vsel %vm1421, %v2667, %v2670
        %v2672 = vrot.slane %v2530, 1
        %v2673 = vrot.slane %v2531, 1
        %v2674 = vrot.slane %v2532, 1
        %v2675 = vsel %vm1421, %v2672, %v2674
        %v2676 = vrot.slane %v2533, 1
        %v2677 = vsel %vm1421, %v2673, %v2676
        %v2678 = vrot.slane %v2534, 1
        %v2679 = vrot.slane %v2535, 1
        %v2680 = vrot.slane %v2536, 1
        %v2681 = vsel %vm1421, %v2678, %v2680
        %v2682 = vrot.slane %v2537, 1
        %v2683 = vsel %vm1421, %v2679, %v2682
        %v2684 = vrot.slane %v2538, 1
        %v2685 = vrot.slane %v2539, 1
        %v2686 = vrot.slane %v2540, 1
        %v2687 = vsel %vm1421, %v2684, %v2686
        %v2688 = vrot.slane %v2541, 1
        %v2689 = vsel %vm1421, %v2685, %v2688
        %v2690 = vrot.slane %v2542, 1
        %v2691 = vrot.slane %v2543, 1
        %v2692 = vrot.slane %v2544, 1
        %v2693 = vsel %vm1421, %v2690, %v2692
        %v2694 = vrot.slane %v2545, 1
        %v2695 = vsel %vm1421, %v2691, %v2694
        %v2696 = vrot.slane %v2546, 1
        %v2697 = vrot.slane %v2547, 1
        %v2698 = vrot.slane %v2548, 1
        %v2699 = vsel %vm1421, %v2696, %v2698
        %v2700 = vrot.slane %v2549, 1
        %v2701 = vsel %vm1421, %v2697, %v2700
        %v2702 = vrot.slane %v2550, 1
        %v2703 = vrot.slane %v2551, 1
        %v2704 = vrot.slane %v2552, 1
        %v2705 = vsel %vm1421, %v2702, %v2704
        %v2706 = vrot.slane %v2553, 1
        %v2707 = vsel %vm1421, %v2703, %v2706
        %v2708 = vrot.slane %v2554, 1
        %v2709 = vrot.slane %v2555, 1
        %v2710 = vrot.slane %v2556, 1
        %v2711 = vsel %vm1421, %v2708, %v2710
        %v2712 = vrot.slane %v2557, 1
        %v2713 = vsel %vm1421, %v2709, %v2712
        %v2714 = vrot.slane %v2558, 1
        %v2715 = vrot.slane %v2559, 1
        %v2716 = vrot.slane %v2560, 1
        %v2717 = vsel %vm1421, %v2714, %v2716
        %v2718 = vrot.slane %v2561, 1
        %v2719 = vsel %vm1421, %v2715, %v2718
        %v2720 = vrot.slane %v2562, 1
        %v2721 = vrot.slane %v2563, 1
        %v2722 = vrot.slane %v2564, 1
        %v2723 = vsel %vm1421, %v2720, %v2722
        %v2724 = vrot.slane %v2565, 1
        %v2725 = vsel %vm1421, %v2721, %v2724
        %v2822 = vadd.f32 %v2388, %v2630
        %v2823 = vadd.f32 %v2389, %v2631
        %v2824 = vadd.f32 %v2390, %v2633
        %v2825 = vadd.f32 %v2391, %v2635
        %v2826 = vadd.f32 %v2392, %v2632
        %v2827 = vadd.f32 %v2393, %v2634
        %v2828 = vadd.f32 %v2394, %v2636
        %v2829 = vadd.f32 %v2395, %v2637
        %v2830 = vadd.f32 %v2396, %v2639
        %v2831 = vadd.f32 %v2397, %v2641
        %v2832 = vadd.f32 %v2398, %v2638
        %v2833 = vadd.f32 %v2399, %v2640
        %v2834 = vadd.f32 %v2400, %v2642
        %v2835 = vadd.f32 %v2401, %v2643
        %v2836 = vadd.f32 %v2402, %v2645
        %v2837 = vadd.f32 %v2403, %v2647
        %v2838 = vadd.f32 %v2404, %v2644
        %v2839 = vadd.f32 %v2405, %v2646
        %v2840 = vadd.f32 %v2406, %v2648
        %v2841 = vadd.f32 %v2407, %v2649
        %v2842 = vadd.f32 %v2408, %v2651
        %v2843 = vadd.f32 %v2409, %v2653
        %v2844 = vadd.f32 %v2410, %v2650
        %v2845 = vadd.f32 %v2411, %v2652
        %v2846 = vadd.f32 %v2412, %v2654
        %v2847 = vadd.f32 %v2413, %v2655
        %v2848 = vadd.f32 %v2414, %v2657
        %v2849 = vadd.f32 %v2415, %v2659
        %v2850 = vadd.f32 %v2416, %v2656
        %v2851 = vadd.f32 %v2417, %v2658
        %v2852 = vadd.f32 %v2418, %v2660
        %v2853 = vadd.f32 %v2419, %v2661
        %v2854 = vadd.f32 %v2420, %v2663
        %v2855 = vadd.f32 %v2421, %v2665
        %v2856 = vadd.f32 %v2422, %v2662
        %v2857 = vadd.f32 %v2423, %v2664
        %v2858 = vadd.f32 %v2424, %v2666
        %v2859 = vadd.f32 %v2425, %v2667
        %v2860 = vadd.f32 %v2426, %v2669
        %v2861 = vadd.f32 %v2427, %v2671
        %v2862 = vadd.f32 %v2428, %v2668
        %v2863 = vadd.f32 %v2429, %v2670
        %v2864 = vadd.f32 %v2430, %v2672
        %v2865 = vadd.f32 %v2431, %v2673
        %v2866 = vadd.f32 %v2432, %v2675
        %v2867 = vadd.f32 %v2433, %v2677
        %v2868 = vadd.f32 %v2434, %v2674
        %v2869 = vadd.f32 %v2435, %v2676
        %v2870 = vadd.f32 %v2436, %v2678
        %v2871 = vadd.f32 %v2437, %v2679
        %v2872 = vadd.f32 %v2438, %v2681
        %v2873 = vadd.f32 %v2439, %v2683
        %v2874 = vadd.f32 %v2440, %v2680
        %v2875 = vadd.f32 %v2441, %v2682
        %v2876 = vadd.f32 %v2442, %v2684
        %v2877 = vadd.f32 %v2443, %v2685
        %v2878 = vadd.f32 %v2444, %v2687
        %v2879 = vadd.f32 %v2445, %v2689
        %v2880 = vadd.f32 %v2446, %v2686
        %v2881 = vadd.f32 %v2447, %v2688
        %v2882 = vadd.f32 %v2448, %v2690
        %v2883 = vadd.f32 %v2449, %v2691
        %v2884 = vadd.f32 %v2450, %v2693
        %v2885 = vadd.f32 %v2451, %v2695
        %v2886 = vadd.f32 %v2452, %v2692
        %v2887 = vadd.f32 %v2453, %v2694
        %v2888 = vadd.f32 %v2454, %v2696
        %v2889 = vadd.f32 %v2455, %v2697
        %v2890 = vadd.f32 %v2456, %v2699
        %v2891 = vadd.f32 %v2457, %v2701
        %v2892 = vadd.f32 %v2458, %v2698
        %v2893 = vadd.f32 %v2459, %v2700
        %v2894 = vadd.f32 %v2460, %v2702
        %v2895 = vadd.f32 %v2461, %v2703
        %v2896 = vadd.f32 %v2462, %v2705
        %v2897 = vadd.f32 %v2463, %v2707
        %v2898 = vadd.f32 %v2464, %v2704
        %v2899 = vadd.f32 %v2465, %v2706
        %v2900 = vadd.f32 %v2466, %v2708
        %v2901 = vadd.f32 %v2467, %v2709
        %v2902 = vadd.f32 %v2468, %v2711
        %v2903 = vadd.f32 %v2469, %v2713
        %v2904 = vadd.f32 %v2470, %v2710
        %v2905 = vadd.f32 %v2471, %v2712
        %v2906 = vadd.f32 %v2472, %v2714
        %v2907 = vadd.f32 %v2473, %v2715
        %v2908 = vadd.f32 %v2474, %v2717
        %v2909 = vadd.f32 %v2475, %v2719
        %v2910 = vadd.f32 %v2476, %v2716
        %v2911 = vadd.f32 %v2477, %v2718
        %v2912 = vadd.f32 %v2478, %v2720
        %v2913 = vadd.f32 %v2479, %v2721
        %v2914 = vadd.f32 %v2480, %v2723
        %v2915 = vadd.f32 %v2481, %v2725
        %v2916 = vadd.f32 %v2482, %v2722
        %v2917 = vadd.f32 %v2483, %v2724
        %v2918 = vlaneseq
        %v2919 = vshrl.u32 %v2918, 7
        %v2920 = vsub.s32 2, %v2919
        %v2921 = vrot.slane %v1062, %v2920
        %v2922 = vlaneseq
        %v2923 = vshrl.u32 %v2922, 7
        %v2924 = vsub.s32 6, %v2923
        %v2925 = vrot.slane %v1062, %v2924
        %v2928 = vlaneseq
        %v2929 = vshrl.u32 %v2928, 7
        %v2930 = vsub.s32 2, %v2929
        %v2931 = vrot.slane %v2921, %v2930
        %v2932 = vlaneseq
        %v2933 = vshrl.u32 %v2932, 7
        %v2934 = vsub.s32 2, %v2933
        %v2935 = vrot.slane %v2925, %v2934
        %v2936 = vmul.f32 %v927, %v2931
        %v2937 = vmul.f32 %v928, %v2935
        %v2938 = vmul.f32 %v929, %v2931
        %v2939 = vmul.f32 %v930, %v2935
        %v2940 = vmul.f32 %v931, %v2931
        %v2941 = vmul.f32 %v932, %v2935
        %v2942 = vmul.f32 %v935, %v2931
        %v2943 = vmul.f32 %v936, %v2935
        %v2944 = vmul.f32 %v937, %v2931
        %v2945 = vmul.f32 %v938, %v2935
        %v2946 = vmul.f32 %v939, %v2931
        %v2947 = vmul.f32 %v940, %v2935
        %v2948 = vmul.f32 %v943, %v2931
        %v2949 = vmul.f32 %v944, %v2935
        %v2950 = vmul.f32 %v945, %v2931
        %v2951 = vmul.f32 %v946, %v2935
        %v2952 = vmul.f32 %v947, %v2931
        %v2953 = vmul.f32 %v948, %v2935
        %v2954 = vmul.f32 %v951, %v2931
        %v2955 = vmul.f32 %v952, %v2935
        %v2956 = vmul.f32 %v953, %v2931
        %v2957 = vmul.f32 %v954, %v2935
        %v2958 = vmul.f32 %v955, %v2931
        %v2959 = vmul.f32 %v956, %v2935
        %v2960 = vmul.f32 %v959, %v2931
        %v2961 = vmul.f32 %v960, %v2935
        %v2962 = vmul.f32 %v961, %v2931
        %v2963 = vmul.f32 %v962, %v2935
        %v2964 = vmul.f32 %v963, %v2931
        %v2965 = vmul.f32 %v964, %v2935
        %v2966 = vmul.f32 %v967, %v2931
        %v2967 = vmul.f32 %v968, %v2935
        %v2968 = vmul.f32 %v969, %v2931
        %v2969 = vmul.f32 %v970, %v2935
        %v2970 = vmul.f32 %v971, %v2931
        %v2971 = vmul.f32 %v972, %v2935
        %v2972 = vmul.f32 %v975, %v2931
        %v2973 = vmul.f32 %v976, %v2935
        %v2974 = vmul.f32 %v977, %v2931
        %v2975 = vmul.f32 %v978, %v2935
        %v2976 = vmul.f32 %v979, %v2931
        %v2977 = vmul.f32 %v980, %v2935
        %v2978 = vmul.f32 %v983, %v2931
        %v2979 = vmul.f32 %v984, %v2935
        %v2980 = vmul.f32 %v985, %v2931
        %v2981 = vmul.f32 %v986, %v2935
        %v2982 = vmul.f32 %v987, %v2931
        %v2983 = vmul.f32 %v988, %v2935
        %v2984 = vmul.f32 %v991, %v2931
        %v2985 = vmul.f32 %v992, %v2935
        %v2986 = vmul.f32 %v993, %v2931
        %v2987 = vmul.f32 %v994, %v2935
        %v2988 = vmul.f32 %v995, %v2931
        %v2989 = vmul.f32 %v996, %v2935
        %v2990 = vmul.f32 %v999, %v2931
        %v2991 = vmul.f32 %v1000, %v2935
        %v2992 = vmul.f32 %v1001, %v2931
        %v2993 = vmul.f32 %v1002, %v2935
        %v2994 = vmul.f32 %v1003, %v2931
        %v2995 = vmul.f32 %v1004, %v2935
        %v2996 = vmul.f32 %v1007, %v2931
        %v2997 = vmul.f32 %v1008, %v2935
        %v2998 = vmul.f32 %v1009, %v2931
        %v2999 = vmul.f32 %v1010, %v2935
        %v3000 = vmul.f32 %v1011, %v2931
        %v3001 = vmul.f32 %v1012, %v2935
        %v3002 = vmul.f32 %v1015, %v2931
        %v3003 = vmul.f32 %v1016, %v2935
        %v3004 = vmul.f32 %v1017, %v2931
        %v3005 = vmul.f32 %v1018, %v2935
        %v3006 = vmul.f32 %v1019, %v2931
        %v3007 = vmul.f32 %v1020, %v2935
        %v3008 = vmul.f32 %v1023, %v2931
        %v3009 = vmul.f32 %v1024, %v2935
        %v3010 = vmul.f32 %v1025, %v2931
        %v3011 = vmul.f32 %v1026, %v2935
        %v3012 = vmul.f32 %v1027, %v2931
        %v3013 = vmul.f32 %v1028, %v2935
        %v3014 = vmul.f32 %v1031, %v2931
        %v3015 = vmul.f32 %v1032, %v2935
        %v3016 = vmul.f32 %v1033, %v2931
        %v3017 = vmul.f32 %v1034, %v2935
        %v3018 = vmul.f32 %v1035, %v2931
        %v3019 = vmul.f32 %v1036, %v2935
        %v3020 = vmul.f32 %v1039, %v2931
        %v3021 = vmul.f32 %v1040, %v2935
        %v3022 = vmul.f32 %v1041, %v2931
        %v3023 = vmul.f32 %v1042, %v2935
        %v3024 = vmul.f32 %v1043, %v2931
        %v3025 = vmul.f32 %v1044, %v2935
        %v3026 = vmul.f32 %v1047, %v2931
        %v3027 = vmul.f32 %v1048, %v2935
        %v3028 = vmul.f32 %v1049, %v2931
        %v3029 = vmul.f32 %v1050, %v2935
        %v3030 = vmul.f32 %v1051, %v2931
        %v3031 = vmul.f32 %v1052, %v2935
        %v3128 = vrot.slane %v2936, 2
        %v3129 = vrot.slane %v2937, 2
        %v3130 = vrot.slane %v2938, 2
        %v3131 = vsel %vm1920, %v3128, %v3130
        %v3132 = vrot.slane %v2939, 2
        %v3133 = vsel %vm1920, %v3129, %v3132
        %v3134 = vrot.slane %v2940, 2
        %v3135 = vsel %vm1920, %v3130, %v3134
        %v3136 = vrot.slane %v2941, 2
        %v3137 = vsel %vm1920, %v3132, %v3136
        %v3138 = vrot.slane %v2942, 2
        %v3139 = vrot.slane %v2943, 2
        %v3140 = vrot.slane %v2944, 2
        %v3141 = vsel %vm1920, %v3138, %v3140
        %v3142 = vrot.slane %v2945, 2
        %v3143 = vsel %vm1920, %v3139, %v3142
        %v3144 = vrot.slane %v2946, 2
        %v3145 = vsel %vm1920, %v3140, %v3144
        %v3146 = vrot.slane %v2947, 2
        %v3147 = vsel %vm1920, %v3142, %v3146
        %v3148 = vrot.slane %v2948, 2
        %v3149 = vrot.slane %v2949, 2
        %v3150 = vrot.slane %v2950, 2
        %v3151 = vsel %vm1920, %v3148, %v3150
        %v3152 = vrot.slane %v2951, 2
        %v3153 = vsel %vm1920, %v3149, %v3152
        %v3154 = vrot.slane %v2952, 2
        %v3155 = vsel %vm1920, %v3150, %v3154
        %v3156 = vrot.slane %v2953, 2
        %v3157 = vsel %vm1920, %v3152, %v3156
        %v3158 = vrot.slane %v2954, 2
        %v3159 = vrot.slane %v2955, 2
        %v3160 = vrot.slane %v2956, 2
        %v3161 = vsel %vm1920, %v3158, %v3160
        %v3162 = vrot.slane %v2957, 2
        %v3163 = vsel %vm1920, %v3159, %v3162
        %v3164 = vrot.slane %v2958, 2
        %v3165 = vsel %vm1920, %v3160, %v3164
        %v3166 = vrot.slane %v2959, 2
        %v3167 = vsel %vm1920, %v3162, %v3166
        %v3168 = vrot.slane %v2960, 2
        %v3169 = vrot.slane %v2961, 2
        %v3170 = vrot.slane %v2962, 2
        %v3171 = vsel %vm1920, %v3168, %v3170
        %v3172 = vrot.slane %v2963, 2
        %v3173 = vsel %vm1920, %v3169, %v3172
        %v3174 = vrot.slane %v2964, 2
        %v3175 = vsel %vm1920, %v3170, %v3174
        %v3176 = vrot.slane %v2965, 2
        %v3177 = vsel %vm1920, %v3172, %v3176
        %v3178 = vrot.slane %v2966, 2
        %v3179 = vrot.slane %v2967, 2
        %v3180 = vrot.slane %v2968, 2
        %v3181 = vsel %vm1920, %v3178, %v3180
        %v3182 = vrot.slane %v2969, 2
        %v3183 = vsel %vm1920, %v3179, %v3182
        %v3184 = vrot.slane %v2970, 2
        %v3185 = vsel %vm1920, %v3180, %v3184
        %v3186 = vrot.slane %v2971, 2
        %v3187 = vsel %vm1920, %v3182, %v3186
        %v3188 = vrot.slane %v2972, 2
        %v3189 = vrot.slane %v2973, 2
        %v3190 = vrot.slane %v2974, 2
        %v3191 = vsel %vm1920, %v3188, %v3190
        %v3192 = vrot.slane %v2975, 2
        %v3193 = vsel %vm1920, %v3189, %v3192
        %v3194 = vrot.slane %v2976, 2
        %v3195 = vsel %vm1920, %v3190, %v3194
        %v3196 = vrot.slane %v2977, 2
        %v3197 = vsel %vm1920, %v3192, %v3196
        %v3198 = vrot.slane %v2978, 2
        %v3199 = vrot.slane %v2979, 2
        %v3200 = vrot.slane %v2980, 2
        %v3201 = vsel %vm1920, %v3198, %v3200
        %v3202 = vrot.slane %v2981, 2
        %v3203 = vsel %vm1920, %v3199, %v3202
        %v3204 = vrot.slane %v2982, 2
        %v3205 = vsel %vm1920, %v3200, %v3204
        %v3206 = vrot.slane %v2983, 2
        %v3207 = vsel %vm1920, %v3202, %v3206
        %v3208 = vrot.slane %v2984, 2
        %v3209 = vrot.slane %v2985, 2
        %v3210 = vrot.slane %v2986, 2
        %v3211 = vsel %vm1920, %v3208, %v3210
        %v3212 = vrot.slane %v2987, 2
        %v3213 = vsel %vm1920, %v3209, %v3212
        %v3214 = vrot.slane %v2988, 2
        %v3215 = vsel %vm1920, %v3210, %v3214
        %v3216 = vrot.slane %v2989, 2
        %v3217 = vsel %vm1920, %v3212, %v3216
        %v3218 = vrot.slane %v2990, 2
        %v3219 = vrot.slane %v2991, 2
        %v3220 = vrot.slane %v2992, 2
        %v3221 = vsel %vm1920, %v3218, %v3220
        %v3222 = vrot.slane %v2993, 2
        %v3223 = vsel %vm1920, %v3219, %v3222
        %v3224 = vrot.slane %v2994, 2
        %v3225 = vsel %vm1920, %v3220, %v3224
        %v3226 = vrot.slane %v2995, 2
        %v3227 = vsel %vm1920, %v3222, %v3226
        %v3228 = vrot.slane %v2996, 2
        %v3229 = vrot.slane %v2997, 2
        %v3230 = vrot.slane %v2998, 2
        %v3231 = vsel %vm1920, %v3228, %v3230
        %v3232 = vrot.slane %v2999, 2
        %v3233 = vsel %vm1920, %v3229, %v3232
        %v3234 = vrot.slane %v3000, 2
        %v3235 = vsel %vm1920, %v3230, %v3234
        %v3236 = vrot.slane %v3001, 2
        %v3237 = vsel %vm1920, %v3232, %v3236
        %v3238 = vrot.slane %v3002, 2
        %v3239 = vrot.slane %v3003, 2
        %v3240 = vrot.slane %v3004, 2
        %v3241 = vsel %vm1920, %v3238, %v3240
        %v3242 = vrot.slane %v3005, 2
        %v3243 = vsel %vm1920, %v3239, %v3242
        %v3244 = vrot.slane %v3006, 2
        %v3245 = vsel %vm1920, %v3240, %v3244
        %v3246 = vrot.slane %v3007, 2
        %v3247 = vsel %vm1920, %v3242, %v3246
        %v3248 = vrot.slane %v3008, 2
        %v3249 = vrot.slane %v3009, 2
        %v3250 = vrot.slane %v3010, 2
        %v3251 = vsel %vm1920, %v3248, %v3250
        %v3252 = vrot.slane %v3011, 2
        %v3253 = vsel %vm1920, %v3249, %v3252
        %v3254 = vrot.slane %v3012, 2
        %v3255 = vsel %vm1920, %v3250, %v3254
        %v3256 = vrot.slane %v3013, 2
        %v3257 = vsel %vm1920, %v3252, %v3256
        %v3258 = vrot.slane %v3014, 2
        %v3259 = vrot.slane %v3015, 2
        %v3260 = vrot.slane %v3016, 2
        %v3261 = vsel %vm1920, %v3258, %v3260
        %v3262 = vrot.slane %v3017, 2
        %v3263 = vsel %vm1920, %v3259, %v3262
        %v3264 = vrot.slane %v3018, 2
        %v3265 = vsel %vm1920, %v3260, %v3264
        %v3266 = vrot.slane %v3019, 2
        %v3267 = vsel %vm1920, %v3262, %v3266
        %v3268 = vrot.slane %v3020, 2
        %v3269 = vrot.slane %v3021, 2
        %v3270 = vrot.slane %v3022, 2
        %v3271 = vsel %vm1920, %v3268, %v3270
        %v3272 = vrot.slane %v3023, 2
        %v3273 = vsel %vm1920, %v3269, %v3272
        %v3274 = vrot.slane %v3024, 2
        %v3275 = vsel %vm1920, %v3270, %v3274
        %v3276 = vrot.slane %v3025, 2
        %v3277 = vsel %vm1920, %v3272, %v3276
        %v3278 = vrot.slane %v3026, 2
        %v3279 = vrot.slane %v3027, 2
        %v3280 = vrot.slane %v3028, 2
        %v3281 = vsel %vm1920, %v3278, %v3280
        %v3282 = vrot.slane %v3029, 2
        %v3283 = vsel %vm1920, %v3279, %v3282
        %v3284 = vrot.slane %v3030, 2
        %v3285 = vsel %vm1920, %v3280, %v3284
        %v3286 = vrot.slane %v3031, 2
        %v3287 = vsel %vm1920, %v3282, %v3286
        %v3384 = vadd.f32 %v2822, %v3128
        %v3385 = vadd.f32 %v2823, %v3129
        %v3386 = vadd.f32 %v2824, %v3131
        %v3387 = vadd.f32 %v2825, %v3133
        %v3388 = vadd.f32 %v2826, %v3135
        %v3389 = vadd.f32 %v2827, %v3137
        %v3390 = vadd.f32 %v2828, %v3138
        %v3391 = vadd.f32 %v2829, %v3139
        %v3392 = vadd.f32 %v2830, %v3141
        %v3393 = vadd.f32 %v2831, %v3143
        %v3394 = vadd.f32 %v2832, %v3145
        %v3395 = vadd.f32 %v2833, %v3147
        %v3396 = vadd.f32 %v2834, %v3148
        %v3397 = vadd.f32 %v2835, %v3149
        %v3398 = vadd.f32 %v2836, %v3151
        %v3399 = vadd.f32 %v2837, %v3153
        %v3400 = vadd.f32 %v2838, %v3155
        %v3401 = vadd.f32 %v2839, %v3157
        %v3402 = vadd.f32 %v2840, %v3158
        %v3403 = vadd.f32 %v2841, %v3159
        %v3404 = vadd.f32 %v2842, %v3161
        %v3405 = vadd.f32 %v2843, %v3163
        %v3406 = vadd.f32 %v2844, %v3165
        %v3407 = vadd.f32 %v2845, %v3167
        %v3408 = vadd.f32 %v2846, %v3168
        %v3409 = vadd.f32 %v2847, %v3169
        %v3410 = vadd.f32 %v2848, %v3171
        %v3411 = vadd.f32 %v2849, %v3173
        %v3412 = vadd.f32 %v2850, %v3175
        %v3413 = vadd.f32 %v2851, %v3177
        %v3414 = vadd.f32 %v2852, %v3178
        %v3415 = vadd.f32 %v2853, %v3179
        %v3416 = vadd.f32 %v2854, %v3181
        %v3417 = vadd.f32 %v2855, %v3183
        %v3418 = vadd.f32 %v2856, %v3185
        %v3419 = vadd.f32 %v2857, %v3187
        %v3420 = vadd.f32 %v2858, %v3188
        %v3421 = vadd.f32 %v2859, %v3189
        %v3422 = vadd.f32 %v2860, %v3191
        %v3423 = vadd.f32 %v2861, %v3193
        %v3424 = vadd.f32 %v2862, %v3195
        %v3425 = vadd.f32 %v2863, %v3197
        %v3426 = vadd.f32 %v2864, %v3198
        %v3427 = vadd.f32 %v2865, %v3199
        %v3428 = vadd.f32 %v2866, %v3201
        %v3429 = vadd.f32 %v2867, %v3203
        %v3430 = vadd.f32 %v2868, %v3205
        %v3431 = vadd.f32 %v2869, %v3207
        %v3432 = vadd.f32 %v2870, %v3208
        %v3433 = vadd.f32 %v2871, %v3209
        %v3434 = vadd.f32 %v2872, %v3211
        %v3435 = vadd.f32 %v2873, %v3213
        %v3436 = vadd.f32 %v2874, %v3215
        %v3437 = vadd.f32 %v2875, %v3217
        %v3438 = vadd.f32 %v2876, %v3218
        %v3439 = vadd.f32 %v2877, %v3219
        %v3440 = vadd.f32 %v2878, %v3221
        %v3441 = vadd.f32 %v2879, %v3223
        %v3442 = vadd.f32 %v2880, %v3225
        %v3443 = vadd.f32 %v2881, %v3227
        %v3444 = vadd.f32 %v2882, %v3228
        %v3445 = vadd.f32 %v2883, %v3229
        %v3446 = vadd.f32 %v2884, %v3231
        %v3447 = vadd.f32 %v2885, %v3233
        %v3448 = vadd.f32 %v2886, %v3235
        %v3449 = vadd.f32 %v2887, %v3237
        %v3450 = vadd.f32 %v2888, %v3238
        %v3451 = vadd.f32 %v2889, %v3239
        %v3452 = vadd.f32 %v2890, %v3241
        %v3453 = vadd.f32 %v2891, %v3243
        %v3454 = vadd.f32 %v2892, %v3245
        %v3455 = vadd.f32 %v2893, %v3247
        %v3456 = vadd.f32 %v2894, %v3248
        %v3457 = vadd.f32 %v2895, %v3249
        %v3458 = vadd.f32 %v2896, %v3251
        %v3459 = vadd.f32 %v2897, %v3253
        %v3460 = vadd.f32 %v2898, %v3255
        %v3461 = vadd.f32 %v2899, %v3257
        %v3462 = vadd.f32 %v2900, %v3258
        %v3463 = vadd.f32 %v2901, %v3259
        %v3464 = vadd.f32 %v2902, %v3261
        %v3465 = vadd.f32 %v2903, %v3263
        %v3466 = vadd.f32 %v2904, %v3265
        %v3467 = vadd.f32 %v2905, %v3267
        %v3468 = vadd.f32 %v2906, %v3268
        %v3469 = vadd.f32 %v2907, %v3269
        %v3470 = vadd.f32 %v2908, %v3271
        %v3471 = vadd.f32 %v2909, %v3273
        %v3472 = vadd.f32 %v2910, %v3275
        %v3473 = vadd.f32 %v2911, %v3277
        %v3474 = vadd.f32 %v2912, %v3278
        %v3475 = vadd.f32 %v2913, %v3279
        %v3476 = vadd.f32 %v2914, %v3281
        %v3477 = vadd.f32 %v2915, %v3283
        %v3478 = vadd.f32 %v2916, %v3285
        %v3479 = vadd.f32 %v2917, %v3287
        %v3481 = vlaneseq
        %v3482 = vshrl.u32 %v3481, 7
        %v3483 = vsub.s32 0, %v3482
        %v3484 = vrot.slane %v1063, %v3483
        %v3485 = vlaneseq
        %v3486 = vshrl.u32 %v3485, 7
        %v3487 = vsub.s32 4, %v3486
        %v3488 = vrot.slane %v1063, %v3487
        %v3491 = vlaneseq
        %v3492 = vshrl.u32 %v3491, 7
        %v3493 = vsub.s32 0, %v3492
        %v3494 = vrot.slane %v3484, %v3493
        %v3495 = vlaneseq
        %v3496 = vshrl.u32 %v3495, 7
        %v3497 = vsub.s32 0, %v3496
        %v3498 = vrot.slane %v3488, %v3497
        %v3499 = vmul.f32 %v933, %v3494
        %v3500 = vmul.f32 %v934, %v3498
        %v3501 = vmul.f32 %v935, %v3494
        %v3502 = vmul.f32 %v936, %v3498
        %v3503 = vmul.f32 %v937, %v3494
        %v3504 = vmul.f32 %v938, %v3498
        %v3505 = vmul.f32 %v941, %v3494
        %v3506 = vmul.f32 %v942, %v3498
        %v3507 = vmul.f32 %v943, %v3494
        %v3508 = vmul.f32 %v944, %v3498
        %v3509 = vmul.f32 %v945, %v3494
        %v3510 = vmul.f32 %v946, %v3498
        %v3511 = vmul.f32 %v949, %v3494
        %v3512 = vmul.f32 %v950, %v3498
        %v3513 = vmul.f32 %v951, %v3494
        %v3514 = vmul.f32 %v952, %v3498
        %v3515 = vmul.f32 %v953, %v3494
        %v3516 = vmul.f32 %v954, %v3498
        %v3517 = vmul.f32 %v957, %v3494
        %v3518 = vmul.f32 %v958, %v3498
        %v3519 = vmul.f32 %v959, %v3494
        %v3520 = vmul.f32 %v960, %v3498
        %v3521 = vmul.f32 %v961, %v3494
        %v3522 = vmul.f32 %v962, %v3498
        %v3523 = vmul.f32 %v965, %v3494
        %v3524 = vmul.f32 %v966, %v3498
        %v3525 = vmul.f32 %v967, %v3494
        %v3526 = vmul.f32 %v968, %v3498
        %v3527 = vmul.f32 %v969, %v3494
        %v3528 = vmul.f32 %v970, %v3498
        %v3529 = vmul.f32 %v973, %v3494
        %v3530 = vmul.f32 %v974, %v3498
        %v3531 = vmul.f32 %v975, %v3494
        %v3532 = vmul.f32 %v976, %v3498
        %v3533 = vmul.f32 %v977, %v3494
        %v3534 = vmul.f32 %v978, %v3498
        %v3535 = vmul.f32 %v981, %v3494
        %v3536 = vmul.f32 %v982, %v3498
        %v3537 = vmul.f32 %v983, %v3494
        %v3538 = vmul.f32 %v984, %v3498
        %v3539 = vmul.f32 %v985, %v3494
        %v3540 = vmul.f32 %v986, %v3498
        %v3541 = vmul.f32 %v989, %v3494
        %v3542 = vmul.f32 %v990, %v3498
        %v3543 = vmul.f32 %v991, %v3494
        %v3544 = vmul.f32 %v992, %v3498
        %v3545 = vmul.f32 %v993, %v3494
        %v3546 = vmul.f32 %v994, %v3498
        %v3547 = vmul.f32 %v997, %v3494
        %v3548 = vmul.f32 %v998, %v3498
        %v3549 = vmul.f32 %v999, %v3494
        %v3550 = vmul.f32 %v1000, %v3498
        %v3551 = vmul.f32 %v1001, %v3494
        %v3552 = vmul.f32 %v1002, %v3498
        %v3553 = vmul.f32 %v1005, %v3494
        %v3554 = vmul.f32 %v1006, %v3498
        %v3555 = vmul.f32 %v1007, %v3494
        %v3556 = vmul.f32 %v1008, %v3498
        %v3557 = vmul.f32 %v1009, %v3494
        %v3558 = vmul.f32 %v1010, %v3498
        %v3559 = vmul.f32 %v1013, %v3494
        %v3560 = vmul.f32 %v1014, %v3498
        %v3561 = vmul.f32 %v1015, %v3494
        %v3562 = vmul.f32 %v1016, %v3498
        %v3563 = vmul.f32 %v1017, %v3494
        %v3564 = vmul.f32 %v1018, %v3498
        %v3565 = vmul.f32 %v1021, %v3494
        %v3566 = vmul.f32 %v1022, %v3498
        %v3567 = vmul.f32 %v1023, %v3494
        %v3568 = vmul.f32 %v1024, %v3498
        %v3569 = vmul.f32 %v1025, %v3494
        %v3570 = vmul.f32 %v1026, %v3498
        %v3571 = vmul.f32 %v1029, %v3494
        %v3572 = vmul.f32 %v1030, %v3498
        %v3573 = vmul.f32 %v1031, %v3494
        %v3574 = vmul.f32 %v1032, %v3498
        %v3575 = vmul.f32 %v1033, %v3494
        %v3576 = vmul.f32 %v1034, %v3498
        %v3577 = vmul.f32 %v1037, %v3494
        %v3578 = vmul.f32 %v1038, %v3498
        %v3579 = vmul.f32 %v1039, %v3494
        %v3580 = vmul.f32 %v1040, %v3498
        %v3581 = vmul.f32 %v1041, %v3494
        %v3582 = vmul.f32 %v1042, %v3498
        %v3583 = vmul.f32 %v1045, %v3494
        %v3584 = vmul.f32 %v1046, %v3498
        %v3585 = vmul.f32 %v1047, %v3494
        %v3586 = vmul.f32 %v1048, %v3498
        %v3587 = vmul.f32 %v1049, %v3494
        %v3588 = vmul.f32 %v1050, %v3498
        %v3589 = vmul.f32 %v1053, %v3494
        %v3590 = vmul.f32 %v1054, %v3498
        %v3591 = vmul.f32 %v1055, %v3494
        %v3592 = vmul.f32 %v1056, %v3498
        %v3593 = vmul.f32 %v1057, %v3494
        %v3594 = vmul.f32 %v1058, %v3498
        %v3595 = vadd.f32 %v3384, %v3499
        %v3596 = vadd.f32 %v3385, %v3500
        %v3597 = vadd.f32 %v3386, %v3501
        %v3598 = vadd.f32 %v3387, %v3502
        %v3599 = vadd.f32 %v3388, %v3503
        %v3600 = vadd.f32 %v3389, %v3504
        %v3601 = vadd.f32 %v3390, %v3505
        %v3602 = vadd.f32 %v3391, %v3506
        %v3603 = vadd.f32 %v3392, %v3507
        %v3604 = vadd.f32 %v3393, %v3508
        %v3605 = vadd.f32 %v3394, %v3509
        %v3606 = vadd.f32 %v3395, %v3510
        %v3607 = vadd.f32 %v3396, %v3511
        %v3608 = vadd.f32 %v3397, %v3512
        %v3609 = vadd.f32 %v3398, %v3513
        %v3610 = vadd.f32 %v3399, %v3514
        %v3611 = vadd.f32 %v3400, %v3515
        %v3612 = vadd.f32 %v3401, %v3516
        %v3613 = vadd.f32 %v3402, %v3517
        %v3614 = vadd.f32 %v3403, %v3518
        %v3615 = vadd.f32 %v3404, %v3519
        %v3616 = vadd.f32 %v3405, %v3520
        %v3617 = vadd.f32 %v3406, %v3521
        %v3618 = vadd.f32 %v3407, %v3522
        %v3619 = vadd.f32 %v3408, %v3523
        %v3620 = vadd.f32 %v3409, %v3524
        %v3621 = vadd.f32 %v3410, %v3525
        %v3622 = vadd.f32 %v3411, %v3526
        %v3623 = vadd.f32 %v3412, %v3527
        %v3624 = vadd.f32 %v3413, %v3528
        %v3625 = vadd.f32 %v3414, %v3529
        %v3626 = vadd.f32 %v3415, %v3530
        %v3627 = vadd.f32 %v3416, %v3531
        %v3628 = vadd.f32 %v3417, %v3532
        %v3629 = vadd.f32 %v3418, %v3533
        %v3630 = vadd.f32 %v3419, %v3534
        %v3631 = vadd.f32 %v3420, %v3535
        %v3632 = vadd.f32 %v3421, %v3536
        %v3633 = vadd.f32 %v3422, %v3537
        %v3634 = vadd.f32 %v3423, %v3538
        %v3635 = vadd.f32 %v3424, %v3539
        %v3636 = vadd.f32 %v3425, %v3540
        %v3637 = vadd.f32 %v3426, %v3541
        %v3638 = vadd.f32 %v3427, %v3542
        %v3639 = vadd.f32 %v3428, %v3543
        %v3640 = vadd.f32 %v3429, %v3544
        %v3641 = vadd.f32 %v3430, %v3545
        %v3642 = vadd.f32 %v3431, %v3546
        %v3643 = vadd.f32 %v3432, %v3547
        %v3644 = vadd.f32 %v3433, %v3548
        %v3645 = vadd.f32 %v3434, %v3549
        %v3646 = vadd.f32 %v3435, %v3550
        %v3647 = vadd.f32 %v3436, %v3551
        %v3648 = vadd.f32 %v3437, %v3552
        %v3649 = vadd.f32 %v3438, %v3553
        %v3650 = vadd.f32 %v3439, %v3554
        %v3651 = vadd.f32 %v3440, %v3555
        %v3652 = vadd.f32 %v3441, %v3556
        %v3653 = vadd.f32 %v3442, %v3557
        %v3654 = vadd.f32 %v3443, %v3558
        %v3655 = vadd.f32 %v3444, %v3559
        %v3656 = vadd.f32 %v3445, %v3560
        %v3657 = vadd.f32 %v3446, %v3561
        %v3658 = vadd.f32 %v3447, %v3562
        %v3659 = vadd.f32 %v3448, %v3563
        %v3660 = vadd.f32 %v3449, %v3564
        %v3661 = vadd.f32 %v3450, %v3565
        %v3662 = vadd.f32 %v3451, %v3566
        %v3663 = vadd.f32 %v3452, %v3567
        %v3664 = vadd.f32 %v3453, %v3568
        %v3665 = vadd.f32 %v3454, %v3569
        %v3666 = vadd.f32 %v3455, %v3570
        %v3667 = vadd.f32 %v3456, %v3571
        %v3668 = vadd.f32 %v3457, %v3572
        %v3669 = vadd.f32 %v3458, %v3573
        %v3670 = vadd.f32 %v3459, %v3574
        %v3671 = vadd.f32 %v3460, %v3575
        %v3672 = vadd.f32 %v3461, %v3576
        %v3673 = vadd.f32 %v3462, %v3577
        %v3674 = vadd.f32 %v3463, %v3578
        %v3675 = vadd.f32 %v3464, %v3579
        %v3676 = vadd.f32 %v3465, %v3580
        %v3677 = vadd.f32 %v3466, %v3581
        %v3678 = vadd.f32 %v3467, %v3582
        %v3679 = vadd.f32 %v3468, %v3583
        %v3680 = vadd.f32 %v3469, %v3584
        %v3681 = vadd.f32 %v3470, %v3585
        %v3682 = vadd.f32 %v3471, %v3586
        %v3683 = vadd.f32 %v3472, %v3587
        %v3684 = vadd.f32 %v3473, %v3588
        %v3685 = vadd.f32 %v3474, %v3589
        %v3686 = vadd.f32 %v3475, %v3590
        %v3687 = vadd.f32 %v3476, %v3591
        %v3688 = vadd.f32 %v3477, %v3592
        %v3689 = vadd.f32 %v3478, %v3593
        %v3690 = vadd.f32 %v3479, %v3594
        %v3691 = vlaneseq
        %v3692 = vshrl.u32 %v3691, 7
        %v3693 = vsub.s32 1, %v3692
        %v3694 = vrot.slane %v1063, %v3693
        %v3695 = vlaneseq
        %v3696 = vshrl.u32 %v3695, 7
        %v3697 = vsub.s32 5, %v3696
        %v3698 = vrot.slane %v1063, %v3697
        %v3701 = vlaneseq
        %v3702 = vshrl.u32 %v3701, 7
        %v3703 = vsub.s32 1, %v3702
        %v3704 = vrot.slane %v3694, %v3703
        %v3705 = vlaneseq
        %v3706 = vshrl.u32 %v3705, 7
        %v3707 = vsub.s32 1, %v3706
        %v3708 = vrot.slane %v3698, %v3707
        %v3709 = vmul.f32 %v935, %v3704
        %v3710 = vmul.f32 %v936, %v3708
        %v3711 = vmul.f32 %v937, %v3704
        %v3712 = vmul.f32 %v938, %v3708
        %v3713 = vmul.f32 %v943, %v3704
        %v3714 = vmul.f32 %v944, %v3708
        %v3715 = vmul.f32 %v945, %v3704
        %v3716 = vmul.f32 %v946, %v3708
        %v3717 = vmul.f32 %v951, %v3704
        %v3718 = vmul.f32 %v952, %v3708
        %v3719 = vmul.f32 %v953, %v3704
        %v3720 = vmul.f32 %v954, %v3708
        %v3721 = vmul.f32 %v959, %v3704
        %v3722 = vmul.f32 %v960, %v3708
        %v3723 = vmul.f32 %v961, %v3704
        %v3724 = vmul.f32 %v962, %v3708
        %v3725 = vmul.f32 %v967, %v3704
        %v3726 = vmul.f32 %v968, %v3708
        %v3727 = vmul.f32 %v969, %v3704
        %v3728 = vmul.f32 %v970, %v3708
        %v3729 = vmul.f32 %v975, %v3704
        %v3730 = vmul.f32 %v976, %v3708
        %v3731 = vmul.f32 %v977, %v3704
        %v3732 = vmul.f32 %v978, %v3708
        %v3733 = vmul.f32 %v983, %v3704
        %v3734 = vmul.f32 %v984, %v3708
        %v3735 = vmul.f32 %v985, %v3704
        %v3736 = vmul.f32 %v986, %v3708
        %v3737 = vmul.f32 %v991, %v3704
        %v3738 = vmul.f32 %v992, %v3708
        %v3739 = vmul.f32 %v993, %v3704
        %v3740 = vmul.f32 %v994, %v3708
        %v3741 = vmul.f32 %v999, %v3704
        %v3742 = vmul.f32 %v1000, %v3708
        %v3743 = vmul.f32 %v1001, %v3704
        %v3744 = vmul.f32 %v1002, %v3708
        %v3745 = vmul.f32 %v1007, %v3704
        %v3746 = vmul.f32 %v1008, %v3708
        %v3747 = vmul.f32 %v1009, %v3704
        %v3748 = vmul.f32 %v1010, %v3708
        %v3749 = vmul.f32 %v1015, %v3704
        %v3750 = vmul.f32 %v1016, %v3708
        %v3751 = vmul.f32 %v1017, %v3704
        %v3752 = vmul.f32 %v1018, %v3708
        %v3753 = vmul.f32 %v1023, %v3704
        %v3754 = vmul.f32 %v1024, %v3708
        %v3755 = vmul.f32 %v1025, %v3704
        %v3756 = vmul.f32 %v1026, %v3708
        %v3757 = vmul.f32 %v1031, %v3704
        %v3758 = vmul.f32 %v1032, %v3708
        %v3759 = vmul.f32 %v1033, %v3704
        %v3760 = vmul.f32 %v1034, %v3708
        %v3761 = vmul.f32 %v1039, %v3704
        %v3762 = vmul.f32 %v1040, %v3708
        %v3763 = vmul.f32 %v1041, %v3704
        %v3764 = vmul.f32 %v1042, %v3708
        %v3765 = vmul.f32 %v1047, %v3704
        %v3766 = vmul.f32 %v1048, %v3708
        %v3767 = vmul.f32 %v1049, %v3704
        %v3768 = vmul.f32 %v1050, %v3708
        %v3769 = vmul.f32 %v1055, %v3704
        %v3770 = vmul.f32 %v1056, %v3708
        %v3771 = vmul.f32 %v1057, %v3704
        %v3772 = vmul.f32 %v1058, %v3708
        %v3837 = vrot.slane %v3709, 1
        %v3838 = vrot.slane %v3710, 1
        %v3839 = vrot.slane %v3711, 1
        %v3840 = vsel %vm1421, %v3837, %v3839
        %v3841 = vrot.slane %v3712, 1
        %v3842 = vsel %vm1421, %v3838, %v3841
        %v3843 = vrot.slane %v3713, 1
        %v3844 = vrot.slane %v3714, 1
        %v3845 = vrot.slane %v3715, 1
        %v3846 = vsel %vm1421, %v3843, %v3845
        %v3847 = vrot.slane %v3716, 1
        %v3848 = vsel %vm1421, %v3844, %v3847
        %v3849 = vrot.slane %v3717, 1
        %v3850 = vrot.slane %v3718, 1
        %v3851 = vrot.slane %v3719, 1
        %v3852 = vsel %vm1421, %v3849, %v3851
        %v3853 = vrot.slane %v3720, 1
        %v3854 = vsel %vm1421, %v3850, %v3853
        %v3855 = vrot.slane %v3721, 1
        %v3856 = vrot.slane %v3722, 1
        %v3857 = vrot.slane %v3723, 1
        %v3858 = vsel %vm1421, %v3855, %v3857
        %v3859 = vrot.slane %v3724, 1
        %v3860 = vsel %vm1421, %v3856, %v3859
        %v3861 = vrot.slane %v3725, 1
        %v3862 = vrot.slane %v3726, 1
        %v3863 = vrot.slane %v3727, 1
        %v3864 = vsel %vm1421, %v3861, %v3863
        %v3865 = vrot.slane %v3728, 1
        %v3866 = vsel %vm1421, %v3862, %v3865
        %v3867 = vrot.slane %v3729, 1
        %v3868 = vrot.slane %v3730, 1
        %v3869 = vrot.slane %v3731, 1
        %v3870 = vsel %vm1421, %v3867, %v3869
        %v3871 = vrot.slane %v3732, 1
        %v3872 = vsel %vm1421, %v3868, %v3871
        %v3873 = vrot.slane %v3733, 1
        %v3874 = vrot.slane %v3734, 1
        %v3875 = vrot.slane %v3735, 1
        %v3876 = vsel %vm1421, %v3873, %v3875
        %v3877 = vrot.slane %v3736, 1
        %v3878 = vsel %vm1421, %v3874, %v3877
        %v3879 = vrot.slane %v3737, 1
        %v3880 = vrot.slane %v3738, 1
        %v3881 = vrot.slane %v3739, 1
        %v3882 = vsel %vm1421, %v3879, %v3881
        %v3883 = vrot.slane %v3740, 1
        %v3884 = vsel %vm1421, %v3880, %v3883
        %v3885 = vrot.slane %v3741, 1
        %v3886 = vrot.slane %v3742, 1
        %v3887 = vrot.slane %v3743, 1
        %v3888 = vsel %vm1421, %v3885, %v3887
        %v3889 = vrot.slane %v3744, 1
        %v3890 = vsel %vm1421, %v3886, %v3889
        %v3891 = vrot.slane %v3745, 1
        %v3892 = vrot.slane %v3746, 1
        %v3893 = vrot.slane %v3747, 1
        %v3894 = vsel %vm1421, %v3891, %v3893
        %v3895 = vrot.slane %v3748, 1
        %v3896 = vsel %vm1421, %v3892, %v3895
        %v3897 = vrot.slane %v3749, 1
        %v3898 = vrot.slane %v3750, 1
        %v3899 = vrot.slane %v3751, 1
        %v3900 = vsel %vm1421, %v3897, %v3899
        %v3901 = vrot.slane %v3752, 1
        %v3902 = vsel %vm1421, %v3898, %v3901
        %v3903 = vrot.slane %v3753, 1
        %v3904 = vrot.slane %v3754, 1
        %v3905 = vrot.slane %v3755, 1
        %v3906 = vsel %vm1421, %v3903, %v3905
        %v3907 = vrot.slane %v3756, 1
        %v3908 = vsel %vm1421, %v3904, %v3907
        %v3909 = vrot.slane %v3757, 1
        %v3910 = vrot.slane %v3758, 1
        %v3911 = vrot.slane %v3759, 1
        %v3912 = vsel %vm1421, %v3909, %v3911
        %v3913 = vrot.slane %v3760, 1
        %v3914 = vsel %vm1421, %v3910, %v3913
        %v3915 = vrot.slane %v3761, 1
        %v3916 = vrot.slane %v3762, 1
        %v3917 = vrot.slane %v3763, 1
        %v3918 = vsel %vm1421, %v3915, %v3917
        %v3919 = vrot.slane %v3764, 1
        %v3920 = vsel %vm1421, %v3916, %v3919
        %v3921 = vrot.slane %v3765, 1
        %v3922 = vrot.slane %v3766, 1
        %v3923 = vrot.slane %v3767, 1
        %v3924 = vsel %vm1421, %v3921, %v3923
        %v3925 = vrot.slane %v3768, 1
        %v3926 = vsel %vm1421, %v3922, %v3925
        %v3927 = vrot.slane %v3769, 1
        %v3928 = vrot.slane %v3770, 1
        %v3929 = vrot.slane %v3771, 1
        %v3930 = vsel %vm1421, %v3927, %v3929
        %v3931 = vrot.slane %v3772, 1
        %v3932 = vsel %vm1421, %v3928, %v3931
        %v4029 = vadd.f32 %v3595, %v3837
        %v4030 = vadd.f32 %v3596, %v3838
        %v4031 = vadd.f32 %v3597, %v3840
        %v4032 = vadd.f32 %v3598, %v3842
        %v4033 = vadd.f32 %v3599, %v3839
        %v4034 = vadd.f32 %v3600, %v3841
        %v4035 = vadd.f32 %v3601, %v3843
        %v4036 = vadd.f32 %v3602, %v3844
        %v4037 = vadd.f32 %v3603, %v3846
        %v4038 = vadd.f32 %v3604, %v3848
        %v4039 = vadd.f32 %v3605, %v3845
        %v4040 = vadd.f32 %v3606, %v3847
        %v4041 = vadd.f32 %v3607, %v3849
        %v4042 = vadd.f32 %v3608, %v3850
        %v4043 = vadd.f32 %v3609, %v3852
        %v4044 = vadd.f32 %v3610, %v3854
        %v4045 = vadd.f32 %v3611, %v3851
        %v4046 = vadd.f32 %v3612, %v3853
        %v4047 = vadd.f32 %v3613, %v3855
        %v4048 = vadd.f32 %v3614, %v3856
        %v4049 = vadd.f32 %v3615, %v3858
        %v4050 = vadd.f32 %v3616, %v3860
        %v4051 = vadd.f32 %v3617, %v3857
        %v4052 = vadd.f32 %v3618, %v3859
        %v4053 = vadd.f32 %v3619, %v3861
        %v4054 = vadd.f32 %v3620, %v3862
        %v4055 = vadd.f32 %v3621, %v3864
        %v4056 = vadd.f32 %v3622, %v3866
        %v4057 = vadd.f32 %v3623, %v3863
        %v4058 = vadd.f32 %v3624, %v3865
        %v4059 = vadd.f32 %v3625, %v3867
        %v4060 = vadd.f32 %v3626, %v3868
        %v4061 = vadd.f32 %v3627, %v3870
        %v4062 = vadd.f32 %v3628, %v3872
        %v4063 = vadd.f32 %v3629, %v3869
        %v4064 = vadd.f32 %v3630, %v3871
        %v4065 = vadd.f32 %v3631, %v3873
        %v4066 = vadd.f32 %v3632, %v3874
        %v4067 = vadd.f32 %v3633, %v3876
        %v4068 = vadd.f32 %v3634, %v3878
        %v4069 = vadd.f32 %v3635, %v3875
        %v4070 = vadd.f32 %v3636, %v3877
        %v4071 = vadd.f32 %v3637, %v3879
        %v4072 = vadd.f32 %v3638, %v3880
        %v4073 = vadd.f32 %v3639, %v3882
        %v4074 = vadd.f32 %v3640, %v3884
        %v4075 = vadd.f32 %v3641, %v3881
        %v4076 = vadd.f32 %v3642, %v3883
        %v4077 = vadd.f32 %v3643, %v3885
        %v4078 = vadd.f32 %v3644, %v3886
        %v4079 = vadd.f32 %v3645, %v3888
        %v4080 = vadd.f32 %v3646, %v3890
        %v4081 = vadd.f32 %v3647, %v3887
        %v4082 = vadd.f32 %v3648, %v3889
        %v4083 = vadd.f32 %v3649, %v3891
        %v4084 = vadd.f32 %v3650, %v3892
        %v4085 = vadd.f32 %v3651, %v3894
        %v4086 = vadd.f32 %v3652, %v3896
        %v4087 = vadd.f32 %v3653, %v3893
        %v4088 = vadd.f32 %v3654, %v3895
        %v4089 = vadd.f32 %v3655, %v3897
        %v4090 = vadd.f32 %v3656, %v3898
        %v4091 = vadd.f32 %v3657, %v3900
        %v4092 = vadd.f32 %v3658, %v3902
        %v4093 = vadd.f32 %v3659, %v3899
        %v4094 = vadd.f32 %v3660, %v3901
        %v4095 = vadd.f32 %v3661, %v3903
        %v4096 = vadd.f32 %v3662, %v3904
        %v4097 = vadd.f32 %v3663, %v3906
        %v4098 = vadd.f32 %v3664, %v3908
        %v4099 = vadd.f32 %v3665, %v3905
        %v4100 = vadd.f32 %v3666, %v3907
        %v4101 = vadd.f32 %v3667, %v3909
        %v4102 = vadd.f32 %v3668, %v3910
        %v4103 = vadd.f32 %v3669, %v3912
        %v4104 = vadd.f32 %v3670, %v3914
        %v4105 = vadd.f32 %v3671, %v3911
        %v4106 = vadd.f32 %v3672, %v3913
        %v4107 = vadd.f32 %v3673, %v3915
        %v4108 = vadd.f32 %v3674, %v3916
        %v4109 = vadd.f32 %v3675, %v3918
        %v4110 = vadd.f32 %v3676, %v3920
        %v4111 = vadd.f32 %v3677, %v3917
        %v4112 = vadd.f32 %v3678, %v3919
        %v4113 = vadd.f32 %v3679, %v3921
        %v4114 = vadd.f32 %v3680, %v3922
        %v4115 = vadd.f32 %v3681, %v3924
        %v4116 = vadd.f32 %v3682, %v3926
        %v4117 = vadd.f32 %v3683, %v3923
        %v4118 = vadd.f32 %v3684, %v3925
        %v4119 = vadd.f32 %v3685, %v3927
        %v4120 = vadd.f32 %v3686, %v3928
        %v4121 = vadd.f32 %v3687, %v3930
        %v4122 = vadd.f32 %v3688, %v3932
        %v4123 = vadd.f32 %v3689, %v3929
        %v4124 = vadd.f32 %v3690, %v3931
        %v4125 = vlaneseq
        %v4126 = vshrl.u32 %v4125, 7
        %v4127 = vsub.s32 2, %v4126
        %v4128 = vrot.slane %v1063, %v4127
        %v4129 = vlaneseq
        %v4130 = vshrl.u32 %v4129, 7
        %v4131 = vsub.s32 6, %v4130
        %v4132 = vrot.slane %v1063, %v4131
        %v4135 = vlaneseq
        %v4136 = vshrl.u32 %v4135, 7
        %v4137 = vsub.s32 2, %v4136
        %v4138 = vrot.slane %v4128, %v4137
        %v4139 = vlaneseq
        %v4140 = vshrl.u32 %v4139, 7
        %v4141 = vsub.s32 2, %v4140
        %v4142 = vrot.slane %v4132, %v4141
        %v4143 = vmul.f32 %v935, %v4138
        %v4144 = vmul.f32 %v936, %v4142
        %v4145 = vmul.f32 %v937, %v4138
        %v4146 = vmul.f32 %v938, %v4142
        %v4147 = vmul.f32 %v939, %v4138
        %v4148 = vmul.f32 %v940, %v4142
        %v4149 = vmul.f32 %v943, %v4138
        %v4150 = vmul.f32 %v944, %v4142
        %v4151 = vmul.f32 %v945, %v4138
        %v4152 = vmul.f32 %v946, %v4142
        %v4153 = vmul.f32 %v947, %v4138
        %v4154 = vmul.f32 %v948, %v4142
        %v4155 = vmul.f32 %v951, %v4138
        %v4156 = vmul.f32 %v952, %v4142
        %v4157 = vmul.f32 %v953, %v4138
        %v4158 = vmul.f32 %v954, %v4142
        %v4159 = vmul.f32 %v955, %v4138
        %v4160 = vmul.f32 %v956, %v4142
        %v4161 = vmul.f32 %v959, %v4138
        %v4162 = vmul.f32 %v960, %v4142
        %v4163 = vmul.f32 %v961, %v4138
        %v4164 = vmul.f32 %v962, %v4142
        %v4165 = vmul.f32 %v963, %v4138
        %v4166 = vmul.f32 %v964, %v4142
        %v4167 = vmul.f32 %v967, %v4138
        %v4168 = vmul.f32 %v968, %v4142
        %v4169 = vmul.f32 %v969, %v4138
        %v4170 = vmul.f32 %v970, %v4142
        %v4171 = vmul.f32 %v971, %v4138
        %v4172 = vmul.f32 %v972, %v4142
        %v4173 = vmul.f32 %v975, %v4138
        %v4174 = vmul.f32 %v976, %v4142
        %v4175 = vmul.f32 %v977, %v4138
        %v4176 = vmul.f32 %v978, %v4142
        %v4177 = vmul.f32 %v979, %v4138
        %v4178 = vmul.f32 %v980, %v4142
        %v4179 = vmul.f32 %v983, %v4138
        %v4180 = vmul.f32 %v984, %v4142
        %v4181 = vmul.f32 %v985, %v4138
        %v4182 = vmul.f32 %v986, %v4142
        %v4183 = vmul.f32 %v987, %v4138
        %v4184 = vmul.f32 %v988, %v4142
        %v4185 = vmul.f32 %v991, %v4138
        %v4186 = vmul.f32 %v992, %v4142
        %v4187 = vmul.f32 %v993, %v4138
        %v4188 = vmul.f32 %v994, %v4142
        %v4189 = vmul.f32 %v995, %v4138
        %v4190 = vmul.f32 %v996, %v4142
        %v4191 = vmul.f32 %v999, %v4138
        %v4192 = vmul.f32 %v1000, %v4142
        %v4193 = vmul.f32 %v1001, %v4138
        %v4194 = vmul.f32 %v1002, %v4142
        %v4195 = vmul.f32 %v1003, %v4138
        %v4196 = vmul.f32 %v1004, %v4142
        %v4197 = vmul.f32 %v1007, %v4138
        %v4198 = vmul.f32 %v1008, %v4142
        %v4199 = vmul.f32 %v1009, %v4138
        %v4200 = vmul.f32 %v1010, %v4142
        %v4201 = vmul.f32 %v1011, %v4138
        %v4202 = vmul.f32 %v1012, %v4142
        %v4203 = vmul.f32 %v1015, %v4138
        %v4204 = vmul.f32 %v1016, %v4142
        %v4205 = vmul.f32 %v1017, %v4138
        %v4206 = vmul.f32 %v1018, %v4142
        %v4207 = vmul.f32 %v1019, %v4138
        %v4208 = vmul.f32 %v1020, %v4142
        %v4209 = vmul.f32 %v1023, %v4138
        %v4210 = vmul.f32 %v1024, %v4142
        %v4211 = vmul.f32 %v1025, %v4138
        %v4212 = vmul.f32 %v1026, %v4142
        %v4213 = vmul.f32 %v1027, %v4138
        %v4214 = vmul.f32 %v1028, %v4142
        %v4215 = vmul.f32 %v1031, %v4138
        %v4216 = vmul.f32 %v1032, %v4142
        %v4217 = vmul.f32 %v1033, %v4138
        %v4218 = vmul.f32 %v1034, %v4142
        %v4219 = vmul.f32 %v1035, %v4138
        %v4220 = vmul.f32 %v1036, %v4142
        %v4221 = vmul.f32 %v1039, %v4138
        %v4222 = vmul.f32 %v1040, %v4142
        %v4223 = vmul.f32 %v1041, %v4138
        %v4224 = vmul.f32 %v1042, %v4142
        %v4225 = vmul.f32 %v1043, %v4138
        %v4226 = vmul.f32 %v1044, %v4142
        %v4227 = vmul.f32 %v1047, %v4138
        %v4228 = vmul.f32 %v1048, %v4142
        %v4229 = vmul.f32 %v1049, %v4138
        %v4230 = vmul.f32 %v1050, %v4142
        %v4231 = vmul.f32 %v1051, %v4138
        %v4232 = vmul.f32 %v1052, %v4142
        %v4233 = vmul.f32 %v1055, %v4138
        %v4234 = vmul.f32 %v1056, %v4142
        %v4235 = vmul.f32 %v1057, %v4138
        %v4236 = vmul.f32 %v1058, %v4142
        %v4237 = vmul.f32 %v1059, %v4138
        %v4238 = vmul.f32 %v1060, %v4142
        %v4335 = vrot.slane %v4143, 2
        %v4336 = vrot.slane %v4144, 2
        %v4337 = vrot.slane %v4145, 2
        %v4338 = vsel %vm1920, %v4335, %v4337
        %v4339 = vrot.slane %v4146, 2
        %v4340 = vsel %vm1920, %v4336, %v4339
        %v4341 = vrot.slane %v4147, 2
        %v4342 = vsel %vm1920, %v4337, %v4341
        %v4343 = vrot.slane %v4148, 2
        %v4344 = vsel %vm1920, %v4339, %v4343
        %v4345 = vrot.slane %v4149, 2
        %v4346 = vrot.slane %v4150, 2
        %v4347 = vrot.slane %v4151, 2
        %v4348 = vsel %vm1920, %v4345, %v4347
        %v4349 = vrot.slane %v4152, 2
        %v4350 = vsel %vm1920, %v4346, %v4349
        %v4351 = vrot.slane %v4153, 2
        %v4352 = vsel %vm1920, %v4347, %v4351
        %v4353 = vrot.slane %v4154, 2
        %v4354 = vsel %vm1920, %v4349, %v4353
        %v4355 = vrot.slane %v4155, 2
        %v4356 = vrot.slane %v4156, 2
        %v4357 = vrot.slane %v4157, 2
        %v4358 = vsel %vm1920, %v4355, %v4357
        %v4359 = vrot.slane %v4158, 2
        %v4360 = vsel %vm1920, %v4356, %v4359
        %v4361 = vrot.slane %v4159, 2
        %v4362 = vsel %vm1920, %v4357, %v4361
        %v4363 = vrot.slane %v4160, 2
        %v4364 = vsel %vm1920, %v4359, %v4363
        %v4365 = vrot.slane %v4161, 2
        %v4366 = vrot.slane %v4162, 2
        %v4367 = vrot.slane %v4163, 2
        %v4368 = vsel %vm1920, %v4365, %v4367
        %v4369 = vrot.slane %v4164, 2
        %v4370 = vsel %vm1920, %v4366, %v4369
        %v4371 = vrot.slane %v4165, 2
        %v4372 = vsel %vm1920, %v4367, %v4371
        %v4373 = vrot.slane %v4166, 2
        %v4374 = vsel %vm1920, %v4369, %v4373
        %v4375 = vrot.slane %v4167, 2
        %v4376 = vrot.slane %v4168, 2
        %v4377 = vrot.slane %v4169, 2
        %v4378 = vsel %vm1920, %v4375, %v4377
        %v4379 = vrot.slane %v4170, 2
        %v4380 = vsel %vm1920, %v4376, %v4379
        %v4381 = vrot.slane %v4171, 2
        %v4382 = vsel %vm1920, %v4377, %v4381
        %v4383 = vrot.slane %v4172, 2
        %v4384 = vsel %vm1920, %v4379, %v4383
        %v4385 = vrot.slane %v4173, 2
        %v4386 = vrot.slane %v4174, 2
        %v4387 = vrot.slane %v4175, 2
        %v4388 = vsel %vm1920, %v4385, %v4387
        %v4389 = vrot.slane %v4176, 2
        %v4390 = vsel %vm1920, %v4386, %v4389
        %v4391 = vrot.slane %v4177, 2
        %v4392 = vsel %vm1920, %v4387, %v4391
        %v4393 = vrot.slane %v4178, 2
        %v4394 = vsel %vm1920, %v4389, %v4393
        %v4395 = vrot.slane %v4179, 2
        %v4396 = vrot.slane %v4180, 2
        %v4397 = vrot.slane %v4181, 2
        %v4398 = vsel %vm1920, %v4395, %v4397
        %v4399 = vrot.slane %v4182, 2
        %v4400 = vsel %vm1920, %v4396, %v4399
        %v4401 = vrot.slane %v4183, 2
        %v4402 = vsel %vm1920, %v4397, %v4401
        %v4403 = vrot.slane %v4184, 2
        %v4404 = vsel %vm1920, %v4399, %v4403
        %v4405 = vrot.slane %v4185, 2
        %v4406 = vrot.slane %v4186, 2
        %v4407 = vrot.slane %v4187, 2
        %v4408 = vsel %vm1920, %v4405, %v4407
        %v4409 = vrot.slane %v4188, 2
        %v4410 = vsel %vm1920, %v4406, %v4409
        %v4411 = vrot.slane %v4189, 2
        %v4412 = vsel %vm1920, %v4407, %v4411
        %v4413 = vrot.slane %v4190, 2
        %v4414 = vsel %vm1920, %v4409, %v4413
        %v4415 = vrot.slane %v4191, 2
        %v4416 = vrot.slane %v4192, 2
        %v4417 = vrot.slane %v4193, 2
        %v4418 = vsel %vm1920, %v4415, %v4417
        %v4419 = vrot.slane %v4194, 2
        %v4420 = vsel %vm1920, %v4416, %v4419
        %v4421 = vrot.slane %v4195, 2
        %v4422 = vsel %vm1920, %v4417, %v4421
        %v4423 = vrot.slane %v4196, 2
        %v4424 = vsel %vm1920, %v4419, %v4423
        %v4425 = vrot.slane %v4197, 2
        %v4426 = vrot.slane %v4198, 2
        %v4427 = vrot.slane %v4199, 2
        %v4428 = vsel %vm1920, %v4425, %v4427
        %v4429 = vrot.slane %v4200, 2
        %v4430 = vsel %vm1920, %v4426, %v4429
        %v4431 = vrot.slane %v4201, 2
        %v4432 = vsel %vm1920, %v4427, %v4431
        %v4433 = vrot.slane %v4202, 2
        %v4434 = vsel %vm1920, %v4429, %v4433
        %v4435 = vrot.slane %v4203, 2
        %v4436 = vrot.slane %v4204, 2
        %v4437 = vrot.slane %v4205, 2
        %v4438 = vsel %vm1920, %v4435, %v4437
        %v4439 = vrot.slane %v4206, 2
        %v4440 = vsel %vm1920, %v4436, %v4439
        %v4441 = vrot.slane %v4207, 2
        %v4442 = vsel %vm1920, %v4437, %v4441
        %v4443 = vrot.slane %v4208, 2
        %v4444 = vsel %vm1920, %v4439, %v4443
        %v4445 = vrot.slane %v4209, 2
        %v4446 = vrot.slane %v4210, 2
        %v4447 = vrot.slane %v4211, 2
        %v4448 = vsel %vm1920, %v4445, %v4447
        %v4449 = vrot.slane %v4212, 2
        %v4450 = vsel %vm1920, %v4446, %v4449
        %v4451 = vrot.slane %v4213, 2
        %v4452 = vsel %vm1920, %v4447, %v4451
        %v4453 = vrot.slane %v4214, 2
        %v4454 = vsel %vm1920, %v4449, %v4453
        %v4455 = vrot.slane %v4215, 2
        %v4456 = vrot.slane %v4216, 2
        %v4457 = vrot.slane %v4217, 2
        %v4458 = vsel %vm1920, %v4455, %v4457
        %v4459 = vrot.slane %v4218, 2
        %v4460 = vsel %vm1920, %v4456, %v4459
        %v4461 = vrot.slane %v4219, 2
        %v4462 = vsel %vm1920, %v4457, %v4461
        %v4463 = vrot.slane %v4220, 2
        %v4464 = vsel %vm1920, %v4459, %v4463
        %v4465 = vrot.slane %v4221, 2
        %v4466 = vrot.slane %v4222, 2
        %v4467 = vrot.slane %v4223, 2
        %v4468 = vsel %vm1920, %v4465, %v4467
        %v4469 = vrot.slane %v4224, 2
        %v4470 = vsel %vm1920, %v4466, %v4469
        %v4471 = vrot.slane %v4225, 2
        %v4472 = vsel %vm1920, %v4467, %v4471
        %v4473 = vrot.slane %v4226, 2
        %v4474 = vsel %vm1920, %v4469, %v4473
        %v4475 = vrot.slane %v4227, 2
        %v4476 = vrot.slane %v4228, 2
        %v4477 = vrot.slane %v4229, 2
        %v4478 = vsel %vm1920, %v4475, %v4477
        %v4479 = vrot.slane %v4230, 2
        %v4480 = vsel %vm1920, %v4476, %v4479
        %v4481 = vrot.slane %v4231, 2
        %v4482 = vsel %vm1920, %v4477, %v4481
        %v4483 = vrot.slane %v4232, 2
        %v4484 = vsel %vm1920, %v4479, %v4483
        %v4485 = vrot.slane %v4233, 2
        %v4486 = vrot.slane %v4234, 2
        %v4487 = vrot.slane %v4235, 2
        %v4488 = vsel %vm1920, %v4485, %v4487
        %v4489 = vrot.slane %v4236, 2
        %v4490 = vsel %vm1920, %v4486, %v4489
        %v4491 = vrot.slane %v4237, 2
        %v4492 = vsel %vm1920, %v4487, %v4491
        %v4493 = vrot.slane %v4238, 2
        %v4494 = vsel %vm1920, %v4489, %v4493
        %v4591 = vadd.f32 %v4029, %v4335
        %v4592 = vadd.f32 %v4030, %v4336
        %v4593 = vadd.f32 %v4031, %v4338
        %v4594 = vadd.f32 %v4032, %v4340
        %v4595 = vadd.f32 %v4033, %v4342
        %v4596 = vadd.f32 %v4034, %v4344
        %v4597 = vadd.f32 %v4035, %v4345
        %v4598 = vadd.f32 %v4036, %v4346
        %v4599 = vadd.f32 %v4037, %v4348
        %v4600 = vadd.f32 %v4038, %v4350
        %v4601 = vadd.f32 %v4039, %v4352
        %v4602 = vadd.f32 %v4040, %v4354
        %v4603 = vadd.f32 %v4041, %v4355
        %v4604 = vadd.f32 %v4042, %v4356
        %v4605 = vadd.f32 %v4043, %v4358
        %v4606 = vadd.f32 %v4044, %v4360
        %v4607 = vadd.f32 %v4045, %v4362
        %v4608 = vadd.f32 %v4046, %v4364
        %v4609 = vadd.f32 %v4047, %v4365
        %v4610 = vadd.f32 %v4048, %v4366
        %v4611 = vadd.f32 %v4049, %v4368
        %v4612 = vadd.f32 %v4050, %v4370
        %v4613 = vadd.f32 %v4051, %v4372
        %v4614 = vadd.f32 %v4052, %v4374
        %v4615 = vadd.f32 %v4053, %v4375
        %v4616 = vadd.f32 %v4054, %v4376
        %v4617 = vadd.f32 %v4055, %v4378
        %v4618 = vadd.f32 %v4056, %v4380
        %v4619 = vadd.f32 %v4057, %v4382
        %v4620 = vadd.f32 %v4058, %v4384
        %v4621 = vadd.f32 %v4059, %v4385
        %v4622 = vadd.f32 %v4060, %v4386
        %v4623 = vadd.f32 %v4061, %v4388
        %v4624 = vadd.f32 %v4062, %v4390
        %v4625 = vadd.f32 %v4063, %v4392
        %v4626 = vadd.f32 %v4064, %v4394
        %v4627 = vadd.f32 %v4065, %v4395
        %v4628 = vadd.f32 %v4066, %v4396
        %v4629 = vadd.f32 %v4067, %v4398
        %v4630 = vadd.f32 %v4068, %v4400
        %v4631 = vadd.f32 %v4069, %v4402
        %v4632 = vadd.f32 %v4070, %v4404
        %v4633 = vadd.f32 %v4071, %v4405
        %v4634 = vadd.f32 %v4072, %v4406
        %v4635 = vadd.f32 %v4073, %v4408
        %v4636 = vadd.f32 %v4074, %v4410
        %v4637 = vadd.f32 %v4075, %v4412
        %v4638 = vadd.f32 %v4076, %v4414
        %v4639 = vadd.f32 %v4077, %v4415
        %v4640 = vadd.f32 %v4078, %v4416
        %v4641 = vadd.f32 %v4079, %v4418
        %v4642 = vadd.f32 %v4080, %v4420
        %v4643 = vadd.f32 %v4081, %v4422
        %v4644 = vadd.f32 %v4082, %v4424
        %v4645 = vadd.f32 %v4083, %v4425
        %v4646 = vadd.f32 %v4084, %v4426
        %v4647 = vadd.f32 %v4085, %v4428
        %v4648 = vadd.f32 %v4086, %v4430
        %v4649 = vadd.f32 %v4087, %v4432
        %v4650 = vadd.f32 %v4088, %v4434
        %v4651 = vadd.f32 %v4089, %v4435
        %v4652 = vadd.f32 %v4090, %v4436
        %v4653 = vadd.f32 %v4091, %v4438
        %v4654 = vadd.f32 %v4092, %v4440
        %v4655 = vadd.f32 %v4093, %v4442
        %v4656 = vadd.f32 %v4094, %v4444
        %v4657 = vadd.f32 %v4095, %v4445
        %v4658 = vadd.f32 %v4096, %v4446
        %v4659 = vadd.f32 %v4097, %v4448
        %v4660 = vadd.f32 %v4098, %v4450
        %v4661 = vadd.f32 %v4099, %v4452
        %v4662 = vadd.f32 %v4100, %v4454
        %v4663 = vadd.f32 %v4101, %v4455
        %v4664 = vadd.f32 %v4102, %v4456
        %v4665 = vadd.f32 %v4103, %v4458
        %v4666 = vadd.f32 %v4104, %v4460
        %v4667 = vadd.f32 %v4105, %v4462
        %v4668 = vadd.f32 %v4106, %v4464
        %v4669 = vadd.f32 %v4107, %v4465
        %v4670 = vadd.f32 %v4108, %v4466
        %v4671 = vadd.f32 %v4109, %v4468
        %v4672 = vadd.f32 %v4110, %v4470
        %v4673 = vadd.f32 %v4111, %v4472
        %v4674 = vadd.f32 %v4112, %v4474
        %v4675 = vadd.f32 %v4113, %v4475
        %v4676 = vadd.f32 %v4114, %v4476
        %v4677 = vadd.f32 %v4115, %v4478
        %v4678 = vadd.f32 %v4116, %v4480
        %v4679 = vadd.f32 %v4117, %v4482
        %v4680 = vadd.f32 %v4118, %v4484
        %v4681 = vadd.f32 %v4119, %v4485
        %v4682 = vadd.f32 %v4120, %v4486
        %v4683 = vadd.f32 %v4121, %v4488
        %v4684 = vadd.f32 %v4122, %v4490
        %v4685 = vadd.f32 %v4123, %v4492
        %v4686 = vadd.f32 %v4124, %v4494
        %v4687 = vld [vmem:[%s4] sm:$0x3]
        %v4689 = vlaneseq
        %v4690 = vshrl.u32 %v4689, 7
        %v4691 = vsub.s32 0, %v4690
        %v4692 = vrot.slane %v4687, %v4691
        %v4693 = vlaneseq
        %v4694 = vshrl.u32 %v4693, 7
        %v4695 = vsub.s32 1, %v4694
        %v4696 = vrot.slane %v4687, %v4695
        %v4699 = vadd.f32 %v4591, %v4692
        %v4700 = vadd.f32 %v4592, %v4696
        %v4701 = vadd.f32 %v4593, %v4692
        %v4702 = vadd.f32 %v4594, %v4696
        %v4703 = vadd.f32 %v4595, %v4692
        %v4704 = vadd.f32 %v4596, %v4696
        %v4705 = vadd.f32 %v4597, %v4692
        %v4706 = vadd.f32 %v4598, %v4696
        %v4707 = vadd.f32 %v4599, %v4692
        %v4708 = vadd.f32 %v4600, %v4696
        %v4709 = vadd.f32 %v4601, %v4692
        %v4710 = vadd.f32 %v4602, %v4696
        %v4711 = vadd.f32 %v4603, %v4692
        %v4712 = vadd.f32 %v4604, %v4696
        %v4713 = vadd.f32 %v4605, %v4692
        %v4714 = vadd.f32 %v4606, %v4696
        %v4715 = vadd.f32 %v4607, %v4692
        %v4716 = vadd.f32 %v4608, %v4696
        %v4717 = vadd.f32 %v4609, %v4692
        %v4718 = vadd.f32 %v4610, %v4696
        %v4719 = vadd.f32 %v4611, %v4692
        %v4720 = vadd.f32 %v4612, %v4696
        %v4721 = vadd.f32 %v4613, %v4692
        %v4722 = vadd.f32 %v4614, %v4696
        %v4723 = vadd.f32 %v4615, %v4692
        %v4724 = vadd.f32 %v4616, %v4696
        %v4725 = vadd.f32 %v4617, %v4692
        %v4726 = vadd.f32 %v4618, %v4696
        %v4727 = vadd.f32 %v4619, %v4692
        %v4728 = vadd.f32 %v4620, %v4696
        %v4729 = vadd.f32 %v4621, %v4692
        %v4730 = vadd.f32 %v4622, %v4696
        %v4731 = vadd.f32 %v4623, %v4692
        %v4732 = vadd.f32 %v4624, %v4696
        %v4733 = vadd.f32 %v4625, %v4692
        %v4734 = vadd.f32 %v4626, %v4696
        %v4735 = vadd.f32 %v4627, %v4692
        %v4736 = vadd.f32 %v4628, %v4696
        %v4737 = vadd.f32 %v4629, %v4692
        %v4738 = vadd.f32 %v4630, %v4696
        %v4739 = vadd.f32 %v4631, %v4692
        %v4740 = vadd.f32 %v4632, %v4696
        %v4741 = vadd.f32 %v4633, %v4692
        %v4742 = vadd.f32 %v4634, %v4696
        %v4743 = vadd.f32 %v4635, %v4692
        %v4744 = vadd.f32 %v4636, %v4696
        %v4745 = vadd.f32 %v4637, %v4692
        %v4746 = vadd.f32 %v4638, %v4696
        %v4747 = vadd.f32 %v4639, %v4692
        %v4748 = vadd.f32 %v4640, %v4696
        %v4749 = vadd.f32 %v4641, %v4692
        %v4750 = vadd.f32 %v4642, %v4696
        %v4751 = vadd.f32 %v4643, %v4692
        %v4752 = vadd.f32 %v4644, %v4696
        %v4753 = vadd.f32 %v4645, %v4692
        %v4754 = vadd.f32 %v4646, %v4696
        %v4755 = vadd.f32 %v4647, %v4692
        %v4756 = vadd.f32 %v4648, %v4696
        %v4757 = vadd.f32 %v4649, %v4692
        %v4758 = vadd.f32 %v4650, %v4696
        %v4759 = vadd.f32 %v4651, %v4692
        %v4760 = vadd.f32 %v4652, %v4696
        %v4761 = vadd.f32 %v4653, %v4692
        %v4762 = vadd.f32 %v4654, %v4696
        %v4763 = vadd.f32 %v4655, %v4692
        %v4764 = vadd.f32 %v4656, %v4696
        %v4765 = vadd.f32 %v4657, %v4692
        %v4766 = vadd.f32 %v4658, %v4696
        %v4767 = vadd.f32 %v4659, %v4692
        %v4768 = vadd.f32 %v4660, %v4696
        %v4769 = vadd.f32 %v4661, %v4692
        %v4770 = vadd.f32 %v4662, %v4696
        %v4771 = vadd.f32 %v4663, %v4692
        %v4772 = vadd.f32 %v4664, %v4696
        %v4773 = vadd.f32 %v4665, %v4692
        %v4774 = vadd.f32 %v4666, %v4696
        %v4775 = vadd.f32 %v4667, %v4692
        %v4776 = vadd.f32 %v4668, %v4696
        %v4777 = vadd.f32 %v4669, %v4692
        %v4778 = vadd.f32 %v4670, %v4696
        %v4779 = vadd.f32 %v4671, %v4692
        %v4780 = vadd.f32 %v4672, %v4696
        %v4781 = vadd.f32 %v4673, %v4692
        %v4782 = vadd.f32 %v4674, %v4696
        %v4783 = vadd.f32 %v4675, %v4692
        %v4784 = vadd.f32 %v4676, %v4696
        %v4785 = vadd.f32 %v4677, %v4692
        %v4786 = vadd.f32 %v4678, %v4696
        %v4787 = vadd.f32 %v4679, %v4692
        %v4788 = vadd.f32 %v4680, %v4696
        %v4789 = vadd.f32 %v4681, %v4692
        %v4790 = vadd.f32 %v4682, %v4696
        %v4791 = vadd.f32 %v4683, %v4692
        %v4792 = vadd.f32 %v4684, %v4696
        %v4793 = vadd.f32 %v4685, %v4692
        %v4794 = vadd.f32 %v4686, %v4696
        %vm4891 = vcmask 1040384
        %v4892 = vrot.slane %v4699, 7
        %v4893 = vrot.slane %v4701, 7
        %v4894 = vsel %vm4891, %v4892, %v4893
        %v4895 = vrot.slane %v4700, 7
        %v4896 = vrot.slane %v4702, 7
        %v4897 = vsel %vm4891, %v4895, %v4896
        %v4898 = vrot.slane %v4703, 7
        %v4899 = vsel %vm4891, %v4893, %v4898
        %v4900 = vrot.slane %v4704, 7
        %v4901 = vsel %vm4891, %v4896, %v4900
        %v4902 = vrot.slane %v4705, 7
        %v4903 = vrot.slane %v4707, 7
        %v4904 = vsel %vm4891, %v4902, %v4903
        %v4905 = vrot.slane %v4706, 7
        %v4906 = vrot.slane %v4708, 7
        %v4907 = vsel %vm4891, %v4905, %v4906
        %v4908 = vrot.slane %v4709, 7
        %v4909 = vsel %vm4891, %v4903, %v4908
        %v4910 = vrot.slane %v4710, 7
        %v4911 = vsel %vm4891, %v4906, %v4910
        %v4912 = vrot.slane %v4711, 7
        %v4913 = vrot.slane %v4713, 7
        %v4914 = vsel %vm4891, %v4912, %v4913
        %v4915 = vrot.slane %v4712, 7
        %v4916 = vrot.slane %v4714, 7
        %v4917 = vsel %vm4891, %v4915, %v4916
        %v4918 = vrot.slane %v4715, 7
        %v4919 = vsel %vm4891, %v4913, %v4918
        %v4920 = vrot.slane %v4716, 7
        %v4921 = vsel %vm4891, %v4916, %v4920
        %v4922 = vrot.slane %v4717, 7
        %v4923 = vrot.slane %v4719, 7
        %v4924 = vsel %vm4891, %v4922, %v4923
        %v4925 = vrot.slane %v4718, 7
        %v4926 = vrot.slane %v4720, 7
        %v4927 = vsel %vm4891, %v4925, %v4926
        %v4928 = vrot.slane %v4721, 7
        %v4929 = vsel %vm4891, %v4923, %v4928
        %v4930 = vrot.slane %v4722, 7
        %v4931 = vsel %vm4891, %v4926, %v4930
        %v4932 = vrot.slane %v4723, 7
        %v4933 = vrot.slane %v4725, 7
        %v4934 = vsel %vm4891, %v4932, %v4933
        %v4935 = vrot.slane %v4724, 7
        %v4936 = vrot.slane %v4726, 7
        %v4937 = vsel %vm4891, %v4935, %v4936
        %v4938 = vrot.slane %v4727, 7
        %v4939 = vsel %vm4891, %v4933, %v4938
        %v4940 = vrot.slane %v4728, 7
        %v4941 = vsel %vm4891, %v4936, %v4940
        %v4942 = vrot.slane %v4729, 7
        %v4943 = vrot.slane %v4731, 7
        %v4944 = vsel %vm4891, %v4942, %v4943
        %v4945 = vrot.slane %v4730, 7
        %v4946 = vrot.slane %v4732, 7
        %v4947 = vsel %vm4891, %v4945, %v4946
        %v4948 = vrot.slane %v4733, 7
        %v4949 = vsel %vm4891, %v4943, %v4948
        %v4950 = vrot.slane %v4734, 7
        %v4951 = vsel %vm4891, %v4946, %v4950
        %v4952 = vrot.slane %v4735, 7
        %v4953 = vrot.slane %v4737, 7
        %v4954 = vsel %vm4891, %v4952, %v4953
        %v4955 = vrot.slane %v4736, 7
        %v4956 = vrot.slane %v4738, 7
        %v4957 = vsel %vm4891, %v4955, %v4956
        %v4958 = vrot.slane %v4739, 7
        %v4959 = vsel %vm4891, %v4953, %v4958
        %v4960 = vrot.slane %v4740, 7
        %v4961 = vsel %vm4891, %v4956, %v4960
        %v4962 = vrot.slane %v4741, 7
        %v4963 = vrot.slane %v4743, 7
        %v4964 = vsel %vm4891, %v4962, %v4963
        %v4965 = vrot.slane %v4742, 7
        %v4966 = vrot.slane %v4744, 7
        %v4967 = vsel %vm4891, %v4965, %v4966
        %v4968 = vrot.slane %v4745, 7
        %v4969 = vsel %vm4891, %v4963, %v4968
        %v4970 = vrot.slane %v4746, 7
        %v4971 = vsel %vm4891, %v4966, %v4970
        %v4972 = vrot.slane %v4747, 7
        %v4973 = vrot.slane %v4749, 7
        %v4974 = vsel %vm4891, %v4972, %v4973
        %v4975 = vrot.slane %v4748, 7
        %v4976 = vrot.slane %v4750, 7
        %v4977 = vsel %vm4891, %v4975, %v4976
        %v4978 = vrot.slane %v4751, 7
        %v4979 = vsel %vm4891, %v4973, %v4978
        %v4980 = vrot.slane %v4752, 7
        %v4981 = vsel %vm4891, %v4976, %v4980
        %v4982 = vrot.slane %v4753, 7
        %v4983 = vrot.slane %v4755, 7
        %v4984 = vsel %vm4891, %v4982, %v4983
        %v4985 = vrot.slane %v4754, 7
        %v4986 = vrot.slane %v4756, 7
        %v4987 = vsel %vm4891, %v4985, %v4986
        %v4988 = vrot.slane %v4757, 7
        %v4989 = vsel %vm4891, %v4983, %v4988
        %v4990 = vrot.slane %v4758, 7
        %v4991 = vsel %vm4891, %v4986, %v4990
        %v4992 = vrot.slane %v4759, 7
        %v4993 = vrot.slane %v4761, 7
        %v4994 = vsel %vm4891, %v4992, %v4993
        %v4995 = vrot.slane %v4760, 7
        %v4996 = vrot.slane %v4762, 7
        %v4997 = vsel %vm4891, %v4995, %v4996
        %v4998 = vrot.slane %v4763, 7
        %v4999 = vsel %vm4891, %v4993, %v4998
        %v5000 = vrot.slane %v4764, 7
        %v5001 = vsel %vm4891, %v4996, %v5000
        %v5002 = vrot.slane %v4765, 7
        %v5003 = vrot.slane %v4767, 7
        %v5004 = vsel %vm4891, %v5002, %v5003
        %v5005 = vrot.slane %v4766, 7
        %v5006 = vrot.slane %v4768, 7
        %v5007 = vsel %vm4891, %v5005, %v5006
        %v5008 = vrot.slane %v4769, 7
        %v5009 = vsel %vm4891, %v5003, %v5008
        %v5010 = vrot.slane %v4770, 7
        %v5011 = vsel %vm4891, %v5006, %v5010
        %v5012 = vrot.slane %v4771, 7
        %v5013 = vrot.slane %v4773, 7
        %v5014 = vsel %vm4891, %v5012, %v5013
        %v5015 = vrot.slane %v4772, 7
        %v5016 = vrot.slane %v4774, 7
        %v5017 = vsel %vm4891, %v5015, %v5016
        %v5018 = vrot.slane %v4775, 7
        %v5019 = vsel %vm4891, %v5013, %v5018
        %v5020 = vrot.slane %v4776, 7
        %v5021 = vsel %vm4891, %v5016, %v5020
        %v5022 = vrot.slane %v4777, 7
        %v5023 = vrot.slane %v4779, 7
        %v5024 = vsel %vm4891, %v5022, %v5023
        %v5025 = vrot.slane %v4778, 7
        %v5026 = vrot.slane %v4780, 7
        %v5027 = vsel %vm4891, %v5025, %v5026
        %v5028 = vrot.slane %v4781, 7
        %v5029 = vsel %vm4891, %v5023, %v5028
        %v5030 = vrot.slane %v4782, 7
        %v5031 = vsel %vm4891, %v5026, %v5030
        %v5032 = vrot.slane %v4783, 7
        %v5033 = vrot.slane %v4785, 7
        %v5034 = vsel %vm4891, %v5032, %v5033
        %v5035 = vrot.slane %v4784, 7
        %v5036 = vrot.slane %v4786, 7
        %v5037 = vsel %vm4891, %v5035, %v5036
        %v5038 = vrot.slane %v4787, 7
        %v5039 = vsel %vm4891, %v5033, %v5038
        %v5040 = vrot.slane %v4788, 7
        %v5041 = vsel %vm4891, %v5036, %v5040
        %v5042 = vrot.slane %v4789, 7
        %v5043 = vrot.slane %v4791, 7
        %v5044 = vsel %vm4891, %v5042, %v5043
        %v5045 = vrot.slane %v4790, 7
        %v5046 = vrot.slane %v4792, 7
        %v5047 = vsel %vm4891, %v5045, %v5046
        %v5048 = vrot.slane %v4793, 7
        %v5049 = vsel %vm4891, %v5043, %v5048
        %v5050 = vrot.slane %v4794, 7
        %v5051 = vsel %vm4891, %v5046, %v5050
        %5116 = vxpose.xlu0.b32.start [1/16] %v4894, 128
        %5117 = vxpose.xlu0.b32.cont [2/16] %v4899, 128
        %5118 = vxpose.xlu0.b32.cont [3/16] %v4904, 128
        %5119 = vxpose.xlu0.b32.cont [4/16] %v4909, 128
        %5120 = vxpose.xlu0.b32.cont [5/16] %v4914, 128
        %5121 = vxpose.xlu0.b32.cont [6/16] %v4919, 128
        %5122 = vxpose.xlu0.b32.cont [7/16] %v4924, 128
        %5123 = vxpose.xlu0.b32.cont [8/16] %v4929, 128
        %5124 = vxpose.xlu0.b32.cont [9/16] %v4934, 128
        %5125 = vxpose.xlu0.b32.cont [10/16] %v4939, 128
        %5126 = vxpose.xlu0.b32.cont [11/16] %v4944, 128
        %5127 = vxpose.xlu0.b32.cont [12/16] %v4949, 128
        %5128 = vxpose.xlu0.b32.cont [13/16] %v4954, 128
        %5129 = vxpose.xlu0.b32.cont [14/16] %v4959, 128
        %5130 = vxpose.xlu0.b32.cont [15/16] %v4964, 128
        %5131 = vxpose.xlu0.b32.end [16/16] %v4969, 128
        %v5132 = vpop.trf.xlu0
        %v5133 = vpop.trf.xlu0
        %v5134 = vpop.trf.xlu0
        %v5135 = vpop.trf.xlu0
        %v5136 = vpop.trf.xlu0
        %v5137 = vpop.trf.xlu0
        %v5138 = vpop.trf.xlu0
        %v5139 = vpop.trf.xlu0
        %v5140 = vpop.trf.xlu0
        %v5141 = vpop.trf.xlu0
        %v5142 = vpop.trf.xlu0
        %v5143 = vpop.trf.xlu0
        %v5144 = vpop.trf.xlu0
        %v5145 = vpop.trf.xlu0
        %v5146 = vpop.trf.xlu0
        %v5147 = vpop.trf.xlu0
        %5148 = vxpose.xlu0.b32.start [1/16] %v4897, 128
        %5149 = vxpose.xlu0.b32.cont [2/16] %v4901, 128
        %5150 = vxpose.xlu0.b32.cont [3/16] %v4907, 128
        %5151 = vxpose.xlu0.b32.cont [4/16] %v4911, 128
        %5152 = vxpose.xlu0.b32.cont [5/16] %v4917, 128
        %5153 = vxpose.xlu0.b32.cont [6/16] %v4921, 128
        %5154 = vxpose.xlu0.b32.cont [7/16] %v4927, 128
        %5155 = vxpose.xlu0.b32.cont [8/16] %v4931, 128
        %5156 = vxpose.xlu0.b32.cont [9/16] %v4937, 128
        %5157 = vxpose.xlu0.b32.cont [10/16] %v4941, 128
        %5158 = vxpose.xlu0.b32.cont [11/16] %v4947, 128
        %5159 = vxpose.xlu0.b32.cont [12/16] %v4951, 128
        %5160 = vxpose.xlu0.b32.cont [13/16] %v4957, 128
        %5161 = vxpose.xlu0.b32.cont [14/16] %v4961, 128
        %5162 = vxpose.xlu0.b32.cont [15/16] %v4967, 128
        %5163 = vxpose.xlu0.b32.end [16/16] %v4971, 128
        %v5164 = vpop.trf.xlu0
        %v5165 = vpop.trf.xlu0
        %v5166 = vpop.trf.xlu0
        %v5167 = vpop.trf.xlu0
        %v5168 = vpop.trf.xlu0
        %v5169 = vpop.trf.xlu0
        %v5170 = vpop.trf.xlu0
        %v5171 = vpop.trf.xlu0
        %v5172 = vpop.trf.xlu0
        %v5173 = vpop.trf.xlu0
        %v5174 = vpop.trf.xlu0
        %v5175 = vpop.trf.xlu0
        %v5176 = vpop.trf.xlu0
        %v5177 = vpop.trf.xlu0
        %v5178 = vpop.trf.xlu0
        %v5179 = vpop.trf.xlu0
        %5180 = vxpose.xlu0.b32.start [1/16] %v4974, 128
        %5181 = vxpose.xlu0.b32.cont [2/16] %v4979, 128
        %5182 = vxpose.xlu0.b32.cont [3/16] %v4984, 128
        %5183 = vxpose.xlu0.b32.cont [4/16] %v4989, 128
        %5184 = vxpose.xlu0.b32.cont [5/16] %v4994, 128
        %5185 = vxpose.xlu0.b32.cont [6/16] %v4999, 128
        %5186 = vxpose.xlu0.b32.cont [7/16] %v5004, 128
        %5187 = vxpose.xlu0.b32.cont [8/16] %v5009, 128
        %5188 = vxpose.xlu0.b32.cont [9/16] %v5014, 128
        %5189 = vxpose.xlu0.b32.cont [10/16] %v5019, 128
        %5190 = vxpose.xlu0.b32.cont [11/16] %v5024, 128
        %5191 = vxpose.xlu0.b32.cont [12/16] %v5029, 128
        %5192 = vxpose.xlu0.b32.cont [13/16] %v5034, 128
        %5193 = vxpose.xlu0.b32.cont [14/16] %v5039, 128
        %5194 = vxpose.xlu0.b32.cont [15/16] %v5044, 128
        %5195 = vxpose.xlu0.b32.end [16/16] %v5049, 128
        %v5196 = vpop.trf.xlu0
        %v5197 = vpop.trf.xlu0
        %v5198 = vpop.trf.xlu0
        %v5199 = vpop.trf.xlu0
        %v5200 = vpop.trf.xlu0
        %v5201 = vpop.trf.xlu0
        %v5202 = vpop.trf.xlu0
        %v5203 = vpop.trf.xlu0
        %v5204 = vpop.trf.xlu0
        %v5205 = vpop.trf.xlu0
        %v5206 = vpop.trf.xlu0
        %v5207 = vpop.trf.xlu0
        %v5208 = vpop.trf.xlu0
        %v5209 = vpop.trf.xlu0
        %v5210 = vpop.trf.xlu0
        %v5211 = vpop.trf.xlu0
        %5212 = vxpose.xlu0.b32.start [1/16] %v4977, 128
        %5213 = vxpose.xlu0.b32.cont [2/16] %v4981, 128
        %5214 = vxpose.xlu0.b32.cont [3/16] %v4987, 128
        %5215 = vxpose.xlu0.b32.cont [4/16] %v4991, 128
        %5216 = vxpose.xlu0.b32.cont [5/16] %v4997, 128
        %5217 = vxpose.xlu0.b32.cont [6/16] %v5001, 128
        %5218 = vxpose.xlu0.b32.cont [7/16] %v5007, 128
        %5219 = vxpose.xlu0.b32.cont [8/16] %v5011, 128
        %5220 = vxpose.xlu0.b32.cont [9/16] %v5017, 128
        %5221 = vxpose.xlu0.b32.cont [10/16] %v5021, 128
        %5222 = vxpose.xlu0.b32.cont [11/16] %v5027, 128
        %5223 = vxpose.xlu0.b32.cont [12/16] %v5031, 128
        %5224 = vxpose.xlu0.b32.cont [13/16] %v5037, 128
        %5225 = vxpose.xlu0.b32.cont [14/16] %v5041, 128
        %5226 = vxpose.xlu0.b32.cont [15/16] %v5047, 128
        %5227 = vxpose.xlu0.b32.end [16/16] %v5051, 128
        %v5228 = vpop.trf.xlu0
        %v5229 = vpop.trf.xlu0
        %v5230 = vpop.trf.xlu0
        %v5231 = vpop.trf.xlu0
        %v5232 = vpop.trf.xlu0
        %v5233 = vpop.trf.xlu0
        %v5234 = vpop.trf.xlu0
        %v5235 = vpop.trf.xlu0
        %v5236 = vpop.trf.xlu0
        %v5237 = vpop.trf.xlu0
        %v5238 = vpop.trf.xlu0
        %v5239 = vpop.trf.xlu0
        %v5240 = vpop.trf.xlu0
        %v5241 = vpop.trf.xlu0
        %v5242 = vpop.trf.xlu0
        %v5243 = vpop.trf.xlu0
        %v5244 = vpack.c.bf16 %v5133, %v5132
        %v5245 = vpack.c.bf16 %v5197, %v5196
        %v5246 = vpack.c.bf16 %v5135, %v5134
        %v5247 = vpack.c.bf16 %v5199, %v5198
        %v5248 = vpack.c.bf16 %v5137, %v5136
        %v5249 = vpack.c.bf16 %v5201, %v5200
        %v5250 = vpack.c.bf16 %v5139, %v5138
        %v5251 = vpack.c.bf16 %v5203, %v5202
        %v5252 = vpack.c.bf16 %v5141, %v5140
        %v5253 = vpack.c.bf16 %v5205, %v5204
        %v5254 = vpack.c.bf16 %v5143, %v5142
        %v5255 = vpack.c.bf16 %v5207, %v5206
        %v5256 = vpack.c.bf16 %v5145, %v5144
        %v5257 = vpack.c.bf16 %v5209, %v5208
        %v5258 = vpack.c.bf16 %v5147, %v5146
        %v5259 = vpack.c.bf16 %v5211, %v5210
        %v5260 = vpack.c.bf16 %v5165, %v5164
        %v5261 = vpack.c.bf16 %v5229, %v5228
        %v5262 = vpack.c.bf16 %v5167, %v5166
        %v5263 = vpack.c.bf16 %v5231, %v5230
        %v5264 = vpack.c.bf16 %v5169, %v5168
        %v5265 = vpack.c.bf16 %v5233, %v5232
        %v5266 = vpack.c.bf16 %v5171, %v5170
        %v5267 = vpack.c.bf16 %v5235, %v5234
        %v5292 = vunpack.c.l.b16 %v5244
        %v5293 = vunpack.c.l.b16 %v5245
        %v5294 = vunpack.c.h.b16 %v5244
        %v5295 = vunpack.c.h.b16 %v5245
        %v5296 = vunpack.c.l.b16 %v5246
        %v5297 = vunpack.c.l.b16 %v5247
        %v5298 = vunpack.c.h.b16 %v5246
        %v5299 = vunpack.c.h.b16 %v5247
        %v5300 = vunpack.c.l.b16 %v5248
        %v5301 = vunpack.c.l.b16 %v5249
        %v5302 = vunpack.c.h.b16 %v5248
        %v5303 = vunpack.c.h.b16 %v5249
        %v5304 = vunpack.c.l.b16 %v5250
        %v5305 = vunpack.c.l.b16 %v5251
        %v5306 = vunpack.c.h.b16 %v5250
        %v5307 = vunpack.c.h.b16 %v5251
        %v5308 = vunpack.c.l.b16 %v5252
        %v5309 = vunpack.c.l.b16 %v5253
        %v5310 = vunpack.c.h.b16 %v5252
        %v5311 = vunpack.c.h.b16 %v5253
        %v5312 = vunpack.c.l.b16 %v5254
        %v5313 = vunpack.c.l.b16 %v5255
        %v5314 = vunpack.c.h.b16 %v5254
        %v5315 = vunpack.c.h.b16 %v5255
        %v5316 = vunpack.c.l.b16 %v5256
        %v5317 = vunpack.c.l.b16 %v5257
        %v5318 = vunpack.c.h.b16 %v5256
        %v5319 = vunpack.c.h.b16 %v5257
        %v5320 = vunpack.c.l.b16 %v5258
        %v5321 = vunpack.c.l.b16 %v5259
        %v5322 = vunpack.c.h.b16 %v5258
        %v5323 = vunpack.c.h.b16 %v5259
        %v5324 = vunpack.c.l.b16 %v5260
        %v5325 = vunpack.c.l.b16 %v5261
        %v5326 = vunpack.c.h.b16 %v5260
        %v5327 = vunpack.c.h.b16 %v5261
        %v5328 = vunpack.c.l.b16 %v5262
        %v5329 = vunpack.c.l.b16 %v5263
        %v5330 = vunpack.c.h.b16 %v5262
        %v5331 = vunpack.c.h.b16 %v5263
        %v5332 = vunpack.c.l.b16 %v5264
        %v5333 = vunpack.c.l.b16 %v5265
        %v5334 = vunpack.c.h.b16 %v5264
        %v5335 = vunpack.c.h.b16 %v5265
        %v5336 = vunpack.c.l.b16 %v5266
        %v5337 = vunpack.c.l.b16 %v5267
        %v5338 = vunpack.c.h.b16 %v5266
        %v5339 = vunpack.c.h.b16 %v5267
        %v5340 = vpack.c.b16 %v5293, %v5292
        %v5341 = vpack.c.b16 %v5295, %v5294
        %v5342 = vpack.c.b16 %v5297, %v5296
        %v5343 = vpack.c.b16 %v5299, %v5298
        %v5344 = vpack.c.b16 %v5301, %v5300
        %v5345 = vpack.c.b16 %v5303, %v5302
        %v5346 = vpack.c.b16 %v5305, %v5304
        %v5347 = vpack.c.b16 %v5307, %v5306
        %v5348 = vpack.c.b16 %v5309, %v5308
        %v5349 = vpack.c.b16 %v5311, %v5310
        %v5350 = vpack.c.b16 %v5313, %v5312
        %v5351 = vpack.c.b16 %v5315, %v5314
        %v5352 = vpack.c.b16 %v5317, %v5316
        %v5353 = vpack.c.b16 %v5319, %v5318
        %v5354 = vpack.c.b16 %v5321, %v5320
        %v5355 = vpack.c.b16 %v5323, %v5322
        %v5356 = vpack.c.b16 %v5325, %v5324
        %v5357 = vpack.c.b16 %v5327, %v5326
        %v5358 = vpack.c.b16 %v5329, %v5328
        %v5359 = vpack.c.b16 %v5331, %v5330
        %v5360 = vpack.c.b16 %v5333, %v5332
        %v5361 = vpack.c.b16 %v5335, %v5334
        %v5362 = vpack.c.b16 %v5337, %v5336
        %v5363 = vpack.c.b16 %v5339, %v5338
        %5388 = vst [vmem:[%s271] sm:$0xff] %v5340
        %5389 = vst [vmem:[%s271 + $0x8] sm:$0xff] %v5341
        %5390 = vst [vmem:[%s271 + $0x10] sm:$0xff] %v5342
        %5391 = vst [vmem:[%s271 + $0x18] sm:$0xff] %v5343
        %5392 = vst [vmem:[%s271 + $0x20] sm:$0xff] %v5344
        %5393 = vst [vmem:[%s271 + $0x28] sm:$0xff] %v5345
        %5394 = vst [vmem:[%s271 + $0x30] sm:$0xff] %v5346
        %5395 = vst [vmem:[%s271 + $0x38] sm:$0xff] %v5347
        %5396 = vst [vmem:[%s271 + $0x40] sm:$0xff] %v5348
        %5397 = vst [vmem:[%s271 + $0x48] sm:$0xff] %v5349
        %5398 = vst [vmem:[%s271 + $0x50] sm:$0xff] %v5350
        %5399 = vst [vmem:[%s271 + $0x58] sm:$0xff] %v5351
        %5400 = vst [vmem:[%s271 + $0x60] sm:$0xff] %v5352
        %5401 = vst [vmem:[%s271 + $0x68] sm:$0xff] %v5353
        %5402 = vst [vmem:[%s271 + $0x70] sm:$0xff] %v5354
        %5403 = vst [vmem:[%s271 + $0x78] sm:$0xff] %v5355
        %5404 = vst [vmem:[%s271 + $0x80] sm:$0xff] %v5356
        %5405 = vst [vmem:[%s271 + $0x88] sm:$0xff] %v5357
        %5406 = vst [vmem:[%s271 + $0x90] sm:$0xff] %v5358
        %5407 = vst [vmem:[%s271 + $0x98] sm:$0xff] %v5359
        %5408 = vst [vmem:[%s271 + $0xa0] sm:$0xff] %v5360
        %5409 = vst [vmem:[%s271 + $0xa8] sm:$0xff] %v5361
        %5410 = vst [vmem:[%s271 + $0xb0] sm:$0xff] %v5362
        %5411 = vst [vmem:[%s271 + $0xb8] sm:$0xff] %v5363
        %s5412 = sand.u32 %s141, 1
        %s5413 = scalar_lea.sflag [#allocation5], %s5412
        %s5414 = sand.u32 %s141, 1
        %s5415 = smul.addr %s5414, 192
        %s5416 = scalar_lea.vmem [#allocation9], %s5415
        // Predicated region
        $region53: #{tpu_custom_call.1} parent=39 // pred_check
          %p5417 = pneg %p151
        $region54: #{tpu_custom_call.1} parent=39 // pred_check_branch
          %5419 = sbr.rel (%p5417) target = $region56
        $region55: #{tpu_custom_call.1} parent=39 // pred_region
          %s5421 = ssub.s32 3072, 3072
          %5422 = vsyncadd %s5413, %s5421
          %s5423 = smul.addr %s23, 48
          %s5424 = smul.addr %s5423, 64
          %s5425 = scalar_lea.hbm %s5, %s5424
          %s5426 = sshll.u32 %s5416, 4
          %s5427 = int_to_ptr.vmem [resolvable:$true] %s5426
          %5432 = dma.vmem_to_hbm [thread:$0]  %s5427, 3072, %s5425, %s5413, 128, 128, 8
        $region56: #{tpu_custom_call.1} parent=39 // pred_fallthru
          _
      $region40: #{tpu_custom_call.1} parent=5 // pred_fallthru
        _
      %p5433 = scmp.le.s32.totalorder 2, %s18
      // Predicated region
      $region57: #{tpu_custom_call.1} parent=5 // pred_check
        %p5434 = pneg %p5433
      $region58: #{tpu_custom_call.1} parent=5 // pred_check_branch
        %5436 = sbr.rel (%p5434) target = $region60
      $region59: #{tpu_custom_call.1} parent=5 // pred_region
        %s5437 = ssub.s32 %s18, 2
        // Predicated region
        $region61: #{tpu_custom_call.1} parent=59 // pred_check
          %p5438 = pneg %p157
        $region62: #{tpu_custom_call.1} parent=59 // pred_check_branch
          %5440 = sbr.rel (%p5438) target = $region64
        $region63: #{tpu_custom_call.1} parent=59 // pred_region
          %s5441 = sand.u32 %s142, 1
          %s5442 = scalar_lea.sflag [#allocation5], %s5441
          %s5443 = sand.u32 %s142, 1
          %s5444 = smul.addr %s5443, 192
          %s5445 = scalar_lea.vmem [#allocation9], %s5444
          %5446 = dma.done %s5442, 3072
        $region64: #{tpu_custom_call.1} parent=59 // pred_fallthru
          _
      $region60: #{tpu_custom_call.1} parent=5 // pred_fallthru
        _
    $region6: #{tpu_custom_call.1} parent=1 // loop_footer
      %s22 = sadd.s32 1, %s18
    $region7: #{tpu_custom_call.1} parent=1 // loop_footer_branch
      %17 = sbr.rel target = $region3
    $region8: #{tpu_custom_call.1} parent=1 // loop_exit
      _
    %5447 = vsyncpa [#allocation4], 1
    %s5448 = scalar_lea.sflag [#allocation4], 1
    %5449 = vsyncpa %s5448, 1
    %5450 = vsyncpa [#allocation7], 1
    %5451 = vsyncpa [#allocation5], 1
    %s5452 = scalar_lea.sflag [#allocation5], 1
    %5453 = vsyncpa %s5452, 1

</llo_original>
